<compile_context>
chip_gen: v5e
topology: v5e:2x2
jax: 0.10.0
libtpu: 0.0.40
codegen_flags: <defaults>
</compile_context>

<pallas_src>
import functools
import math

import jax
import jax.numpy as jnp
from jax.experimental import pallas as pl
from jax.experimental.pallas import tpu as pltpu


def _layer_norm(v, gamma, beta, eps=1e-10):
    mean = jnp.mean(v, axis=-1, keepdims=True)
    c = v - mean
    var = jnp.mean(c * c, axis=-1, keepdims=True)
    return gamma * (c * jax.lax.rsqrt(var + eps)) + beta


def _encoder_layer_kernel(n_head,
                          lens_ref,                       # SMEM (B,) int32 (scalar prefetch)
                          x_ref,                          # (TB, S, D)
                          wqkv_ref, bqkv_ref, wo_ref, bo_ref,
                          g1_ref, be1_ref,
                          w1_ref, bf1_ref, w2_ref, bf2_ref,
                          g2_ref, be2_ref,
                          out_ref):                       # (TB, S, D)
    TB, S, D = x_ref.shape
    dh = D // n_head
    inv_sqrt_dh = jnp.float32(1.0 / math.sqrt(dh))
    b = pl.program_id(0)

    # Flatten the batch tile so every projection / FFN matmul has TB*S rows.
    x2 = x_ref[...].reshape(TB * S, D)                    # (TB*S, D)

    # --- fused QKV projection: one MXU call ---
    qkv = (jnp.dot(x2, wqkv_ref[...], preferred_element_type=jnp.float32)
           + bqkv_ref[...])                               # (TB*S, 3D)

    # --- additive key-padding bias, built once per tile from SMEM lengths ---
    col = jax.lax.broadcasted_iota(jnp.int32, (1, S, S), 2)
    bias_rows = []
    for t in range(TB):
        len_t = lens_ref[b * TB + t]
        bias_rows.append(jnp.where(col < len_t, 0.0, -1e9))
    bias = jnp.concatenate(bias_rows, axis=0).astype(jnp.float32)   # (TB, S, S)

    # --- per-head masked softmax attention (static head loop, batched over TB) ---
    wo = wo_ref[...]                                      # (D, D), loaded once
    attn_out = None
    for h in range(n_head):
        lo = h * dh
        qh = qkv[:, lo:lo + dh].reshape(TB, S, dh)
        kh = qkv[:, D + lo:D + lo + dh].reshape(TB, S, dh)
        vh = qkv[:, 2 * D + lo:2 * D + lo + dh].reshape(TB, S, dh)

        s = jnp.einsum("bqd,bkd->bqk", qh, kh,
                       preferred_element_type=jnp.float32)          # (TB, S, S)
        s = s * inv_sqrt_dh + bias
        s = s - jnp.max(s, axis=-1, keepdims=True)
        p = jnp.exp(s)
        p = p * pl.reciprocal(jnp.sum(p, axis=-1, keepdims=True), approx=True)

        ctx = jnp.einsum("bqk,bkd->bqd", p, vh,
                         preferred_element_type=jnp.float32)        # (TB, S, dh)
        # Fold this head directly into the output projection (no concatenate):
        part = jnp.dot(ctx.reshape(TB * S, dh), wo[lo:lo + dh, :],
                       preferred_element_type=jnp.float32)          # (TB*S, D)
        attn_out = part if attn_out is None else attn_out + part
    attn_out = attn_out + bo_ref[...]

    # TODO(synk): dropout1 / dropout2 are identity (inference mode); training
    # dropout would use pltpu.prng_seed / pltpu.prng_random_bits.
    n1 = _layer_norm(attn_out + x2, g1_ref[...], be1_ref[...])

    # --- position-wise FFN ---
    h1 = jnp.maximum(
        jnp.dot(n1, w1_ref[...], preferred_element_type=jnp.float32)
        + bf1_ref[...], 0.0)
    ffn = (jnp.dot(h1, w2_ref[...], preferred_element_type=jnp.float32)
           + bf2_ref[...])

    n2 = _layer_norm(ffn + n1, g2_ref[...], be2_ref[...])
    out_ref[...] = n2.reshape(TB, S, D).astype(out_ref.dtype)


def encoder_layer_forward(x, valid_len, params, *, n_head, block_b=None):
    """x: (B, S, D) f32; valid_len: (B,) int32 number of valid keys per batch."""
    B, S, D = x.shape
    assert D % n_head == 0

    if block_b is None:
        # Largest batch tile dividing B with TB*S <= 128 rows (saturates v5e MXU,
        # keeps the grid >= 2 steps at these sizes for v7x's two TensorCores).
        block_b = 1
        for tb in range(1, B + 1):
            if B % tb == 0 and tb * S <= 128:
                block_b = tb
    assert B % block_b == 0, (B, block_b)

    # Fused QKV weights: one (D, 3D) slab / (1, 3D) bias.
    wqkv = jnp.concatenate([params["wq"], params["wk"], params["wv"]], axis=1)
    bqkv = jnp.concatenate([params["bq"], params["bk"], params["bv"]], axis=1)

    weight_args = [wqkv, bqkv, params["wo"], params["bo"],
                   params["g1"], params["be1"],
                   params["w1"], params["bf1"], params["w2"], params["bf2"],
                   params["g2"], params["be2"]]
    # Full-extent 2-D blocks with constant index_map -> VMEM-resident weights.
    weight_specs = [pl.BlockSpec(w.shape, lambda b, lens: (0, 0))
                    for w in weight_args]

    grid_spec = pltpu.PrefetchScalarGridSpec(
        num_scalar_prefetch=1,                 # valid_len -> SMEM
        grid=(B // block_b,),
        in_specs=[
            pl.BlockSpec((block_b, S, D), lambda b, lens: (b, 0, 0)),   # x tile
            *weight_specs,
        ],
        out_specs=pl.BlockSpec((block_b, S, D), lambda b, lens: (b, 0, 0)),
    )

    return pl.pallas_call(
        functools.partial(_encoder_layer_kernel, n_head),
        out_shape=jax.ShapeDtypeStruct((B, S, D), x.dtype),
        grid_spec=grid_spec,
        compiler_params=pltpu.CompilerParams(
            dimension_semantics=("parallel",),
            vmem_limit_bytes=32 * 1024 * 1024),
    )(valid_len.astype(jnp.int32), x, *weight_args)


def encoder_layer_reference(x, valid_len, p, *, n_head):
    """Pure-JAX reference matching the PyTorch module semantics."""
    P = jax.lax.Precision.HIGHEST
    B, S, D = x.shape
    dh = D // n_head

    key_pos = jnp.arange(S, dtype=jnp.int32)
    mask = (key_pos[None, None, :] < valid_len[:, None, None]).astype(jnp.float32)
    mask = jnp.broadcast_to(mask, (B, S, S))

    def lin(v, w, b):
        return jnp.einsum("bsd,df->bsf", v, w, precision=P) + b

    def ln(v, g, b):
        m = v.mean(-1, keepdims=True)
        var = ((v - m) ** 2).mean(-1, keepdims=True)
        return g * (v - m) / jnp.sqrt(var + 1e-10) + b

    q = lin(x, p["wq"], p["bq"]).reshape(B, S, n_head, dh).transpose(0, 2, 1, 3)
    k = lin(x, p["wk"], p["bk"]).reshape(B, S, n_head, dh).transpose(0, 2, 1, 3)
    v = lin(x, p["wv"], p["bv"]).reshape(B, S, n_head, dh).transpose(0, 2, 1, 3)
    score = jnp.einsum("bhqd,bhkd->bhqk", q, k, precision=P) / math.sqrt(dh)
    score = jnp.where(mask[:, None, :, :] == 0.0, -1e9, score)
    attn = jax.nn.softmax(score, axis=-1)
    wv = jnp.einsum("bhqk,bhkd->bhqd", attn, v, precision=P)
    wv = wv.transpose(0, 2, 1, 3).reshape(B, S, D)
    attn_out = lin(wv, p["wo"], p["bo"])
    n1 = ln(attn_out + x, p["g1"], p["be1"])
    h = jax.nn.relu(lin(n1, p["w1"], p["bf1"]))
    ffn_out = lin(h, p["w2"], p["bf2"])
    return ln(ffn_out + n1, p["g2"], p["be2"])


if __name__ == "__main__":
    B, S, D, n_head, H = 16, 16, 128, 4, 256   # -> TB=8, grid=(2,), 128-row matmuls

    key = jax.random.PRNGKey(0)
    k_x, k_q, k_k, k_v, k_o, k_f1, k_f2 = jax.random.split(key, 7)

    def linear_init(k, fan_in, fan_out):
        bound = 1.0 / math.sqrt(fan_in)
        kw, kb = jax.random.split(k)
        w = jax.random.uniform(kw, (fan_in, fan_out), jnp.float32, -bound, bound)
        b = jax.random.uniform(kb, (1, fan_out), jnp.float32, -bound, bound)
        return w, b

    wq, bq = linear_init(k_q, D, D)
    wk, bk = linear_init(k_k, D, D)
    wv, bv = linear_init(k_v, D, D)
    wo, bo = linear_init(k_o, D, D)
    w1, bf1 = linear_init(k_f1, D, H)
    w2, bf2 = linear_init(k_f2, H, D)

    params = dict(
        wq=wq, bq=bq, wk=wk, bk=bk, wv=wv, bv=bv, wo=wo, bo=bo,
        g1=jnp.ones((1, D), jnp.float32), be1=jnp.zeros((1, D), jnp.float32),
        w1=w1, bf1=bf1, w2=w2, bf2=bf2,
        g2=jnp.ones((1, D), jnp.float32), be2=jnp.zeros((1, D), jnp.float32),
    )

    x = jax.random.normal(k_x, (B, S, D), jnp.float32)

    # Key-padding lengths: each batch element keeps the first valid_len[b] keys.
    valid_len = (S - (jnp.arange(B, dtype=jnp.int32) % 5)).astype(jnp.int32)

    out = encoder_layer_forward(x, valid_len, params, n_head=n_head)
    out = jax.block_until_ready(out)

    ref = encoder_layer_reference(x, valid_len, params, n_head=n_head)
    assert out.shape == (B, S, D)
    max_err = float(jnp.max(jnp.abs(out - ref)))
    assert jnp.allclose(out, ref, atol=5e-3, rtol=5e-3), f"max_err={max_err}"

    print("KERNEL_OK")
</pallas_src>

<mosaic_0001>
module attributes {stable_mosaic.version = 11 : i64} {
  func.func @_encoder_layer_kernel(%arg0: i32, %arg1: memref<16xi32, #tpu.memory_space<smem>>, %arg2: memref<8x16x128xf32, #tpu.memory_space<vmem>>, %arg3: memref<128x384xf32, #tpu.memory_space<vmem>>, %arg4: memref<1x384xf32, #tpu.memory_space<vmem>>, %arg5: memref<128x128xf32, #tpu.memory_space<vmem>>, %arg6: memref<1x128xf32, #tpu.memory_space<vmem>>, %arg7: memref<1x128xf32, #tpu.memory_space<vmem>>, %arg8: memref<1x128xf32, #tpu.memory_space<vmem>>, %arg9: memref<128x256xf32, #tpu.memory_space<vmem>>, %arg10: memref<1x256xf32, #tpu.memory_space<vmem>>, %arg11: memref<256x128xf32, #tpu.memory_space<vmem>>, %arg12: memref<1x128xf32, #tpu.memory_space<vmem>>, %arg13: memref<1x128xf32, #tpu.memory_space<vmem>>, %arg14: memref<1x128xf32, #tpu.memory_space<vmem>>, %arg15: memref<8x16x128xf32, #tpu.memory_space<vmem>>) attributes {dimension_semantics = [#tpu.dimension_semantics<parallel>], iteration_bounds = array<i64: 2>, scalar_prefetch = 1 : i64, scratch_operands = 0 : i64, tpu.core_type = #tpu.core_type<tc>, window_params = [{transform_indices = @transform_0, window_bounds = array<i64: 8, 16, 128>}, {pipeline_mode = #tpu.pipeline_mode<synchronous>, transform_indices = @transform_1, window_bounds = array<i64: 128, 384>}, {pipeline_mode = #tpu.pipeline_mode<synchronous>, transform_indices = @transform_2, window_bounds = array<i64: 1, 384>}, {pipeline_mode = #tpu.pipeline_mode<synchronous>, transform_indices = @transform_3, window_bounds = array<i64: 128, 128>}, {pipeline_mode = #tpu.pipeline_mode<synchronous>, transform_indices = @transform_4, window_bounds = array<i64: 1, 128>}, {pipeline_mode = #tpu.pipeline_mode<synchronous>, transform_indices = @transform_5, window_bounds = array<i64: 1, 128>}, {pipeline_mode = #tpu.pipeline_mode<synchronous>, transform_indices = @transform_6, window_bounds = array<i64: 1, 128>}, {pipeline_mode = #tpu.pipeline_mode<synchronous>, transform_indices = @transform_7, window_bounds = array<i64: 128, 256>}, {pipeline_mode = #tpu.pipeline_mode<synchronous>, transform_indices = @transform_8, window_bounds = array<i64: 1, 256>}, {pipeline_mode = #tpu.pipeline_mode<synchronous>, transform_indices = @transform_9, window_bounds = array<i64: 256, 128>}, {pipeline_mode = #tpu.pipeline_mode<synchronous>, transform_indices = @transform_10, window_bounds = array<i64: 1, 128>}, {pipeline_mode = #tpu.pipeline_mode<synchronous>, transform_indices = @transform_11, window_bounds = array<i64: 1, 128>}, {pipeline_mode = #tpu.pipeline_mode<synchronous>, transform_indices = @transform_12, window_bounds = array<i64: 1, 128>}, {transform_indices = @transform_13, window_bounds = array<i64: 8, 16, 128>}]} {
    %c0 = arith.constant 0 : index
    %c0_0 = arith.constant 0 : index
    %c0_1 = arith.constant 0 : index
    %0 = vector.load %arg2[%c0, %c0_0, %c0_1] : memref<8x16x128xf32, #tpu.memory_space<vmem>>, vector<8x16x128xf32>
    %1 = vector.shape_cast %0 : vector<8x16x128xf32> to vector<128x128xf32>
    %c0_2 = arith.constant 0 : index
    %c0_3 = arith.constant 0 : index
    %2 = vector.load %arg3[%c0_2, %c0_3] : memref<128x384xf32, #tpu.memory_space<vmem>>, vector<128x384xf32>
    %cst = arith.constant dense<0.000000e+00> : vector<128x384xf32>
    %3 = tpu.matmul %1, %2, %cst {dimension_numbers = #tpu.dot_dimension_numbers<[1], [0], [0], [1], [0, 0, 1, 1], [], []>} : vector<128x128xf32>, vector<128x384xf32>, vector<128x384xf32> -> vector<128x384xf32>
    %c0_4 = arith.constant 0 : index
    %c0_5 = arith.constant 0 : index
    %4 = vector.load %arg4[%c0_4, %c0_5] : memref<1x384xf32, #tpu.memory_space<vmem>>, vector<1x384xf32>
    %5 = vector.broadcast %4 : vector<1x384xf32> to vector<128x384xf32>
    %6 = arith.addf %3, %5 : vector<128x384xf32>
    %7 = tpu.iota {dimensions = array<i32: 2>} : vector<1x16x16xi32>
    %c8_i32 = arith.constant 8 : i32
    %8 = arith.muli %arg0, %c8_i32 : i32
    %c0_i32 = arith.constant 0 : i32
    %9 = arith.addi %8, %c0_i32 : i32
    %10 = arith.index_cast %9 : i32 to index
    %11 = memref.load %arg1[%10] : memref<16xi32, #tpu.memory_space<smem>>
    %12 = vector.broadcast %11 : i32 to vector<1x16x16xi32>
    %13 = arith.cmpi slt, %7, %12 : vector<1x16x16xi32>
    %cst_6 = arith.constant 0.000000e+00 : f32
    %cst_7 = arith.constant -1.000000e+09 : f32
    %14 = vector.broadcast %cst_6 : f32 to vector<1x16x16xf32>
    %15 = vector.broadcast %cst_7 : f32 to vector<1x16x16xf32>
    %16 = arith.select %13, %14, %15 : vector<1x16x16xi1>, vector<1x16x16xf32>
    %c8_i32_8 = arith.constant 8 : i32
    %17 = arith.muli %arg0, %c8_i32_8 : i32
    %c1_i32 = arith.constant 1 : i32
    %18 = arith.addi %17, %c1_i32 : i32
    %19 = arith.index_cast %18 : i32 to index
    %20 = memref.load %arg1[%19] : memref<16xi32, #tpu.memory_space<smem>>
    %21 = vector.broadcast %20 : i32 to vector<1x16x16xi32>
    %22 = arith.cmpi slt, %7, %21 : vector<1x16x16xi32>
    %cst_9 = arith.constant 0.000000e+00 : f32
    %cst_10 = arith.constant -1.000000e+09 : f32
    %23 = vector.broadcast %cst_9 : f32 to vector<1x16x16xf32>
    %24 = vector.broadcast %cst_10 : f32 to vector<1x16x16xf32>
    %25 = arith.select %22, %23, %24 : vector<1x16x16xi1>, vector<1x16x16xf32>
    %c8_i32_11 = arith.constant 8 : i32
    %26 = arith.muli %arg0, %c8_i32_11 : i32
    %c2_i32 = arith.constant 2 : i32
    %27 = arith.addi %26, %c2_i32 : i32
    %28 = arith.index_cast %27 : i32 to index
    %29 = memref.load %arg1[%28] : memref<16xi32, #tpu.memory_space<smem>>
    %30 = vector.broadcast %29 : i32 to vector<1x16x16xi32>
    %31 = arith.cmpi slt, %7, %30 : vector<1x16x16xi32>
    %cst_12 = arith.constant 0.000000e+00 : f32
    %cst_13 = arith.constant -1.000000e+09 : f32
    %32 = vector.broadcast %cst_12 : f32 to vector<1x16x16xf32>
    %33 = vector.broadcast %cst_13 : f32 to vector<1x16x16xf32>
    %34 = arith.select %31, %32, %33 : vector<1x16x16xi1>, vector<1x16x16xf32>
    %c8_i32_14 = arith.constant 8 : i32
    %35 = arith.muli %arg0, %c8_i32_14 : i32
    %c3_i32 = arith.constant 3 : i32
    %36 = arith.addi %35, %c3_i32 : i32
    %37 = arith.index_cast %36 : i32 to index
    %38 = memref.load %arg1[%37] : memref<16xi32, #tpu.memory_space<smem>>
    %39 = vector.broadcast %38 : i32 to vector<1x16x16xi32>
    %40 = arith.cmpi slt, %7, %39 : vector<1x16x16xi32>
    %cst_15 = arith.constant 0.000000e+00 : f32
    %cst_16 = arith.constant -1.000000e+09 : f32
    %41 = vector.broadcast %cst_15 : f32 to vector<1x16x16xf32>
    %42 = vector.broadcast %cst_16 : f32 to vector<1x16x16xf32>
    %43 = arith.select %40, %41, %42 : vector<1x16x16xi1>, vector<1x16x16xf32>
    %c8_i32_17 = arith.constant 8 : i32
    %44 = arith.muli %arg0, %c8_i32_17 : i32
    %c4_i32 = arith.constant 4 : i32
    %45 = arith.addi %44, %c4_i32 : i32
    %46 = arith.index_cast %45 : i32 to index
    %47 = memref.load %arg1[%46] : memref<16xi32, #tpu.memory_space<smem>>
    %48 = vector.broadcast %47 : i32 to vector<1x16x16xi32>
    %49 = arith.cmpi slt, %7, %48 : vector<1x16x16xi32>
    %cst_18 = arith.constant 0.000000e+00 : f32
    %cst_19 = arith.constant -1.000000e+09 : f32
    %50 = vector.broadcast %cst_18 : f32 to vector<1x16x16xf32>
    %51 = vector.broadcast %cst_19 : f32 to vector<1x16x16xf32>
    %52 = arith.select %49, %50, %51 : vector<1x16x16xi1>, vector<1x16x16xf32>
    %c8_i32_20 = arith.constant 8 : i32
    %53 = arith.muli %arg0, %c8_i32_20 : i32
    %c5_i32 = arith.constant 5 : i32
    %54 = arith.addi %53, %c5_i32 : i32
    %55 = arith.index_cast %54 : i32 to index
    %56 = memref.load %arg1[%55] : memref<16xi32, #tpu.memory_space<smem>>
    %57 = vector.broadcast %56 : i32 to vector<1x16x16xi32>
    %58 = arith.cmpi slt, %7, %57 : vector<1x16x16xi32>
    %cst_21 = arith.constant 0.000000e+00 : f32
    %cst_22 = arith.constant -1.000000e+09 : f32
    %59 = vector.broadcast %cst_21 : f32 to vector<1x16x16xf32>
    %60 = vector.broadcast %cst_22 : f32 to vector<1x16x16xf32>
    %61 = arith.select %58, %59, %60 : vector<1x16x16xi1>, vector<1x16x16xf32>
    %c8_i32_23 = arith.constant 8 : i32
    %62 = arith.muli %arg0, %c8_i32_23 : i32
    %c6_i32 = arith.constant 6 : i32
    %63 = arith.addi %62, %c6_i32 : i32
    %64 = arith.index_cast %63 : i32 to index
    %65 = memref.load %arg1[%64] : memref<16xi32, #tpu.memory_space<smem>>
    %66 = vector.broadcast %65 : i32 to vector<1x16x16xi32>
    %67 = arith.cmpi slt, %7, %66 : vector<1x16x16xi32>
    %cst_24 = arith.constant 0.000000e+00 : f32
    %cst_25 = arith.constant -1.000000e+09 : f32
    %68 = vector.broadcast %cst_24 : f32 to vector<1x16x16xf32>
    %69 = vector.broadcast %cst_25 : f32 to vector<1x16x16xf32>
    %70 = arith.select %67, %68, %69 : vector<1x16x16xi1>, vector<1x16x16xf32>
    %c8_i32_26 = arith.constant 8 : i32
    %71 = arith.muli %arg0, %c8_i32_26 : i32
    %c7_i32 = arith.constant 7 : i32
    %72 = arith.addi %71, %c7_i32 : i32
    %73 = arith.index_cast %72 : i32 to index
    %74 = memref.load %arg1[%73] : memref<16xi32, #tpu.memory_space<smem>>
    %75 = vector.broadcast %74 : i32 to vector<1x16x16xi32>
    %76 = arith.cmpi slt, %7, %75 : vector<1x16x16xi32>
    %cst_27 = arith.constant 0.000000e+00 : f32
    %cst_28 = arith.constant -1.000000e+09 : f32
    %77 = vector.broadcast %cst_27 : f32 to vector<1x16x16xf32>
    %78 = vector.broadcast %cst_28 : f32 to vector<1x16x16xf32>
    %79 = arith.select %76, %77, %78 : vector<1x16x16xi1>, vector<1x16x16xf32>
    %80 = tpu.concatenate %16, %25, %34, %43, %52, %61, %70, %79 in 0 : vector<1x16x16xf32>, vector<1x16x16xf32>, vector<1x16x16xf32>, vector<1x16x16xf32>, vector<1x16x16xf32>, vector<1x16x16xf32>, vector<1x16x16xf32>, vector<1x16x16xf32> -> vector<8x16x16xf32>
    %c0_29 = arith.constant 0 : index
    %c0_30 = arith.constant 0 : index
    %81 = vector.load %arg5[%c0_29, %c0_30] : memref<128x128xf32, #tpu.memory_space<vmem>>, vector<128x128xf32>
    %82 = vector.extract_strided_slice %6 {offsets = [0, 0], sizes = [128, 32], strides = [1, 1]} : vector<128x384xf32> to vector<128x32xf32>
    %83 = vector.shape_cast %82 : vector<128x32xf32> to vector<8x16x32xf32>
    %84 = vector.extract_strided_slice %6 {offsets = [0, 128], sizes = [128, 32], strides = [1, 1]} : vector<128x384xf32> to vector<128x32xf32>
    %85 = vector.shape_cast %84 : vector<128x32xf32> to vector<8x16x32xf32>
    %86 = vector.extract_strided_slice %6 {offsets = [0, 256], sizes = [128, 32], strides = [1, 1]} : vector<128x384xf32> to vector<128x32xf32>
    %87 = vector.shape_cast %86 : vector<128x32xf32> to vector<8x16x32xf32>
    "tpu.trace_start"() <{level = 10 : i32, message = "bqd,bkd->bqk"}> : () -> ()
    %cst_31 = arith.constant dense<0.000000e+00> : vector<8x16x16xf32>
    %88 = tpu.matmul %83, %85, %cst_31 {dimension_numbers = #tpu.dot_dimension_numbers<[2], [2], [1], [1], [0, 0, 0, 1, 1, 1], [0], [0]>} : vector<8x16x32xf32>, vector<8x16x32xf32>, vector<8x16x16xf32> -> vector<8x16x16xf32>
    "tpu.trace_stop"() : () -> ()
    %cst_32 = arith.constant 0.176776692 : f32
    %89 = vector.broadcast %cst_32 : f32 to vector<8x16x16xf32>
    %90 = arith.mulf %88, %89 : vector<8x16x16xf32>
    %91 = arith.addf %90, %80 : vector<8x16x16xf32>
    %cst_33 = arith.constant dense<0xFF800000> : vector<8x16xf32>
    %92 = vector.multi_reduction <maximumf>, %91, %cst_33 [2] : vector<8x16x16xf32> to vector<8x16xf32>
    %93 = vector.shape_cast %92 : vector<8x16xf32> to vector<8x16x1xf32>
    %94 = vector.broadcast %93 : vector<8x16x1xf32> to vector<8x16x16xf32>
    %95 = arith.subf %91, %94 : vector<8x16x16xf32>
    %96 = math.exp %95 : vector<8x16x16xf32>
    %cst_34 = arith.constant dense<0.000000e+00> : vector<8x16xf32>
    %97 = vector.multi_reduction <add>, %96, %cst_34 [2] : vector<8x16x16xf32> to vector<8x16xf32>
    %98 = vector.shape_cast %97 : vector<8x16xf32> to vector<8x16x1xf32>
    %99 = tpu.reciprocal %98 {approx = true} : vector<8x16x1xf32> -> vector<8x16x1xf32>
    %100 = vector.broadcast %99 : vector<8x16x1xf32> to vector<8x16x16xf32>
    %101 = arith.mulf %96, %100 : vector<8x16x16xf32>
    "tpu.trace_start"() <{level = 10 : i32, message = "bqk,bkd->bqd"}> : () -> ()
    %cst_35 = arith.constant dense<0.000000e+00> : vector<8x16x32xf32>
    %102 = tpu.matmul %101, %87, %cst_35 {dimension_numbers = #tpu.dot_dimension_numbers<[2], [1], [1], [2], [0, 0, 0, 1, 1, 2], [0], [0]>} : vector<8x16x16xf32>, vector<8x16x32xf32>, vector<8x16x32xf32> -> vector<8x16x32xf32>
    "tpu.trace_stop"() : () -> ()
    %103 = vector.shape_cast %102 : vector<8x16x32xf32> to vector<128x32xf32>
    %104 = vector.extract_strided_slice %81 {offsets = [0, 0], sizes = [32, 128], strides = [1, 1]} : vector<128x128xf32> to vector<32x128xf32>
    %cst_36 = arith.constant dense<0.000000e+00> : vector<128x128xf32>
    %105 = tpu.matmul %103, %104, %cst_36 {dimension_numbers = #tpu.dot_dimension_numbers<[1], [0], [0], [1], [0, 0, 1, 1], [], []>} : vector<128x32xf32>, vector<32x128xf32>, vector<128x128xf32> -> vector<128x128xf32>
    %106 = vector.extract_strided_slice %6 {offsets = [0, 32], sizes = [128, 32], strides = [1, 1]} : vector<128x384xf32> to vector<128x32xf32>
    %107 = vector.shape_cast %106 : vector<128x32xf32> to vector<8x16x32xf32>
    %108 = vector.extract_strided_slice %6 {offsets = [0, 160], sizes = [128, 32], strides = [1, 1]} : vector<128x384xf32> to vector<128x32xf32>
    %109 = vector.shape_cast %108 : vector<128x32xf32> to vector<8x16x32xf32>
    %110 = vector.extract_strided_slice %6 {offsets = [0, 288], sizes = [128, 32], strides = [1, 1]} : vector<128x384xf32> to vector<128x32xf32>
    %111 = vector.shape_cast %110 : vector<128x32xf32> to vector<8x16x32xf32>
    "tpu.trace_start"() <{level = 10 : i32, message = "bqd,bkd->bqk"}> : () -> ()
    %cst_37 = arith.constant dense<0.000000e+00> : vector<8x16x16xf32>
    %112 = tpu.matmul %107, %109, %cst_37 {dimension_numbers = #tpu.dot_dimension_numbers<[2], [2], [1], [1], [0, 0, 0, 1, 1, 1], [0], [0]>} : vector<8x16x32xf32>, vector<8x16x32xf32>, vector<8x16x16xf32> -> vector<8x16x16xf32>
    "tpu.trace_stop"() : () -> ()
    %cst_38 = arith.constant 0.176776692 : f32
    %113 = vector.broadcast %cst_38 : f32 to vector<8x16x16xf32>
    %114 = arith.mulf %112, %113 : vector<8x16x16xf32>
    %115 = arith.addf %114, %80 : vector<8x16x16xf32>
    %cst_39 = arith.constant dense<0xFF800000> : vector<8x16xf32>
    %116 = vector.multi_reduction <maximumf>, %115, %cst_39 [2] : vector<8x16x16xf32> to vector<8x16xf32>
    %117 = vector.shape_cast %116 : vector<8x16xf32> to vector<8x16x1xf32>
    %118 = vector.broadcast %117 : vector<8x16x1xf32> to vector<8x16x16xf32>
    %119 = arith.subf %115, %118 : vector<8x16x16xf32>
    %120 = math.exp %119 : vector<8x16x16xf32>
    %cst_40 = arith.constant dense<0.000000e+00> : vector<8x16xf32>
    %121 = vector.multi_reduction <add>, %120, %cst_40 [2] : vector<8x16x16xf32> to vector<8x16xf32>
    %122 = vector.shape_cast %121 : vector<8x16xf32> to vector<8x16x1xf32>
    %123 = tpu.reciprocal %122 {approx = true} : vector<8x16x1xf32> -> vector<8x16x1xf32>
    %124 = vector.broadcast %123 : vector<8x16x1xf32> to vector<8x16x16xf32>
    %125 = arith.mulf %120, %124 : vector<8x16x16xf32>
    "tpu.trace_start"() <{level = 10 : i32, message = "bqk,bkd->bqd"}> : () -> ()
    %cst_41 = arith.constant dense<0.000000e+00> : vector<8x16x32xf32>
    %126 = tpu.matmul %125, %111, %cst_41 {dimension_numbers = #tpu.dot_dimension_numbers<[2], [1], [1], [2], [0, 0, 0, 1, 1, 2], [0], [0]>} : vector<8x16x16xf32>, vector<8x16x32xf32>, vector<8x16x32xf32> -> vector<8x16x32xf32>
    "tpu.trace_stop"() : () -> ()
    %127 = vector.shape_cast %126 : vector<8x16x32xf32> to vector<128x32xf32>
    %128 = vector.extract_strided_slice %81 {offsets = [32, 0], sizes = [32, 128], strides = [1, 1]} : vector<128x128xf32> to vector<32x128xf32>
    %cst_42 = arith.constant dense<0.000000e+00> : vector<128x128xf32>
    %129 = tpu.matmul %127, %128, %cst_42 {dimension_numbers = #tpu.dot_dimension_numbers<[1], [0], [0], [1], [0, 0, 1, 1], [], []>} : vector<128x32xf32>, vector<32x128xf32>, vector<128x128xf32> -> vector<128x128xf32>
    %130 = arith.addf %105, %129 : vector<128x128xf32>
    %131 = vector.extract_strided_slice %6 {offsets = [0, 64], sizes = [128, 32], strides = [1, 1]} : vector<128x384xf32> to vector<128x32xf32>
    %132 = vector.shape_cast %131 : vector<128x32xf32> to vector<8x16x32xf32>
    %133 = vector.extract_strided_slice %6 {offsets = [0, 192], sizes = [128, 32], strides = [1, 1]} : vector<128x384xf32> to vector<128x32xf32>
    %134 = vector.shape_cast %133 : vector<128x32xf32> to vector<8x16x32xf32>
    %135 = vector.extract_strided_slice %6 {offsets = [0, 320], sizes = [128, 32], strides = [1, 1]} : vector<128x384xf32> to vector<128x32xf32>
    %136 = vector.shape_cast %135 : vector<128x32xf32> to vector<8x16x32xf32>
    "tpu.trace_start"() <{level = 10 : i32, message = "bqd,bkd->bqk"}> : () -> ()
    %cst_43 = arith.constant dense<0.000000e+00> : vector<8x16x16xf32>
    %137 = tpu.matmul %132, %134, %cst_43 {dimension_numbers = #tpu.dot_dimension_numbers<[2], [2], [1], [1], [0, 0, 0, 1, 1, 1], [0], [0]>} : vector<8x16x32xf32>, vector<8x16x32xf32>, vector<8x16x16xf32> -> vector<8x16x16xf32>
    "tpu.trace_stop"() : () -> ()
    %cst_44 = arith.constant 0.176776692 : f32
    %138 = vector.broadcast %cst_44 : f32 to vector<8x16x16xf32>
    %139 = arith.mulf %137, %138 : vector<8x16x16xf32>
    %140 = arith.addf %139, %80 : vector<8x16x16xf32>
    %cst_45 = arith.constant dense<0xFF800000> : vector<8x16xf32>
    %141 = vector.multi_reduction <maximumf>, %140, %cst_45 [2] : vector<8x16x16xf32> to vector<8x16xf32>
    %142 = vector.shape_cast %141 : vector<8x16xf32> to vector<8x16x1xf32>
    %143 = vector.broadcast %142 : vector<8x16x1xf32> to vector<8x16x16xf32>
    %144 = arith.subf %140, %143 : vector<8x16x16xf32>
    %145 = math.exp %144 : vector<8x16x16xf32>
    %cst_46 = arith.constant dense<0.000000e+00> : vector<8x16xf32>
    %146 = vector.multi_reduction <add>, %145, %cst_46 [2] : vector<8x16x16xf32> to vector<8x16xf32>
    %147 = vector.shape_cast %146 : vector<8x16xf32> to vector<8x16x1xf32>
    %148 = tpu.reciprocal %147 {approx = true} : vector<8x16x1xf32> -> vector<8x16x1xf32>
    %149 = vector.broadcast %148 : vector<8x16x1xf32> to vector<8x16x16xf32>
    %150 = arith.mulf %145, %149 : vector<8x16x16xf32>
    "tpu.trace_start"() <{level = 10 : i32, message = "bqk,bkd->bqd"}> : () -> ()
    %cst_47 = arith.constant dense<0.000000e+00> : vector<8x16x32xf32>
    %151 = tpu.matmul %150, %136, %cst_47 {dimension_numbers = #tpu.dot_dimension_numbers<[2], [1], [1], [2], [0, 0, 0, 1, 1, 2], [0], [0]>} : vector<8x16x16xf32>, vector<8x16x32xf32>, vector<8x16x32xf32> -> vector<8x16x32xf32>
    "tpu.trace_stop"() : () -> ()
    %152 = vector.shape_cast %151 : vector<8x16x32xf32> to vector<128x32xf32>
    %153 = vector.extract_strided_slice %81 {offsets = [64, 0], sizes = [32, 128], strides = [1, 1]} : vector<128x128xf32> to vector<32x128xf32>
    %cst_48 = arith.constant dense<0.000000e+00> : vector<128x128xf32>
    %154 = tpu.matmul %152, %153, %cst_48 {dimension_numbers = #tpu.dot_dimension_numbers<[1], [0], [0], [1], [0, 0, 1, 1], [], []>} : vector<128x32xf32>, vector<32x128xf32>, vector<128x128xf32> -> vector<128x128xf32>
    %155 = arith.addf %130, %154 : vector<128x128xf32>
    %156 = vector.extract_strided_slice %6 {offsets = [0, 96], sizes = [128, 32], strides = [1, 1]} : vector<128x384xf32> to vector<128x32xf32>
    %157 = vector.shape_cast %156 : vector<128x32xf32> to vector<8x16x32xf32>
    %158 = vector.extract_strided_slice %6 {offsets = [0, 224], sizes = [128, 32], strides = [1, 1]} : vector<128x384xf32> to vector<128x32xf32>
    %159 = vector.shape_cast %158 : vector<128x32xf32> to vector<8x16x32xf32>
    %160 = vector.extract_strided_slice %6 {offsets = [0, 352], sizes = [128, 32], strides = [1, 1]} : vector<128x384xf32> to vector<128x32xf32>
    %161 = vector.shape_cast %160 : vector<128x32xf32> to vector<8x16x32xf32>
    "tpu.trace_start"() <{level = 10 : i32, message = "bqd,bkd->bqk"}> : () -> ()
    %cst_49 = arith.constant dense<0.000000e+00> : vector<8x16x16xf32>
    %162 = tpu.matmul %157, %159, %cst_49 {dimension_numbers = #tpu.dot_dimension_numbers<[2], [2], [1], [1], [0, 0, 0, 1, 1, 1], [0], [0]>} : vector<8x16x32xf32>, vector<8x16x32xf32>, vector<8x16x16xf32> -> vector<8x16x16xf32>
    "tpu.trace_stop"() : () -> ()
    %cst_50 = arith.constant 0.176776692 : f32
    %163 = vector.broadcast %cst_50 : f32 to vector<8x16x16xf32>
    %164 = arith.mulf %162, %163 : vector<8x16x16xf32>
    %165 = arith.addf %164, %80 : vector<8x16x16xf32>
    %cst_51 = arith.constant dense<0xFF800000> : vector<8x16xf32>
    %166 = vector.multi_reduction <maximumf>, %165, %cst_51 [2] : vector<8x16x16xf32> to vector<8x16xf32>
    %167 = vector.shape_cast %166 : vector<8x16xf32> to vector<8x16x1xf32>
    %168 = vector.broadcast %167 : vector<8x16x1xf32> to vector<8x16x16xf32>
    %169 = arith.subf %165, %168 : vector<8x16x16xf32>
    %170 = math.exp %169 : vector<8x16x16xf32>
    %cst_52 = arith.constant dense<0.000000e+00> : vector<8x16xf32>
    %171 = vector.multi_reduction <add>, %170, %cst_52 [2] : vector<8x16x16xf32> to vector<8x16xf32>
    %172 = vector.shape_cast %171 : vector<8x16xf32> to vector<8x16x1xf32>
    %173 = tpu.reciprocal %172 {approx = true} : vector<8x16x1xf32> -> vector<8x16x1xf32>
    %174 = vector.broadcast %173 : vector<8x16x1xf32> to vector<8x16x16xf32>
    %175 = arith.mulf %170, %174 : vector<8x16x16xf32>
    "tpu.trace_start"() <{level = 10 : i32, message = "bqk,bkd->bqd"}> : () -> ()
    %cst_53 = arith.constant dense<0.000000e+00> : vector<8x16x32xf32>
    %176 = tpu.matmul %175, %161, %cst_53 {dimension_numbers = #tpu.dot_dimension_numbers<[2], [1], [1], [2], [0, 0, 0, 1, 1, 2], [0], [0]>} : vector<8x16x16xf32>, vector<8x16x32xf32>, vector<8x16x32xf32> -> vector<8x16x32xf32>
    "tpu.trace_stop"() : () -> ()
    %177 = vector.shape_cast %176 : vector<8x16x32xf32> to vector<128x32xf32>
    %178 = vector.extract_strided_slice %81 {offsets = [96, 0], sizes = [32, 128], strides = [1, 1]} : vector<128x128xf32> to vector<32x128xf32>
    %cst_54 = arith.constant dense<0.000000e+00> : vector<128x128xf32>
    %179 = tpu.matmul %177, %178, %cst_54 {dimension_numbers = #tpu.dot_dimension_numbers<[1], [0], [0], [1], [0, 0, 1, 1], [], []>} : vector<128x32xf32>, vector<32x128xf32>, vector<128x128xf32> -> vector<128x128xf32>
    %180 = arith.addf %155, %179 : vector<128x128xf32>
    %c0_55 = arith.constant 0 : index
    %c0_56 = arith.constant 0 : index
    %181 = vector.load %arg6[%c0_55, %c0_56] : memref<1x128xf32, #tpu.memory_space<vmem>>, vector<1x128xf32>
    %182 = vector.broadcast %181 : vector<1x128xf32> to vector<128x128xf32>
    %183 = arith.addf %180, %182 : vector<128x128xf32>
    %184 = arith.addf %183, %1 : vector<128x128xf32>
    %c0_57 = arith.constant 0 : index
    %c0_58 = arith.constant 0 : index
    %185 = vector.load %arg7[%c0_57, %c0_58] : memref<1x128xf32, #tpu.memory_space<vmem>>, vector<1x128xf32>
    %c0_59 = arith.constant 0 : index
    %c0_60 = arith.constant 0 : index
    %186 = vector.load %arg8[%c0_59, %c0_60] : memref<1x128xf32, #tpu.memory_space<vmem>>, vector<1x128xf32>
    %cst_61 = arith.constant dense<0.000000e+00> : vector<128xf32>
    %187 = vector.multi_reduction <add>, %184, %cst_61 [1] : vector<128x128xf32> to vector<128xf32>
    %188 = vector.shape_cast %187 : vector<128xf32> to vector<128x1xf32>
    %cst_62 = arith.constant 1.280000e+02 : f32
    %189 = vector.broadcast %cst_62 : f32 to vector<128x1xf32>
    %190 = arith.divf %188, %189 : vector<128x1xf32>
    %191 = vector.broadcast %190 : vector<128x1xf32> to vector<128x128xf32>
    %192 = arith.subf %184, %191 : vector<128x128xf32>
    %193 = arith.mulf %192, %192 : vector<128x128xf32>
    %cst_63 = arith.constant dense<0.000000e+00> : vector<128xf32>
    %194 = vector.multi_reduction <add>, %193, %cst_63 [1] : vector<128x128xf32> to vector<128xf32>
    %195 = vector.shape_cast %194 : vector<128xf32> to vector<128x1xf32>
    %cst_64 = arith.constant 1.280000e+02 : f32
    %196 = vector.broadcast %cst_64 : f32 to vector<128x1xf32>
    %197 = arith.divf %195, %196 : vector<128x1xf32>
    %cst_65 = arith.constant 1.000000e-10 : f32
    %198 = vector.broadcast %cst_65 : f32 to vector<128x1xf32>
    %199 = arith.addf %197, %198 : vector<128x1xf32>
    %200 = math.rsqrt %199 : vector<128x1xf32>
    %201 = vector.broadcast %200 : vector<128x1xf32> to vector<128x128xf32>
    %202 = arith.mulf %192, %201 : vector<128x128xf32>
    %203 = vector.broadcast %185 : vector<1x128xf32> to vector<128x128xf32>
    %204 = arith.mulf %203, %202 : vector<128x128xf32>
    %205 = vector.broadcast %186 : vector<1x128xf32> to vector<128x128xf32>
    %206 = arith.addf %204, %205 : vector<128x128xf32>
    %c0_66 = arith.constant 0 : index
    %c0_67 = arith.constant 0 : index
    %207 = vector.load %arg9[%c0_66, %c0_67] : memref<128x256xf32, #tpu.memory_space<vmem>>, vector<128x256xf32>
    %cst_68 = arith.constant dense<0.000000e+00> : vector<128x256xf32>
    %208 = tpu.matmul %206, %207, %cst_68 {dimension_numbers = #tpu.dot_dimension_numbers<[1], [0], [0], [1], [0, 0, 1, 1], [], []>} : vector<128x128xf32>, vector<128x256xf32>, vector<128x256xf32> -> vector<128x256xf32>
    %c0_69 = arith.constant 0 : index
    %c0_70 = arith.constant 0 : index
    %209 = vector.load %arg10[%c0_69, %c0_70] : memref<1x256xf32, #tpu.memory_space<vmem>>, vector<1x256xf32>
    %210 = vector.broadcast %209 : vector<1x256xf32> to vector<128x256xf32>
    %211 = arith.addf %208, %210 : vector<128x256xf32>
    %cst_71 = arith.constant 0.000000e+00 : f32
    %212 = vector.broadcast %cst_71 : f32 to vector<128x256xf32>
    %213 = arith.maximumf %211, %212 : vector<128x256xf32>
    %c0_72 = arith.constant 0 : index
    %c0_73 = arith.constant 0 : index
    %214 = vector.load %arg11[%c0_72, %c0_73] : memref<256x128xf32, #tpu.memory_space<vmem>>, vector<256x128xf32>
    %cst_74 = arith.constant dense<0.000000e+00> : vector<128x128xf32>
    %215 = tpu.matmul %213, %214, %cst_74 {dimension_numbers = #tpu.dot_dimension_numbers<[1], [0], [0], [1], [0, 0, 1, 1], [], []>} : vector<128x256xf32>, vector<256x128xf32>, vector<128x128xf32> -> vector<128x128xf32>
    %c0_75 = arith.constant 0 : index
    %c0_76 = arith.constant 0 : index
    %216 = vector.load %arg12[%c0_75, %c0_76] : memref<1x128xf32, #tpu.memory_space<vmem>>, vector<1x128xf32>
    %217 = vector.broadcast %216 : vector<1x128xf32> to vector<128x128xf32>
    %218 = arith.addf %215, %217 : vector<128x128xf32>
    %219 = arith.addf %218, %206 : vector<128x128xf32>
    %c0_77 = arith.constant 0 : index
    %c0_78 = arith.constant 0 : index
    %220 = vector.load %arg13[%c0_77, %c0_78] : memref<1x128xf32, #tpu.memory_space<vmem>>, vector<1x128xf32>
    %c0_79 = arith.constant 0 : index
    %c0_80 = arith.constant 0 : index
    %221 = vector.load %arg14[%c0_79, %c0_80] : memref<1x128xf32, #tpu.memory_space<vmem>>, vector<1x128xf32>
    %cst_81 = arith.constant dense<0.000000e+00> : vector<128xf32>
    %222 = vector.multi_reduction <add>, %219, %cst_81 [1] : vector<128x128xf32> to vector<128xf32>
    %223 = vector.shape_cast %222 : vector<128xf32> to vector<128x1xf32>
    %cst_82 = arith.constant 1.280000e+02 : f32
    %224 = vector.broadcast %cst_82 : f32 to vector<128x1xf32>
    %225 = arith.divf %223, %224 : vector<128x1xf32>
    %226 = vector.broadcast %225 : vector<128x1xf32> to vector<128x128xf32>
    %227 = arith.subf %219, %226 : vector<128x128xf32>
    %228 = arith.mulf %227, %227 : vector<128x128xf32>
    %cst_83 = arith.constant dense<0.000000e+00> : vector<128xf32>
    %229 = vector.multi_reduction <add>, %228, %cst_83 [1] : vector<128x128xf32> to vector<128xf32>
    %230 = vector.shape_cast %229 : vector<128xf32> to vector<128x1xf32>
    %cst_84 = arith.constant 1.280000e+02 : f32
    %231 = vector.broadcast %cst_84 : f32 to vector<128x1xf32>
    %232 = arith.divf %230, %231 : vector<128x1xf32>
    %cst_85 = arith.constant 1.000000e-10 : f32
    %233 = vector.broadcast %cst_85 : f32 to vector<128x1xf32>
    %234 = arith.addf %232, %233 : vector<128x1xf32>
    %235 = math.rsqrt %234 : vector<128x1xf32>
    %236 = vector.broadcast %235 : vector<128x1xf32> to vector<128x128xf32>
    %237 = arith.mulf %227, %236 : vector<128x128xf32>
    %238 = vector.broadcast %220 : vector<1x128xf32> to vector<128x128xf32>
    %239 = arith.mulf %238, %237 : vector<128x128xf32>
    %240 = vector.broadcast %221 : vector<1x128xf32> to vector<128x128xf32>
    %241 = arith.addf %239, %240 : vector<128x128xf32>
    %242 = vector.shape_cast %241 : vector<128x128xf32> to vector<8x16x128xf32>
    %c0_86 = arith.constant 0 : index
    %c0_87 = arith.constant 0 : index
    %c0_88 = arith.constant 0 : index
    %243 = vector.load %arg15[%c0_86, %c0_87, %c0_88] : memref<8x16x128xf32, #tpu.memory_space<vmem>>, vector<8x16x128xf32>
    tpu.vector_store %arg15[%c0_86, %c0_87, %c0_88], %242 {strides = array<i32>} : memref<8x16x128xf32, #tpu.memory_space<vmem>>, vector<8x16x128xf32>,
    return
  }
  func.func @transform_0(%arg0: i32, %arg1: memref<16xi32, #tpu.memory_space<smem>>) -> (i32, i32, i32) {
    %c0_i32 = arith.constant 0 : i32
    %c0_i32_0 = arith.constant 0 : i32
    %c0_i32_1 = arith.constant 0 : i32
    return %arg0, %c0_i32, %c0_i32_0 : i32, i32, i32
  }
  func.func @transform_1(%arg0: i32, %arg1: memref<16xi32, #tpu.memory_space<smem>>) -> (i32, i32) {
    %c0_i32 = arith.constant 0 : i32
    %c0_i32_0 = arith.constant 0 : i32
    %c0_i32_1 = arith.constant 0 : i32
    return %c0_i32, %c0_i32_0 : i32, i32
  }
  func.func @transform_2(%arg0: i32, %arg1: memref<16xi32, #tpu.memory_space<smem>>) -> (i32, i32) {
    %c0_i32 = arith.constant 0 : i32
    %c0_i32_0 = arith.constant 0 : i32
    %c0_i32_1 = arith.constant 0 : i32
    return %c0_i32, %c0_i32_0 : i32, i32
  }
  func.func @transform_3(%arg0: i32, %arg1: memref<16xi32, #tpu.memory_space<smem>>) -> (i32, i32) {
    %c0_i32 = arith.constant 0 : i32
    %c0_i32_0 = arith.constant 0 : i32
    %c0_i32_1 = arith.constant 0 : i32
    return %c0_i32, %c0_i32_0 : i32, i32
  }
  func.func @transform_4(%arg0: i32, %arg1: memref<16xi32, #tpu.memory_space<smem>>) -> (i32, i32) {
    %c0_i32 = arith.constant 0 : i32
    %c0_i32_0 = arith.constant 0 : i32
    %c0_i32_1 = arith.constant 0 : i32
    return %c0_i32, %c0_i32_0 : i32, i32
  }
  func.func @transform_5(%arg0: i32, %arg1: memref<16xi32, #tpu.memory_space<smem>>) -> (i32, i32) {
    %c0_i32 = arith.constant 0 : i32
    %c0_i32_0 = arith.constant 0 : i32
    %c0_i32_1 = arith.constant 0 : i32
    return %c0_i32, %c0_i32_0 : i32, i32
  }
  func.func @transform_6(%arg0: i32, %arg1: memref<16xi32, #tpu.memory_space<smem>>) -> (i32, i32) {
    %c0_i32 = arith.constant 0 : i32
    %c0_i32_0 = arith.constant 0 : i32
    %c0_i32_1 = arith.constant 0 : i32
    return %c0_i32, %c0_i32_0 : i32, i32
  }
  func.func @transform_7(%arg0: i32, %arg1: memref<16xi32, #tpu.memory_space<smem>>) -> (i32, i32) {
    %c0_i32 = arith.constant 0 : i32
    %c0_i32_0 = arith.constant 0 : i32
    %c0_i32_1 = arith.constant 0 : i32
    return %c0_i32, %c0_i32_0 : i32, i32
  }
  func.func @transform_8(%arg0: i32, %arg1: memref<16xi32, #tpu.memory_space<smem>>) -> (i32, i32) {
    %c0_i32 = arith.constant 0 : i32
    %c0_i32_0 = arith.constant 0 : i32
    %c0_i32_1 = arith.constant 0 : i32
    return %c0_i32, %c0_i32_0 : i32, i32
  }
  func.func @transform_9(%arg0: i32, %arg1: memref<16xi32, #tpu.memory_space<smem>>) -> (i32, i32) {
    %c0_i32 = arith.constant 0 : i32
    %c0_i32_0 = arith.constant 0 : i32
    %c0_i32_1 = arith.constant 0 : i32
    return %c0_i32, %c0_i32_0 : i32, i32
  }
  func.func @transform_10(%arg0: i32, %arg1: memref<16xi32, #tpu.memory_space<smem>>) -> (i32, i32) {
    %c0_i32 = arith.constant 0 : i32
    %c0_i32_0 = arith.constant 0 : i32
    %c0_i32_1 = arith.constant 0 : i32
    return %c0_i32, %c0_i32_0 : i32, i32
  }
  func.func @transform_11(%arg0: i32, %arg1: memref<16xi32, #tpu.memory_space<smem>>) -> (i32, i32) {
    %c0_i32 = arith.constant 0 : i32
    %c0_i32_0 = arith.constant 0 : i32
    %c0_i32_1 = arith.constant 0 : i32
    return %c0_i32, %c0_i32_0 : i32, i32
  }
  func.func @transform_12(%arg0: i32, %arg1: memref<16xi32, #tpu.memory_space<smem>>) -> (i32, i32) {
    %c0_i32 = arith.constant 0 : i32
    %c0_i32_0 = arith.constant 0 : i32
    %c0_i32_1 = arith.constant 0 : i32
    return %c0_i32, %c0_i32_0 : i32, i32
  }
  func.func @transform_13(%arg0: i32, %arg1: memref<16xi32, #tpu.memory_space<smem>>) -> (i32, i32, i32) {
    %c0_i32 = arith.constant 0 : i32
    %c0_i32_0 = arith.constant 0 : i32
    %c0_i32_1 = arith.constant 0 : i32
    return %arg0, %c0_i32, %c0_i32_0 : i32, i32, i32
  }
}

</mosaic_0001>

<llo_original>
// kernel: tpu_custom_call.1
$region0: #{tpu_custom_call.1}
  #allocation0 [shape = 'u32[]', space=smem, size = 0x4, offset = 0x4, fixed_abs, tag = 'smem constant byte address 0x4 - core index']
  #allocation1 [shape = 'u32[72,128]{1,0:T(1,128)}', space=vmem, size = 0x9000, scoped, tag = 'internal scratch']
  #allocation2 [shape = 's32[1]{0}', space=sflag, size = 0x4, scoped, tag = 'scoped memory for tpu_custom_call.1']
  #allocation3 [shape = 'u8[512]{0}', space=smem, size = 0x200, scoped, tag = 'prefetched SMEM operand 0']
  %s0 = inlined_call_operand.hbm [shape: s32[16], index: 0, kind: input, shape index: {}]
  %s1 = inlined_call_operand.hbm [shape: f32[16,16,128], index: 1, kind: input, shape index: {}]
  %s2 = inlined_call_operand.hbm [shape: f32[128,384], index: 2, kind: input, shape index: {}]
  %s3 = inlined_call_operand.hbm [shape: f32[1,384], index: 3, kind: input, shape index: {}]
  %s4 = inlined_call_operand.hbm [shape: f32[128,128], index: 4, kind: input, shape index: {}]
  %s5 = inlined_call_operand.vmem [shape: f32[1,128], index: 5, kind: input, shape index: {}]
  %s6 = inlined_call_operand.vmem [shape: f32[1,128], index: 6, kind: input, shape index: {}]
  %s7 = inlined_call_operand.vmem [shape: f32[1,128], index: 7, kind: input, shape index: {}]
  %s8 = inlined_call_operand.hbm [shape: f32[128,256], index: 8, kind: input, shape index: {}]
  %s9 = inlined_call_operand.vmem [shape: f32[1,256], index: 9, kind: input, shape index: {}]
  %s10 = inlined_call_operand.hbm [shape: f32[256,128], index: 10, kind: input, shape index: {}]
  %s11 = inlined_call_operand.vmem [shape: f32[1,128], index: 11, kind: input, shape index: {}]
  %s12 = inlined_call_operand.vmem [shape: f32[1,128], index: 12, kind: input, shape index: {}]
  %s13 = inlined_call_operand.vmem [shape: f32[1,128], index: 13, kind: input, shape index: {}]
  %s14 = inlined_call_operand.hbm [shape: f32[16,16,128], index: 14, kind: output, shape index: {}]
  %s15 = sld [smem:[#allocation0]]
  $region109: #{tpu_custom_call.1} parent=0
    _
  %s17 = ssub.s32 1, %s15
  %s18 = scalar_select 0, %s17, %s15
  %s20 = sshll.u32 %s0, 4
  %s21 = int_to_ptr.hbm [resolvable:$true] %s20
  %23 = dma.hbm_to_smem %s21, 16, [#allocation3], [#allocation2]
  %25 = dma.done [#allocation2], 16
  %26 = sfence
  $region1: #{tpu_custom_call.1} parent=0
    #allocation4 [shape = 'u8[131072]{0}', space=vmem, size = 0x20000, scoped, tag = 'input window, operand 1']
    #allocation5 [shape = 's32[2]{0}', space=sflag, size = 0x8, scoped, tag = 'scoped memory for tpu_custom_call.1']
    #allocation6 [shape = 's32[2]{0}', space=sflag, size = 0x8, scoped, tag = 'scoped memory for tpu_custom_call.1']
    #allocation7 [shape = 'u8[196608]{0}', space=vmem, size = 0x30000, scoped, tag = 'input window, operand 2, single buffered']
    #allocation8 [shape = 's32[1]{0}', space=sflag, size = 0x4, scoped, tag = 'scoped memory for tpu_custom_call.1']
    #allocation9 [shape = 'u8[1536]{0}', space=vmem, size = 0x800, scoped, tag = 'input window, operand 3, single buffered']
    #allocation10 [shape = 'u8[65536]{0}', space=vmem, size = 0x10000, scoped, tag = 'input window, operand 4, single buffered']
    #allocation11 [shape = 's32[1]{0}', space=sflag, size = 0x4, scoped, tag = 'scoped memory for tpu_custom_call.1']
    #allocation12 [shape = 'u8[131072]{0}', space=vmem, size = 0x20000, scoped, tag = 'input window, operand 8, single buffered']
    #allocation13 [shape = 'u8[131072]{0}', space=vmem, size = 0x20000, scoped, tag = 'input window, operand 10, single buffered']
    #allocation14 [shape = 's32[1]{0}', space=sflag, size = 0x4, scoped, tag = 'scoped memory for tpu_custom_call.1']
    #allocation15 [shape = 'u8[131072]{0}', space=vmem, size = 0x20000, scoped, tag = 'output window, operand 0']
    %27 = vsyncpa [#allocation5], 0
    %s28 = scalar_lea.sflag [#allocation5], 1
    %29 = vsyncpa %s28, 0
    %30 = vsyncpa [#allocation8], 0
    %31 = vsyncpa [#allocation11], 0
    %32 = vsyncpa [#allocation14], 0
    %33 = vsyncpa [#allocation6], 0
    %s34 = scalar_lea.sflag [#allocation6], 1
    %35 = vsyncpa %s34, 0
    loop: start=0, step=1, limit=4
    $region2: #{tpu_custom_call.1} parent=1 // loop_pre_header
      _
    $region3: #{tpu_custom_call.1} parent=1 // loop_header
      %s37 = sphi 0, %s41
      %p38 = scmp.ge.s32.totalorder %s37, 4
      %s47 = sphi 0, %s49
      %s50 = sphi 0, %s47
      %s51 = sphi 0, %s50
      %s67 = sphi 0, %s51
      %s71 = sphi 0, %s71
      %s73 = sphi 0, %s71
      %s74 = sphi 0, %s73
      %s88 = sphi 0, %s74
      %s92 = sphi 0, %s92
      %s94 = sphi 0, %s92
      %s95 = sphi 0, %s94
      %s109 = sphi 0, %s95
      %s113 = sphi 0, %s113
      %s115 = sphi 0, %s113
      %s116 = sphi 0, %s115
      %s130 = sphi 0, %s116
      %s134 = sphi 0, %s134
      %s136 = sphi 0, %s134
      %s137 = sphi 0, %s136
      %s151 = sphi 0, %s137
      %s155 = sphi 0, %s155
      %s157 = sphi 0, %s155
      %s158 = sphi 0, %s157
      %s172 = sphi 0, %s158
      %s176 = sphi 0, %s176
      %s178 = sphi 0, %s176
      %s179 = sphi 0, %s178
      %s193 = sphi 0, %s179
      %s197 = sphi 0, %s197
      %s199 = sphi 0, %s197
      %s200 = sphi 0, %s199
      %s214 = sphi 0, %s200
      %s218 = sphi 0, %s218
      %s220 = sphi 0, %s218
      %s221 = sphi 0, %s220
      %s235 = sphi 0, %s221
      %s239 = sphi 0, %s239
      %s241 = sphi 0, %s239
      %s242 = sphi 0, %s241
      %s256 = sphi 0, %s242
      %s260 = sphi 0, %s260
      %s262 = sphi 0, %s260
      %s263 = sphi 0, %s262
      %s277 = sphi 0, %s263
      %s281 = sphi 0, %s281
      %s283 = sphi 0, %s281
      %s284 = sphi 0, %s283
      %s298 = sphi 0, %s284
      %s302 = sphi 0, %s302
      %s304 = sphi 0, %s302
      %s305 = sphi 0, %s304
      %s319 = sphi 0, %s305
      %s325 = sphi 0, %s327
      %s328 = sphi 0, %s325
      %s329 = sphi 0, %s328
      %s345 = sphi 0, %s329
    $region4: #{tpu_custom_call.1} parent=1 // loop_header_branch
      %40 = sbr.rel (%p38) target = $region8
    $region5: #{tpu_custom_call.1} parent=1 // loop_body
      %s42 = ssub.s32 %s37, 1
      %s43 = ssub.s32 %s37, 2
      %s44 = sadd.s32 %s37, 1
      %s45 = ssub.s32 %s37, %s44
      %p46 = scmp.eq.s32.totalorder %s45, 0
      %s48 = sadd.s32 %s47, 1
      %s49 = scalar_select %p46, %s47, %s48
      %p52 = pneg %p46
      %p53 = scmp.eq.s32.totalorder %s37, 1
      %p54 = por %p52, %p53
      %p55 = scmp.ne.s32.totalorder %s47, %s50
      %p56 = scmp.eq.s32.totalorder %s37, 0
      %p57 = por %p55, %p56
      %p58 = scmp.ne.s32.totalorder %s47, %s50
      %p59 = scmp.eq.s32.totalorder %s42, 1
      %p60 = por %p58, %p59
      %p61 = scmp.ne.s32.totalorder %s50, %s51
      %p62 = scmp.eq.s32.totalorder %s42, 0
      %p63 = por %p61, %p62
      %p64 = scmp.ne.s32.totalorder %s50, %s51
      %p65 = scmp.eq.s32.totalorder %s43, 1
      %p66 = por %p64, %p65
      %p68 = scmp.ne.s32.totalorder %s51, %s67
      %p69 = scmp.eq.s32.totalorder %s43, 0
      %p70 = por %p68, %p69
      %s72 = sadd.s32 %s71, 1
      %p75 = scmp.eq.s32.totalorder %s37, 1
      %p76 = scmp.ne.s32.totalorder %s71, %s73
      %p77 = scmp.eq.s32.totalorder %s37, 0
      %p78 = por %p76, %p77
      %p79 = scmp.ne.s32.totalorder %s71, %s73
      %p80 = scmp.eq.s32.totalorder %s42, 1
      %p81 = por %p79, %p80
      %p82 = scmp.ne.s32.totalorder %s73, %s74
      %p83 = scmp.eq.s32.totalorder %s42, 0
      %p84 = por %p82, %p83
      %p85 = scmp.ne.s32.totalorder %s73, %s74
      %p86 = scmp.eq.s32.totalorder %s43, 1
      %p87 = por %p85, %p86
      %p89 = scmp.ne.s32.totalorder %s74, %s88
      %p90 = scmp.eq.s32.totalorder %s43, 0
      %p91 = por %p89, %p90
      %s93 = sadd.s32 %s92, 1
      %p96 = scmp.eq.s32.totalorder %s37, 1
      %p97 = scmp.ne.s32.totalorder %s92, %s94
      %p98 = scmp.eq.s32.totalorder %s37, 0
      %p99 = por %p97, %p98
      %p100 = scmp.ne.s32.totalorder %s92, %s94
      %p101 = scmp.eq.s32.totalorder %s42, 1
      %p102 = por %p100, %p101
      %p103 = scmp.ne.s32.totalorder %s94, %s95
      %p104 = scmp.eq.s32.totalorder %s42, 0
      %p105 = por %p103, %p104
      %p106 = scmp.ne.s32.totalorder %s94, %s95
      %p107 = scmp.eq.s32.totalorder %s43, 1
      %p108 = por %p106, %p107
      %p110 = scmp.ne.s32.totalorder %s95, %s109
      %p111 = scmp.eq.s32.totalorder %s43, 0
      %p112 = por %p110, %p111
      %s114 = sadd.s32 %s113, 1
      %p117 = scmp.eq.s32.totalorder %s37, 1
      %p118 = scmp.ne.s32.totalorder %s113, %s115
      %p119 = scmp.eq.s32.totalorder %s37, 0
      %p120 = por %p118, %p119
      %p121 = scmp.ne.s32.totalorder %s113, %s115
      %p122 = scmp.eq.s32.totalorder %s42, 1
      %p123 = por %p121, %p122
      %p124 = scmp.ne.s32.totalorder %s115, %s116
      %p125 = scmp.eq.s32.totalorder %s42, 0
      %p126 = por %p124, %p125
      %p127 = scmp.ne.s32.totalorder %s115, %s116
      %p128 = scmp.eq.s32.totalorder %s43, 1
      %p129 = por %p127, %p128
      %p131 = scmp.ne.s32.totalorder %s116, %s130
      %p132 = scmp.eq.s32.totalorder %s43, 0
      %p133 = por %p131, %p132
      %s135 = sadd.s32 %s134, 1
      %p138 = scmp.eq.s32.totalorder %s37, 1
      %p139 = scmp.ne.s32.totalorder %s134, %s136
      %p140 = scmp.eq.s32.totalorder %s37, 0
      %p141 = por %p139, %p140
      %p142 = scmp.ne.s32.totalorder %s134, %s136
      %p143 = scmp.eq.s32.totalorder %s42, 1
      %p144 = por %p142, %p143
      %p145 = scmp.ne.s32.totalorder %s136, %s137
      %p146 = scmp.eq.s32.totalorder %s42, 0
      %p147 = por %p145, %p146
      %p148 = scmp.ne.s32.totalorder %s136, %s137
      %p149 = scmp.eq.s32.totalorder %s43, 1
      %p150 = por %p148, %p149
      %p152 = scmp.ne.s32.totalorder %s137, %s151
      %p153 = scmp.eq.s32.totalorder %s43, 0
      %p154 = por %p152, %p153
      %s156 = sadd.s32 %s155, 1
      %p159 = scmp.eq.s32.totalorder %s37, 1
      %p160 = scmp.ne.s32.totalorder %s155, %s157
      %p161 = scmp.eq.s32.totalorder %s37, 0
      %p162 = por %p160, %p161
      %p163 = scmp.ne.s32.totalorder %s155, %s157
      %p164 = scmp.eq.s32.totalorder %s42, 1
      %p165 = por %p163, %p164
      %p166 = scmp.ne.s32.totalorder %s157, %s158
      %p167 = scmp.eq.s32.totalorder %s42, 0
      %p168 = por %p166, %p167
      %p169 = scmp.ne.s32.totalorder %s157, %s158
      %p170 = scmp.eq.s32.totalorder %s43, 1
      %p171 = por %p169, %p170
      %p173 = scmp.ne.s32.totalorder %s158, %s172
      %p174 = scmp.eq.s32.totalorder %s43, 0
      %p175 = por %p173, %p174
      %s177 = sadd.s32 %s176, 1
      %p180 = scmp.eq.s32.totalorder %s37, 1
      %p181 = scmp.ne.s32.totalorder %s176, %s178
      %p182 = scmp.eq.s32.totalorder %s37, 0
      %p183 = por %p181, %p182
      %p184 = scmp.ne.s32.totalorder %s176, %s178
      %p185 = scmp.eq.s32.totalorder %s42, 1
      %p186 = por %p184, %p185
      %p187 = scmp.ne.s32.totalorder %s178, %s179
      %p188 = scmp.eq.s32.totalorder %s42, 0
      %p189 = por %p187, %p188
      %p190 = scmp.ne.s32.totalorder %s178, %s179
      %p191 = scmp.eq.s32.totalorder %s43, 1
      %p192 = por %p190, %p191
      %p194 = scmp.ne.s32.totalorder %s179, %s193
      %p195 = scmp.eq.s32.totalorder %s43, 0
      %p196 = por %p194, %p195
      %s198 = sadd.s32 %s197, 1
      %p201 = scmp.eq.s32.totalorder %s37, 1
      %p202 = scmp.ne.s32.totalorder %s197, %s199
      %p203 = scmp.eq.s32.totalorder %s37, 0
      %p204 = por %p202, %p203
      %p205 = scmp.ne.s32.totalorder %s197, %s199
      %p206 = scmp.eq.s32.totalorder %s42, 1
      %p207 = por %p205, %p206
      %p208 = scmp.ne.s32.totalorder %s199, %s200
      %p209 = scmp.eq.s32.totalorder %s42, 0
      %p210 = por %p208, %p209
      %p211 = scmp.ne.s32.totalorder %s199, %s200
      %p212 = scmp.eq.s32.totalorder %s43, 1
      %p213 = por %p211, %p212
      %p215 = scmp.ne.s32.totalorder %s200, %s214
      %p216 = scmp.eq.s32.totalorder %s43, 0
      %p217 = por %p215, %p216
      %s219 = sadd.s32 %s218, 1
      %p222 = scmp.eq.s32.totalorder %s37, 1
      %p223 = scmp.ne.s32.totalorder %s218, %s220
      %p224 = scmp.eq.s32.totalorder %s37, 0
      %p225 = por %p223, %p224
      %p226 = scmp.ne.s32.totalorder %s218, %s220
      %p227 = scmp.eq.s32.totalorder %s42, 1
      %p228 = por %p226, %p227
      %p229 = scmp.ne.s32.totalorder %s220, %s221
      %p230 = scmp.eq.s32.totalorder %s42, 0
      %p231 = por %p229, %p230
      %p232 = scmp.ne.s32.totalorder %s220, %s221
      %p233 = scmp.eq.s32.totalorder %s43, 1
      %p234 = por %p232, %p233
      %p236 = scmp.ne.s32.totalorder %s221, %s235
      %p237 = scmp.eq.s32.totalorder %s43, 0
      %p238 = por %p236, %p237
      %s240 = sadd.s32 %s239, 1
      %p243 = scmp.eq.s32.totalorder %s37, 1
      %p244 = scmp.ne.s32.totalorder %s239, %s241
      %p245 = scmp.eq.s32.totalorder %s37, 0
      %p246 = por %p244, %p245
      %p247 = scmp.ne.s32.totalorder %s239, %s241
      %p248 = scmp.eq.s32.totalorder %s42, 1
      %p249 = por %p247, %p248
      %p250 = scmp.ne.s32.totalorder %s241, %s242
      %p251 = scmp.eq.s32.totalorder %s42, 0
      %p252 = por %p250, %p251
      %p253 = scmp.ne.s32.totalorder %s241, %s242
      %p254 = scmp.eq.s32.totalorder %s43, 1
      %p255 = por %p253, %p254
      %p257 = scmp.ne.s32.totalorder %s242, %s256
      %p258 = scmp.eq.s32.totalorder %s43, 0
      %p259 = por %p257, %p258
      %s261 = sadd.s32 %s260, 1
      %p264 = scmp.eq.s32.totalorder %s37, 1
      %p265 = scmp.ne.s32.totalorder %s260, %s262
      %p266 = scmp.eq.s32.totalorder %s37, 0
      %p267 = por %p265, %p266
      %p268 = scmp.ne.s32.totalorder %s260, %s262
      %p269 = scmp.eq.s32.totalorder %s42, 1
      %p270 = por %p268, %p269
      %p271 = scmp.ne.s32.totalorder %s262, %s263
      %p272 = scmp.eq.s32.totalorder %s42, 0
      %p273 = por %p271, %p272
      %p274 = scmp.ne.s32.totalorder %s262, %s263
      %p275 = scmp.eq.s32.totalorder %s43, 1
      %p276 = por %p274, %p275
      %p278 = scmp.ne.s32.totalorder %s263, %s277
      %p279 = scmp.eq.s32.totalorder %s43, 0
      %p280 = por %p278, %p279
      %s282 = sadd.s32 %s281, 1
      %p285 = scmp.eq.s32.totalorder %s37, 1
      %p286 = scmp.ne.s32.totalorder %s281, %s283
      %p287 = scmp.eq.s32.totalorder %s37, 0
      %p288 = por %p286, %p287
      %p289 = scmp.ne.s32.totalorder %s281, %s283
      %p290 = scmp.eq.s32.totalorder %s42, 1
      %p291 = por %p289, %p290
      %p292 = scmp.ne.s32.totalorder %s283, %s284
      %p293 = scmp.eq.s32.totalorder %s42, 0
      %p294 = por %p292, %p293
      %p295 = scmp.ne.s32.totalorder %s283, %s284
      %p296 = scmp.eq.s32.totalorder %s43, 1
      %p297 = por %p295, %p296
      %p299 = scmp.ne.s32.totalorder %s284, %s298
      %p300 = scmp.eq.s32.totalorder %s43, 0
      %p301 = por %p299, %p300
      %s303 = sadd.s32 %s302, 1
      %p306 = scmp.eq.s32.totalorder %s37, 1
      %p307 = scmp.ne.s32.totalorder %s302, %s304
      %p308 = scmp.eq.s32.totalorder %s37, 0
      %p309 = por %p307, %p308
      %p310 = scmp.ne.s32.totalorder %s302, %s304
      %p311 = scmp.eq.s32.totalorder %s42, 1
      %p312 = por %p310, %p311
      %p313 = scmp.ne.s32.totalorder %s304, %s305
      %p314 = scmp.eq.s32.totalorder %s42, 0
      %p315 = por %p313, %p314
      %p316 = scmp.ne.s32.totalorder %s304, %s305
      %p317 = scmp.eq.s32.totalorder %s43, 1
      %p318 = por %p316, %p317
      %p320 = scmp.ne.s32.totalorder %s305, %s319
      %p321 = scmp.eq.s32.totalorder %s43, 0
      %p322 = por %p320, %p321
      %s323 = ssub.s32 %s37, %s44
      %p324 = scmp.eq.s32.totalorder %s323, 0
      %s326 = sadd.s32 %s325, 1
      %s327 = scalar_select %p324, %s325, %s326
      %p330 = pneg %p324
      %p331 = scmp.eq.s32.totalorder %s37, 1
      %p332 = por %p330, %p331
      %p333 = scmp.ne.s32.totalorder %s325, %s328
      %p334 = scmp.eq.s32.totalorder %s37, 0
      %p335 = por %p333, %p334
      %p336 = scmp.ne.s32.totalorder %s325, %s328
      %p337 = scmp.eq.s32.totalorder %s42, 1
      %p338 = por %p336, %p337
      %p339 = scmp.ne.s32.totalorder %s328, %s329
      %p340 = scmp.eq.s32.totalorder %s42, 0
      %p341 = por %p339, %p340
      %p342 = scmp.ne.s32.totalorder %s328, %s329
      %p343 = scmp.eq.s32.totalorder %s43, 1
      %p344 = por %p342, %p343
      %p346 = scmp.ne.s32.totalorder %s329, %s345
      %p347 = scmp.eq.s32.totalorder %s43, 0
      %p348 = por %p346, %p347
      %p349 = scmp.le.s32.totalorder 1, %s37
      %p350 = scmp.lt.s32.totalorder %s37, 3
      %p351 = pnand %p349, %p350
      %p352 = pneg %p351
      // Predicated region
      $region9: #{tpu_custom_call.1} parent=5 // pred_check
        _
      $region10: #{tpu_custom_call.1} parent=5 // pred_check_branch
        %354 = sbr.rel (%p351) target = $region12
      $region11: #{tpu_custom_call.1} parent=5 // pred_region
        %s355 = ssub.s32 %s37, 1
        // Predicated region
        $region13: #{tpu_custom_call.1} parent=11 // pred_check
          %p356 = pneg %p84
        $region14: #{tpu_custom_call.1} parent=11 // pred_check_branch
          %358 = sbr.rel (%p356) target = $region16
        $region15: #{tpu_custom_call.1} parent=11 // pred_region
          %360 = vsyncadd [#allocation8], 0
          %s361 = sshll.u32 %s2, 4
          %s362 = int_to_ptr.hbm [resolvable:$true] %s361
          %s363 = sshll.u32 [#allocation7], 4
          %s364 = int_to_ptr.vmem [resolvable:$true] %s363
          %369 = dma.hbm_to_vmem [thread:$0]  %s362, 6144, %s364, [#allocation8], 384, 384, 24
        $region16: #{tpu_custom_call.1} parent=11 // pred_fallthru
          _
        // Predicated region
        $region17: #{tpu_custom_call.1} parent=11 // pred_check
          %p370 = pneg %p105
        $region18: #{tpu_custom_call.1} parent=11 // pred_check_branch
          %372 = sbr.rel (%p370) target = $region20
        $region19: #{tpu_custom_call.1} parent=11 // pred_region
          %374 = vsyncadd [#allocation8], 0
          %s376 = sshll.u32 %s3, 4
          %s377 = int_to_ptr.hbm [resolvable:$true] %s376
          %s378 = sshll.u32 [#allocation9], 4
          %s379 = int_to_ptr.vmem [resolvable:$true] %s378
          %381 = dma.hbm_to_vmem [thread:$0]  %s377, 48, %s379, [#allocation8]
        $region20: #{tpu_custom_call.1} parent=11 // pred_fallthru
          _
        // Predicated region
        $region21: #{tpu_custom_call.1} parent=11 // pred_check
          %p382 = pneg %p126
        $region22: #{tpu_custom_call.1} parent=11 // pred_check_branch
          %384 = sbr.rel (%p382) target = $region24
        $region23: #{tpu_custom_call.1} parent=11 // pred_region
          %386 = vsyncadd [#allocation11], 0
          %s387 = sshll.u32 %s4, 4
          %s388 = int_to_ptr.hbm [resolvable:$true] %s387
          %s389 = sshll.u32 [#allocation10], 4
          %s390 = int_to_ptr.vmem [resolvable:$true] %s389
          %395 = dma.hbm_to_vmem [thread:$0]  %s388, 2048, %s390, [#allocation11], 128, 128, 8
        $region24: #{tpu_custom_call.1} parent=11 // pred_fallthru
          _
        // Predicated region
        $region25: #{tpu_custom_call.1} parent=11 // pred_check
          %p396 = pneg %p147
        $region26: #{tpu_custom_call.1} parent=11 // pred_check_branch
          %398 = sbr.rel (%p396) target = $region28
        $region27: #{tpu_custom_call.1} parent=11 // pred_region
          _
        $region28: #{tpu_custom_call.1} parent=11 // pred_fallthru
          _
        // Predicated region
        $region29: #{tpu_custom_call.1} parent=11 // pred_check
          %p399 = pneg %p168
        $region30: #{tpu_custom_call.1} parent=11 // pred_check_branch
          %401 = sbr.rel (%p399) target = $region32
        $region31: #{tpu_custom_call.1} parent=11 // pred_region
          _
        $region32: #{tpu_custom_call.1} parent=11 // pred_fallthru
          _
        // Predicated region
        $region33: #{tpu_custom_call.1} parent=11 // pred_check
          %p402 = pneg %p189
        $region34: #{tpu_custom_call.1} parent=11 // pred_check_branch
          %404 = sbr.rel (%p402) target = $region36
        $region35: #{tpu_custom_call.1} parent=11 // pred_region
          _
        $region36: #{tpu_custom_call.1} parent=11 // pred_fallthru
          _
        // Predicated region
        $region37: #{tpu_custom_call.1} parent=11 // pred_check
          %p405 = pneg %p210
        $region38: #{tpu_custom_call.1} parent=11 // pred_check_branch
          %407 = sbr.rel (%p405) target = $region40
        $region39: #{tpu_custom_call.1} parent=11 // pred_region
          %409 = vsyncadd [#allocation11], 0
          %s410 = sshll.u32 %s8, 4
          %s411 = int_to_ptr.hbm [resolvable:$true] %s410
          %s412 = sshll.u32 [#allocation12], 4
          %s413 = int_to_ptr.vmem [resolvable:$true] %s412
          %418 = dma.hbm_to_vmem [thread:$0]  %s411, 4096, %s413, [#allocation11], 256, 256, 16
        $region40: #{tpu_custom_call.1} parent=11 // pred_fallthru
          _
        // Predicated region
        $region41: #{tpu_custom_call.1} parent=11 // pred_check
          %p419 = pneg %p231
        $region42: #{tpu_custom_call.1} parent=11 // pred_check_branch
          %421 = sbr.rel (%p419) target = $region44
        $region43: #{tpu_custom_call.1} parent=11 // pred_region
          _
        $region44: #{tpu_custom_call.1} parent=11 // pred_fallthru
          _
        // Predicated region
        $region45: #{tpu_custom_call.1} parent=11 // pred_check
          %p422 = pneg %p252
        $region46: #{tpu_custom_call.1} parent=11 // pred_check_branch
          %424 = sbr.rel (%p422) target = $region48
        $region47: #{tpu_custom_call.1} parent=11 // pred_region
          %426 = vsyncadd [#allocation14], 0
          %s427 = sshll.u32 %s10, 4
          %s428 = int_to_ptr.hbm [resolvable:$true] %s427
          %s429 = sshll.u32 [#allocation13], 4
          %s430 = int_to_ptr.vmem [resolvable:$true] %s429
          %435 = dma.hbm_to_vmem [thread:$0]  %s428, 4096, %s430, [#allocation14], 128, 128, 8
        $region48: #{tpu_custom_call.1} parent=11 // pred_fallthru
          _
        // Predicated region
        $region49: #{tpu_custom_call.1} parent=11 // pred_check
          %p436 = pneg %p273
        $region50: #{tpu_custom_call.1} parent=11 // pred_check_branch
          %438 = sbr.rel (%p436) target = $region52
        $region51: #{tpu_custom_call.1} parent=11 // pred_region
          _
        $region52: #{tpu_custom_call.1} parent=11 // pred_fallthru
          _
        // Predicated region
        $region53: #{tpu_custom_call.1} parent=11 // pred_check
          %p439 = pneg %p294
        $region54: #{tpu_custom_call.1} parent=11 // pred_check_branch
          %441 = sbr.rel (%p439) target = $region56
        $region55: #{tpu_custom_call.1} parent=11 // pred_region
          _
        $region56: #{tpu_custom_call.1} parent=11 // pred_fallthru
          _
        // Predicated region
        $region57: #{tpu_custom_call.1} parent=11 // pred_check
          %p442 = pneg %p315
        $region58: #{tpu_custom_call.1} parent=11 // pred_check_branch
          %444 = sbr.rel (%p442) target = $region60
        $region59: #{tpu_custom_call.1} parent=11 // pred_region
          _
        $region60: #{tpu_custom_call.1} parent=11 // pred_fallthru
          _
      $region12: #{tpu_custom_call.1} parent=5 // pred_fallthru
        _
      %p445 = scmp.lt.s32.totalorder %s37, 2
      // Predicated region
      $region61: #{tpu_custom_call.1} parent=5 // pred_check
        %p446 = pneg %p445
      $region62: #{tpu_custom_call.1} parent=5 // pred_check_branch
        %448 = sbr.rel (%p446) target = $region64
      $region63: #{tpu_custom_call.1} parent=5 // pred_region
        // Predicated region
        $region65: #{tpu_custom_call.1} parent=63 // pred_check
          %p449 = pneg %p57
        $region66: #{tpu_custom_call.1} parent=63 // pred_check_branch
          %451 = sbr.rel (%p449) target = $region68
        $region67: #{tpu_custom_call.1} parent=63 // pred_region
          %s452 = sand.u32 %s47, 1
          %s453 = scalar_lea.sflag [#allocation5], %s452
          %s454 = sand.u32 %s47, 1
          %s455 = smul.addr %s454, 128
          %s456 = scalar_lea.vmem [#allocation4], %s455
          %s457 = smul.u32 8, %s37
          %459 = vsyncadd %s453, 0
          %s460 = smul.addr %s457, 2
          %s461 = smul.addr %s460, 8
          %s462 = scalar_lea.hbm %s1, %s461
          %s463 = sshll.u32 %s462, 4
          %s464 = int_to_ptr.hbm [resolvable:$true] %s463
          %s465 = sshll.u32 %s456, 4
          %s466 = int_to_ptr.vmem [resolvable:$true] %s465
          %471 = dma.hbm_to_vmem [thread:$0]  %s464, 2048, %s466, %s453, 128, 128, 8
        $region68: #{tpu_custom_call.1} parent=63 // pred_fallthru
          _
      $region64: #{tpu_custom_call.1} parent=5 // pred_fallthru
        _
      %p472 = scmp.le.s32.totalorder 1, %s37
      %p473 = scmp.lt.s32.totalorder %s37, 3
      %p474 = pnand %p472, %p473
      %p475 = pneg %p474
      // Predicated region
      $region69: #{tpu_custom_call.1} parent=5 // pred_check
        _
      $region70: #{tpu_custom_call.1} parent=5 // pred_check_branch
        %477 = sbr.rel (%p474) target = $region72
      $region71: #{tpu_custom_call.1} parent=5 // pred_region
        %s478 = ssub.s32 %s37, 1
        %s479 = sand.u32 %s50, 1
        %s480 = scalar_lea.sflag [#allocation5], %s479
        %s481 = sand.u32 %s50, 1
        %s482 = smul.addr %s481, 128
        %s483 = scalar_lea.vmem [#allocation4], %s482
        // Predicated region
        $region73: #{tpu_custom_call.1} parent=71 // pred_check
          %p484 = pneg %p63
        $region74: #{tpu_custom_call.1} parent=71 // pred_check_branch
          %486 = sbr.rel (%p484) target = $region76
        $region75: #{tpu_custom_call.1} parent=71 // pred_region
          %488 = dma.done %s480, 2048
        $region76: #{tpu_custom_call.1} parent=71 // pred_fallthru
          _
        // Predicated region
        $region77: #{tpu_custom_call.1} parent=71 // pred_check
          %p489 = pneg %p84
        $region78: #{tpu_custom_call.1} parent=71 // pred_check_branch
          %491 = sbr.rel (%p489) target = $region80
        $region79: #{tpu_custom_call.1} parent=71 // pred_region
          %493 = dma.done [#allocation8], 6144
        $region80: #{tpu_custom_call.1} parent=71 // pred_fallthru
          _
        // Predicated region
        $region81: #{tpu_custom_call.1} parent=71 // pred_check
          %p494 = pneg %p105
        $region82: #{tpu_custom_call.1} parent=71 // pred_check_branch
          %496 = sbr.rel (%p494) target = $region84
        $region83: #{tpu_custom_call.1} parent=71 // pred_region
          %498 = dma.done [#allocation8], 48
        $region84: #{tpu_custom_call.1} parent=71 // pred_fallthru
          _
        // Predicated region
        $region85: #{tpu_custom_call.1} parent=71 // pred_check
          %p499 = pneg %p126
        $region86: #{tpu_custom_call.1} parent=71 // pred_check_branch
          %501 = sbr.rel (%p499) target = $region88
        $region87: #{tpu_custom_call.1} parent=71 // pred_region
          %503 = dma.done [#allocation11], 2048
        $region88: #{tpu_custom_call.1} parent=71 // pred_fallthru
          _
        // Predicated region
        $region89: #{tpu_custom_call.1} parent=71 // pred_check
          %p504 = pneg %p210
        $region90: #{tpu_custom_call.1} parent=71 // pred_check_branch
          %506 = sbr.rel (%p504) target = $region92
        $region91: #{tpu_custom_call.1} parent=71 // pred_region
          %508 = dma.done [#allocation11], 4096
        $region92: #{tpu_custom_call.1} parent=71 // pred_fallthru
          _
        // Predicated region
        $region93: #{tpu_custom_call.1} parent=71 // pred_check
          %p509 = pneg %p252
        $region94: #{tpu_custom_call.1} parent=71 // pred_check_branch
          %511 = sbr.rel (%p509) target = $region96
        $region95: #{tpu_custom_call.1} parent=71 // pred_region
          %513 = dma.done [#allocation14], 4096
        $region96: #{tpu_custom_call.1} parent=71 // pred_fallthru
          _
        %s514 = sand.u32 %s50, 1
        %s515 = scalar_lea.sflag [#allocation5], %s514
        %s516 = sand.u32 %s50, 1
        %s517 = smul.addr %s516, 128
        %s518 = scalar_lea.vmem [#allocation4], %s517
        %p519 = pneg %p63
        %p520 = pneg %p60
        %p521 = pneg %p84
        %p522 = pneg %p81
        %p523 = pneg %p105
        %p524 = pneg %p102
        %p525 = pneg %p126
        %p526 = pneg %p123
        %p527 = pneg %p147
        %p528 = pneg %p144
        %p529 = pneg %p168
        %p530 = pneg %p165
        %p531 = pneg %p189
        %p532 = pneg %p186
        %p533 = pneg %p210
        %p534 = pneg %p207
        %p535 = pneg %p231
        %p536 = pneg %p228
        %p537 = pneg %p252
        %p538 = pneg %p249
        %p539 = pneg %p273
        %p540 = pneg %p270
        %p541 = pneg %p294
        %p542 = pneg %p291
        %p543 = pneg %p315
        %p544 = pneg %p312
        %p545 = pneg %p341
        %p546 = pneg %p338
        %s547 = sand.u32 %s328, 1
        %s548 = scalar_lea.sflag [#allocation6], %s547
        %s549 = sand.u32 %s328, 1
        %s550 = smul.addr %s549, 128
        %s551 = scalar_lea.vmem [#allocation15], %s550
        %s552 = smul.u32 8, %s42
        %s553 = smul.u32 8, %s42
        %v554 = vld [vmem:[%s483] sm:$0xff]
        %v555 = vld [vmem:[%s483 + $0x8] sm:$0xff]
        %v556 = vld [vmem:[%s483 + $0x10] sm:$0xff]
        %v557 = vld [vmem:[%s483 + $0x18] sm:$0xff]
        %v558 = vld [vmem:[%s483 + $0x20] sm:$0xff]
        %v559 = vld [vmem:[%s483 + $0x28] sm:$0xff]
        %v560 = vld [vmem:[%s483 + $0x30] sm:$0xff]
        %v561 = vld [vmem:[%s483 + $0x38] sm:$0xff]
        %v562 = vld [vmem:[%s483 + $0x40] sm:$0xff]
        %v563 = vld [vmem:[%s483 + $0x48] sm:$0xff]
        %v564 = vld [vmem:[%s483 + $0x50] sm:$0xff]
        %v565 = vld [vmem:[%s483 + $0x58] sm:$0xff]
        %v566 = vld [vmem:[%s483 + $0x60] sm:$0xff]
        %v567 = vld [vmem:[%s483 + $0x68] sm:$0xff]
        %v568 = vld [vmem:[%s483 + $0x70] sm:$0xff]
        %v569 = vld [vmem:[%s483 + $0x78] sm:$0xff]
        %v570 = vld [vmem:[#allocation7] sm:$0xff]
        %v571 = vld [vmem:[#allocation7 + $0x8] sm:$0xff]
        %v572 = vld [vmem:[#allocation7 + $0x10] sm:$0xff]
        %v573 = vld [vmem:[#allocation7 + $0x18] sm:$0xff]
        %v574 = vld [vmem:[#allocation7 + $0x20] sm:$0xff]
        %v575 = vld [vmem:[#allocation7 + $0x28] sm:$0xff]
        %v576 = vld [vmem:[#allocation7 + $0x30] sm:$0xff]
        %v577 = vld [vmem:[#allocation7 + $0x38] sm:$0xff]
        %v578 = vld [vmem:[#allocation7 + $0x40] sm:$0xff]
        %v579 = vld [vmem:[#allocation7 + $0x48] sm:$0xff]
        %v580 = vld [vmem:[#allocation7 + $0x50] sm:$0xff]
        %v581 = vld [vmem:[#allocation7 + $0x58] sm:$0xff]
        %v582 = vld [vmem:[#allocation7 + $0x60] sm:$0xff]
        %v583 = vld [vmem:[#allocation7 + $0x68] sm:$0xff]
        %v584 = vld [vmem:[#allocation7 + $0x70] sm:$0xff]
        %v585 = vld [vmem:[#allocation7 + $0x78] sm:$0xff]
        %v586 = vld [vmem:[#allocation7 + $0x80] sm:$0xff]
        %v587 = vld [vmem:[#allocation7 + $0x88] sm:$0xff]
        %v588 = vld [vmem:[#allocation7 + $0x90] sm:$0xff]
        %v589 = vld [vmem:[#allocation7 + $0x98] sm:$0xff]
        %v590 = vld [vmem:[#allocation7 + $0xa0] sm:$0xff]
        %v591 = vld [vmem:[#allocation7 + $0xa8] sm:$0xff]
        %v592 = vld [vmem:[#allocation7 + $0xb0] sm:$0xff]
        %v593 = vld [vmem:[#allocation7 + $0xb8] sm:$0xff]
        %v594 = vld [vmem:[#allocation7 + $0xc0] sm:$0xff]
        %v595 = vld [vmem:[#allocation7 + $0xc8] sm:$0xff]
        %v596 = vld [vmem:[#allocation7 + $0xd0] sm:$0xff]
        %v597 = vld [vmem:[#allocation7 + $0xd8] sm:$0xff]
        %v598 = vld [vmem:[#allocation7 + $0xe0] sm:$0xff]
        %v599 = vld [vmem:[#allocation7 + $0xe8] sm:$0xff]
        %v600 = vld [vmem:[#allocation7 + $0xf0] sm:$0xff]
        %v601 = vld [vmem:[#allocation7 + $0xf8] sm:$0xff]
        %v602 = vld [vmem:[#allocation7 + $0x100] sm:$0xff]
        %v603 = vld [vmem:[#allocation7 + $0x108] sm:$0xff]
        %v604 = vld [vmem:[#allocation7 + $0x110] sm:$0xff]
        %v605 = vld [vmem:[#allocation7 + $0x118] sm:$0xff]
        %v606 = vld [vmem:[#allocation7 + $0x120] sm:$0xff]
        %v607 = vld [vmem:[#allocation7 + $0x128] sm:$0xff]
        %v608 = vld [vmem:[#allocation7 + $0x130] sm:$0xff]
        %v609 = vld [vmem:[#allocation7 + $0x138] sm:$0xff]
        %v610 = vld [vmem:[#allocation7 + $0x140] sm:$0xff]
        %v611 = vld [vmem:[#allocation7 + $0x148] sm:$0xff]
        %v612 = vld [vmem:[#allocation7 + $0x150] sm:$0xff]
        %v613 = vld [vmem:[#allocation7 + $0x158] sm:$0xff]
        %v614 = vld [vmem:[#allocation7 + $0x160] sm:$0xff]
        %v615 = vld [vmem:[#allocation7 + $0x168] sm:$0xff]
        %v616 = vld [vmem:[#allocation7 + $0x170] sm:$0xff]
        %v617 = vld [vmem:[#allocation7 + $0x178] sm:$0xff]
        %v618 = vld [vmem:[#allocation9] sm:$0x7]
        %v620 = vperm.slane %v618, 0
        %v621 = vperm.slane %v618, 1
        %v622 = vperm.slane %v618, 2
        %626 = vmatpush.msra.mxu0 %v615
        %627 = vmatpush.msra.mxu0 %v612
        %628 = vmatpush.msra.mxu0 %v609
        %629 = vmatpush.msra.mxu0 %v606
        %630 = vmatpush.msra.mxu0 %v603
        %631 = vmatpush.msra.mxu0 %v600
        %632 = vmatpush.msra.mxu0 %v597
        %633 = vmatpush.msra.mxu0 %v594
        %634 = vmatpush.msra.mxu0 %v591
        %635 = vmatpush.msra.mxu0 %v588
        %636 = vmatpush.msra.mxu0 %v585
        %637 = vmatpush.msra.mxu0 %v582
        %638 = vmatpush.msra.mxu0 %v579
        %639 = vmatpush.msra.mxu0 %v576
        %640 = vmatpush.msra.mxu0 %v573
        %641 = vmatpush.msra.mxu0 %v570
        %642 = vmatmul.f32.gmra.mxu0 %v554
        %v643 = vpop.f32.mrf.mxu0
        %v644 = vadd.f32 %v620, %v643
        %645 = vmatmul.f32.gmra.mxu0 %v555
        %v646 = vpop.f32.mrf.mxu0
        %v647 = vadd.f32 %v620, %v646
        %648 = vmatmul.f32.gmra.mxu0 %v556
        %v649 = vpop.f32.mrf.mxu0
        %v650 = vadd.f32 %v620, %v649
        %651 = vmatmul.f32.gmra.mxu0 %v557
        %v652 = vpop.f32.mrf.mxu0
        %v653 = vadd.f32 %v620, %v652
        %654 = vmatmul.f32.gmra.mxu0 %v558
        %v655 = vpop.f32.mrf.mxu0
        %v656 = vadd.f32 %v620, %v655
        %657 = vmatmul.f32.gmra.mxu0 %v559
        %v658 = vpop.f32.mrf.mxu0
        %v659 = vadd.f32 %v620, %v658
        %660 = vmatmul.f32.gmra.mxu0 %v560
        %v661 = vpop.f32.mrf.mxu0
        %v662 = vadd.f32 %v620, %v661
        %663 = vmatmul.f32.gmra.mxu0 %v561
        %v664 = vpop.f32.mrf.mxu0
        %v665 = vadd.f32 %v620, %v664
        %666 = vmatmul.f32.gmra.mxu0 %v562
        %v667 = vpop.f32.mrf.mxu0
        %v668 = vadd.f32 %v620, %v667
        %669 = vmatmul.f32.gmra.mxu0 %v563
        %v670 = vpop.f32.mrf.mxu0
        %v671 = vadd.f32 %v620, %v670
        %672 = vmatmul.f32.gmra.mxu0 %v564
        %v673 = vpop.f32.mrf.mxu0
        %v674 = vadd.f32 %v620, %v673
        %675 = vmatmul.f32.gmra.mxu0 %v565
        %v676 = vpop.f32.mrf.mxu0
        %v677 = vadd.f32 %v620, %v676
        %678 = vmatmul.f32.gmra.mxu0 %v566
        %v679 = vpop.f32.mrf.mxu0
        %v680 = vadd.f32 %v620, %v679
        %681 = vmatmul.f32.gmra.mxu0 %v567
        %v682 = vpop.f32.mrf.mxu0
        %v683 = vadd.f32 %v620, %v682
        %684 = vmatmul.f32.gmra.mxu0 %v568
        %v685 = vpop.f32.mrf.mxu0
        %v686 = vadd.f32 %v620, %v685
        %687 = vmatmul.f32.gmra.mxu0 %v569
        %v688 = vpop.f32.mrf.mxu0
        %v689 = vadd.f32 %v620, %v688
        %690 = vdwg.mxu0
        %691 = vmatpush.msra.mxu0 %v616
        %692 = vmatpush.msra.mxu0 %v613
        %693 = vmatpush.msra.mxu0 %v610
        %694 = vmatpush.msra.mxu0 %v607
        %695 = vmatpush.msra.mxu0 %v604
        %696 = vmatpush.msra.mxu0 %v601
        %697 = vmatpush.msra.mxu0 %v598
        %698 = vmatpush.msra.mxu0 %v595
        %699 = vmatpush.msra.mxu0 %v592
        %700 = vmatpush.msra.mxu0 %v589
        %701 = vmatpush.msra.mxu0 %v586
        %702 = vmatpush.msra.mxu0 %v583
        %703 = vmatpush.msra.mxu0 %v580
        %704 = vmatpush.msra.mxu0 %v577
        %705 = vmatpush.msra.mxu0 %v574
        %706 = vmatpush.msra.mxu0 %v571
        %707 = vmatmul.f32.gmra.mxu0 %v554
        %v708 = vpop.f32.mrf.mxu0
        %v709 = vadd.f32 %v621, %v708
        %710 = vmatmul.f32.gmra.mxu0 %v555
        %v711 = vpop.f32.mrf.mxu0
        %v712 = vadd.f32 %v621, %v711
        %713 = vmatmul.f32.gmra.mxu0 %v556
        %v714 = vpop.f32.mrf.mxu0
        %v715 = vadd.f32 %v621, %v714
        %716 = vmatmul.f32.gmra.mxu0 %v557
        %v717 = vpop.f32.mrf.mxu0
        %v718 = vadd.f32 %v621, %v717
        %719 = vmatmul.f32.gmra.mxu0 %v558
        %v720 = vpop.f32.mrf.mxu0
        %v721 = vadd.f32 %v621, %v720
        %722 = vmatmul.f32.gmra.mxu0 %v559
        %v723 = vpop.f32.mrf.mxu0
        %v724 = vadd.f32 %v621, %v723
        %725 = vmatmul.f32.gmra.mxu0 %v560
        %v726 = vpop.f32.mrf.mxu0
        %v727 = vadd.f32 %v621, %v726
        %728 = vmatmul.f32.gmra.mxu0 %v561
        %v729 = vpop.f32.mrf.mxu0
        %v730 = vadd.f32 %v621, %v729
        %731 = vmatmul.f32.gmra.mxu0 %v562
        %v732 = vpop.f32.mrf.mxu0
        %v733 = vadd.f32 %v621, %v732
        %734 = vmatmul.f32.gmra.mxu0 %v563
        %v735 = vpop.f32.mrf.mxu0
        %v736 = vadd.f32 %v621, %v735
        %737 = vmatmul.f32.gmra.mxu0 %v564
        %v738 = vpop.f32.mrf.mxu0
        %v739 = vadd.f32 %v621, %v738
        %740 = vmatmul.f32.gmra.mxu0 %v565
        %v741 = vpop.f32.mrf.mxu0
        %v742 = vadd.f32 %v621, %v741
        %743 = vmatmul.f32.gmra.mxu0 %v566
        %v744 = vpop.f32.mrf.mxu0
        %v745 = vadd.f32 %v621, %v744
        %746 = vmatmul.f32.gmra.mxu0 %v567
        %v747 = vpop.f32.mrf.mxu0
        %v748 = vadd.f32 %v621, %v747
        %749 = vmatmul.f32.gmra.mxu0 %v568
        %v750 = vpop.f32.mrf.mxu0
        %v751 = vadd.f32 %v621, %v750
        %752 = vmatmul.f32.gmra.mxu0 %v569
        %v753 = vpop.f32.mrf.mxu0
        %v754 = vadd.f32 %v621, %v753
        %755 = vdwg.mxu0
        %756 = vmatpush.msra.mxu0 %v617
        %757 = vmatpush.msra.mxu0 %v614
        %758 = vmatpush.msra.mxu0 %v611
        %759 = vmatpush.msra.mxu0 %v608
        %760 = vmatpush.msra.mxu0 %v605
        %761 = vmatpush.msra.mxu0 %v602
        %762 = vmatpush.msra.mxu0 %v599
        %763 = vmatpush.msra.mxu0 %v596
        %764 = vmatpush.msra.mxu0 %v593
        %765 = vmatpush.msra.mxu0 %v590
        %766 = vmatpush.msra.mxu0 %v587
        %767 = vmatpush.msra.mxu0 %v584
        %768 = vmatpush.msra.mxu0 %v581
        %769 = vmatpush.msra.mxu0 %v578
        %770 = vmatpush.msra.mxu0 %v575
        %771 = vmatpush.msra.mxu0 %v572
        %772 = vmatmul.f32.gmra.mxu0 %v554
        %v773 = vpop.f32.mrf.mxu0
        %v774 = vadd.f32 %v622, %v773
        %775 = vmatmul.f32.gmra.mxu0 %v555
        %v776 = vpop.f32.mrf.mxu0
        %v777 = vadd.f32 %v622, %v776
        %778 = vmatmul.f32.gmra.mxu0 %v556
        %v779 = vpop.f32.mrf.mxu0
        %v780 = vadd.f32 %v622, %v779
        %781 = vmatmul.f32.gmra.mxu0 %v557
        %v782 = vpop.f32.mrf.mxu0
        %v783 = vadd.f32 %v622, %v782
        %784 = vmatmul.f32.gmra.mxu0 %v558
        %v785 = vpop.f32.mrf.mxu0
        %v786 = vadd.f32 %v622, %v785
        %787 = vmatmul.f32.gmra.mxu0 %v559
        %v788 = vpop.f32.mrf.mxu0
        %v789 = vadd.f32 %v622, %v788
        %790 = vmatmul.f32.gmra.mxu0 %v560
        %v791 = vpop.f32.mrf.mxu0
        %v792 = vadd.f32 %v622, %v791
        %793 = vmatmul.f32.gmra.mxu0 %v561
        %v794 = vpop.f32.mrf.mxu0
        %v795 = vadd.f32 %v622, %v794
        %796 = vmatmul.f32.gmra.mxu0 %v562
        %v797 = vpop.f32.mrf.mxu0
        %v798 = vadd.f32 %v622, %v797
        %799 = vmatmul.f32.gmra.mxu0 %v563
        %v800 = vpop.f32.mrf.mxu0
        %v801 = vadd.f32 %v622, %v800
        %802 = vmatmul.f32.gmra.mxu0 %v564
        %v803 = vpop.f32.mrf.mxu0
        %v804 = vadd.f32 %v622, %v803
        %805 = vmatmul.f32.gmra.mxu0 %v565
        %v806 = vpop.f32.mrf.mxu0
        %v807 = vadd.f32 %v622, %v806
        %808 = vmatmul.f32.gmra.mxu0 %v566
        %v809 = vpop.f32.mrf.mxu0
        %v810 = vadd.f32 %v622, %v809
        %811 = vmatmul.f32.gmra.mxu0 %v567
        %v812 = vpop.f32.mrf.mxu0
        %v813 = vadd.f32 %v622, %v812
        %814 = vmatmul.f32.gmra.mxu0 %v568
        %v815 = vpop.f32.mrf.mxu0
        %v816 = vadd.f32 %v622, %v815
        %817 = vmatmul.f32.gmra.mxu0 %v569
        %v818 = vpop.f32.mrf.mxu0
        %v819 = vadd.f32 %v622, %v818
        %820 = vdwg.mxu0
        %v821 = vlaneseq
        %v822 = vand.u32 %v821, 127
        %s823 = smul.u32 %s42, 8
        %s824 = sld [smem:[#allocation3 + %s823]]
        %v825 = vstv %s824
        %vm826 = vcmp.lt.s32.totalorder %v822, %v825
        %v827 = vsel %vm826, 0.0, -1e+09
        %s828 = sadd.s32 %s823, 1
        %s829 = sld [smem:[#allocation3 + %s828]]
        %v830 = vstv %s829
        %vm831 = vcmp.lt.s32.totalorder %v822, %v830
        %v832 = vsel %vm831, 0.0, -1e+09
        %s833 = sadd.s32 %s823, 2
        %s834 = sld [smem:[#allocation3 + %s833]]
        %v835 = vstv %s834
        %vm836 = vcmp.lt.s32.totalorder %v822, %v835
        %v837 = vsel %vm836, 0.0, -1e+09
        %s838 = sadd.s32 %s823, 3
        %s839 = sld [smem:[#allocation3 + %s838]]
        %v840 = vstv %s839
        %vm841 = vcmp.lt.s32.totalorder %v822, %v840
        %v842 = vsel %vm841, 0.0, -1e+09
        %s843 = sadd.s32 %s823, 4
        %s844 = sld [smem:[#allocation3 + %s843]]
        %v845 = vstv %s844
        %vm846 = vcmp.lt.s32.totalorder %v822, %v845
        %v847 = vsel %vm846, 0.0, -1e+09
        %s848 = sadd.s32 %s823, 5
        %s849 = sld [smem:[#allocation3 + %s848]]
        %v850 = vstv %s849
        %vm851 = vcmp.lt.s32.totalorder %v822, %v850
        %v852 = vsel %vm851, 0.0, -1e+09
        %s853 = sadd.s32 %s823, 6
        %s854 = sld [smem:[#allocation3 + %s853]]
        %v855 = vstv %s854
        %vm856 = vcmp.lt.s32.totalorder %v822, %v855
        %v857 = vsel %vm856, 0.0, -1e+09
        %s858 = sadd.s32 %s823, 7
        %s859 = sld [smem:[#allocation3 + %s858]]
        %v860 = vstv %s859
        %vm861 = vcmp.lt.s32.totalorder %v822, %v860
        %v862 = vsel %vm861, 0.0, -1e+09
        %v863 = vld [vmem:[#allocation10] sm:$0xff]
        %v864 = vld [vmem:[#allocation10 + $0x8] sm:$0xff]
        %v865 = vld [vmem:[#allocation10 + $0x10] sm:$0xff]
        %v866 = vld [vmem:[#allocation10 + $0x18] sm:$0xff]
        %v867 = vld [vmem:[#allocation10 + $0x20] sm:$0xff]
        %v868 = vld [vmem:[#allocation10 + $0x28] sm:$0xff]
        %v869 = vld [vmem:[#allocation10 + $0x30] sm:$0xff]
        %v870 = vld [vmem:[#allocation10 + $0x38] sm:$0xff]
        %v871 = vld [vmem:[#allocation10 + $0x40] sm:$0xff]
        %v872 = vld [vmem:[#allocation10 + $0x48] sm:$0xff]
        %v873 = vld [vmem:[#allocation10 + $0x50] sm:$0xff]
        %v874 = vld [vmem:[#allocation10 + $0x58] sm:$0xff]
        %v875 = vld [vmem:[#allocation10 + $0x60] sm:$0xff]
        %v876 = vld [vmem:[#allocation10 + $0x68] sm:$0xff]
        %v877 = vld [vmem:[#allocation10 + $0x70] sm:$0xff]
        %v878 = vld [vmem:[#allocation10 + $0x78] sm:$0xff]
        %vm879 = vcmask 261120
        %v881 = vsel %vm879, %v644, 0
        %v884 = vsel %vm879, %v647, 0
        %v887 = vsel %vm879, %v709, 0
        %v890 = vsel %vm879, %v712, 0
        %892 = vmatpush.xpose.msra.mxu0 0.0
        %893 = vmatpush.xpose.msra.mxu0 0.0
        %894 = vmatpush.xpose.msra.mxu0 0.0
        %895 = vmatpush.xpose.msra.mxu0 0.0
        %896 = vmatpush.xpose.msra.mxu0 0.0
        %897 = vmatpush.xpose.msra.mxu0 0.0
        %898 = vmatpush.xpose.msra.mxu0 0.0
        %899 = vmatpush.xpose.msra.mxu0 0.0
        %900 = vmatpush.xpose.msra.mxu0 0.0
        %901 = vmatpush.xpose.msra.mxu0 0.0
        %902 = vmatpush.xpose.msra.mxu0 0.0
        %903 = vmatpush.xpose.msra.mxu0 0.0
        %904 = vmatpush.xpose.msra.mxu0 0.0
        %905 = vmatpush.xpose.msra.mxu0 0.0
        %906 = vmatpush.xpose.msra.mxu0 %v890
        %907 = vmatpush.xpose.msra.mxu0 %v887
        %908 = vmatmul.f32.gmra.mxu0 %v881
        %v909 = vpop.f32.mrf.mxu0
        %v910 = vadd.f32 0.0, %v909
        %911 = vmatmul.f32.gmra.mxu0 %v884
        %v912 = vpop.f32.mrf.mxu0
        %v913 = vadd.f32 0.0, %v912
        %914 = vdwg.mxu0
        %v916 = vsel %vm879, %v650, 0
        %v919 = vsel %vm879, %v653, 0
        %v922 = vsel %vm879, %v715, 0
        %v925 = vsel %vm879, %v718, 0
        %927 = vmatpush.xpose.msra.mxu0 0.0
        %928 = vmatpush.xpose.msra.mxu0 0.0
        %929 = vmatpush.xpose.msra.mxu0 0.0
        %930 = vmatpush.xpose.msra.mxu0 0.0
        %931 = vmatpush.xpose.msra.mxu0 0.0
        %932 = vmatpush.xpose.msra.mxu0 0.0
        %933 = vmatpush.xpose.msra.mxu0 0.0
        %934 = vmatpush.xpose.msra.mxu0 0.0
        %935 = vmatpush.xpose.msra.mxu0 0.0
        %936 = vmatpush.xpose.msra.mxu0 0.0
        %937 = vmatpush.xpose.msra.mxu0 0.0
        %938 = vmatpush.xpose.msra.mxu0 0.0
        %939 = vmatpush.xpose.msra.mxu0 0.0
        %940 = vmatpush.xpose.msra.mxu0 0.0
        %941 = vmatpush.xpose.msra.mxu0 %v925
        %942 = vmatpush.xpose.msra.mxu0 %v922
        %943 = vmatmul.f32.gmra.mxu0 %v916
        %v944 = vpop.f32.mrf.mxu0
        %v945 = vadd.f32 0.0, %v944
        %946 = vmatmul.f32.gmra.mxu0 %v919
        %v947 = vpop.f32.mrf.mxu0
        %v948 = vadd.f32 0.0, %v947
        %949 = vdwg.mxu0
        %v951 = vsel %vm879, %v656, 0
        %v954 = vsel %vm879, %v659, 0
        %v957 = vsel %vm879, %v721, 0
        %v960 = vsel %vm879, %v724, 0
        %962 = vmatpush.xpose.msra.mxu0 0.0
        %963 = vmatpush.xpose.msra.mxu0 0.0
        %964 = vmatpush.xpose.msra.mxu0 0.0
        %965 = vmatpush.xpose.msra.mxu0 0.0
        %966 = vmatpush.xpose.msra.mxu0 0.0
        %967 = vmatpush.xpose.msra.mxu0 0.0
        %968 = vmatpush.xpose.msra.mxu0 0.0
        %969 = vmatpush.xpose.msra.mxu0 0.0
        %970 = vmatpush.xpose.msra.mxu0 0.0
        %971 = vmatpush.xpose.msra.mxu0 0.0
        %972 = vmatpush.xpose.msra.mxu0 0.0
        %973 = vmatpush.xpose.msra.mxu0 0.0
        %974 = vmatpush.xpose.msra.mxu0 0.0
        %975 = vmatpush.xpose.msra.mxu0 0.0
        %976 = vmatpush.xpose.msra.mxu0 %v960
        %977 = vmatpush.xpose.msra.mxu0 %v957
        %978 = vmatmul.f32.gmra.mxu0 %v951
        %v979 = vpop.f32.mrf.mxu0
        %v980 = vadd.f32 0.0, %v979
        %981 = vmatmul.f32.gmra.mxu0 %v954
        %v982 = vpop.f32.mrf.mxu0
        %v983 = vadd.f32 0.0, %v982
        %984 = vdwg.mxu0
        %v986 = vsel %vm879, %v662, 0
        %v989 = vsel %vm879, %v665, 0
        %v992 = vsel %vm879, %v727, 0
        %v995 = vsel %vm879, %v730, 0
        %997 = vmatpush.xpose.msra.mxu0 0.0
        %998 = vmatpush.xpose.msra.mxu0 0.0
        %999 = vmatpush.xpose.msra.mxu0 0.0
        %1000 = vmatpush.xpose.msra.mxu0 0.0
        %1001 = vmatpush.xpose.msra.mxu0 0.0
        %1002 = vmatpush.xpose.msra.mxu0 0.0
        %1003 = vmatpush.xpose.msra.mxu0 0.0
        %1004 = vmatpush.xpose.msra.mxu0 0.0
        %1005 = vmatpush.xpose.msra.mxu0 0.0
        %1006 = vmatpush.xpose.msra.mxu0 0.0
        %1007 = vmatpush.xpose.msra.mxu0 0.0
        %1008 = vmatpush.xpose.msra.mxu0 0.0
        %1009 = vmatpush.xpose.msra.mxu0 0.0
        %1010 = vmatpush.xpose.msra.mxu0 0.0
        %1011 = vmatpush.xpose.msra.mxu0 %v995
        %1012 = vmatpush.xpose.msra.mxu0 %v992
        %1013 = vmatmul.f32.gmra.mxu0 %v986
        %v1014 = vpop.f32.mrf.mxu0
        %v1015 = vadd.f32 0.0, %v1014
        %1016 = vmatmul.f32.gmra.mxu0 %v989
        %v1017 = vpop.f32.mrf.mxu0
        %v1018 = vadd.f32 0.0, %v1017
        %1019 = vdwg.mxu0
        %v1021 = vsel %vm879, %v668, 0
        %v1024 = vsel %vm879, %v671, 0
        %v1027 = vsel %vm879, %v733, 0
        %v1030 = vsel %vm879, %v736, 0
        %1032 = vmatpush.xpose.msra.mxu0 0.0
        %1033 = vmatpush.xpose.msra.mxu0 0.0
        %1034 = vmatpush.xpose.msra.mxu0 0.0
        %1035 = vmatpush.xpose.msra.mxu0 0.0
        %1036 = vmatpush.xpose.msra.mxu0 0.0
        %1037 = vmatpush.xpose.msra.mxu0 0.0
        %1038 = vmatpush.xpose.msra.mxu0 0.0
        %1039 = vmatpush.xpose.msra.mxu0 0.0
        %1040 = vmatpush.xpose.msra.mxu0 0.0
        %1041 = vmatpush.xpose.msra.mxu0 0.0
        %1042 = vmatpush.xpose.msra.mxu0 0.0
        %1043 = vmatpush.xpose.msra.mxu0 0.0
        %1044 = vmatpush.xpose.msra.mxu0 0.0
        %1045 = vmatpush.xpose.msra.mxu0 0.0
        %1046 = vmatpush.xpose.msra.mxu0 %v1030
        %1047 = vmatpush.xpose.msra.mxu0 %v1027
        %1048 = vmatmul.f32.gmra.mxu0 %v1021
        %v1049 = vpop.f32.mrf.mxu0
        %v1050 = vadd.f32 0.0, %v1049
        %1051 = vmatmul.f32.gmra.mxu0 %v1024
        %v1052 = vpop.f32.mrf.mxu0
        %v1053 = vadd.f32 0.0, %v1052
        %1054 = vdwg.mxu0
        %v1056 = vsel %vm879, %v674, 0
        %v1059 = vsel %vm879, %v677, 0
        %v1062 = vsel %vm879, %v739, 0
        %v1065 = vsel %vm879, %v742, 0
        %1067 = vmatpush.xpose.msra.mxu0 0.0
        %1068 = vmatpush.xpose.msra.mxu0 0.0
        %1069 = vmatpush.xpose.msra.mxu0 0.0
        %1070 = vmatpush.xpose.msra.mxu0 0.0
        %1071 = vmatpush.xpose.msra.mxu0 0.0
        %1072 = vmatpush.xpose.msra.mxu0 0.0
        %1073 = vmatpush.xpose.msra.mxu0 0.0
        %1074 = vmatpush.xpose.msra.mxu0 0.0
        %1075 = vmatpush.xpose.msra.mxu0 0.0
        %1076 = vmatpush.xpose.msra.mxu0 0.0
        %1077 = vmatpush.xpose.msra.mxu0 0.0
        %1078 = vmatpush.xpose.msra.mxu0 0.0
        %1079 = vmatpush.xpose.msra.mxu0 0.0
        %1080 = vmatpush.xpose.msra.mxu0 0.0
        %1081 = vmatpush.xpose.msra.mxu0 %v1065
        %1082 = vmatpush.xpose.msra.mxu0 %v1062
        %1083 = vmatmul.f32.gmra.mxu0 %v1056
        %v1084 = vpop.f32.mrf.mxu0
        %v1085 = vadd.f32 0.0, %v1084
        %1086 = vmatmul.f32.gmra.mxu0 %v1059
        %v1087 = vpop.f32.mrf.mxu0
        %v1088 = vadd.f32 0.0, %v1087
        %1089 = vdwg.mxu0
        %v1091 = vsel %vm879, %v680, 0
        %v1094 = vsel %vm879, %v683, 0
        %v1097 = vsel %vm879, %v745, 0
        %v1100 = vsel %vm879, %v748, 0
        %1102 = vmatpush.xpose.msra.mxu0 0.0
        %1103 = vmatpush.xpose.msra.mxu0 0.0
        %1104 = vmatpush.xpose.msra.mxu0 0.0
        %1105 = vmatpush.xpose.msra.mxu0 0.0
        %1106 = vmatpush.xpose.msra.mxu0 0.0
        %1107 = vmatpush.xpose.msra.mxu0 0.0
        %1108 = vmatpush.xpose.msra.mxu0 0.0
        %1109 = vmatpush.xpose.msra.mxu0 0.0
        %1110 = vmatpush.xpose.msra.mxu0 0.0
        %1111 = vmatpush.xpose.msra.mxu0 0.0
        %1112 = vmatpush.xpose.msra.mxu0 0.0
        %1113 = vmatpush.xpose.msra.mxu0 0.0
        %1114 = vmatpush.xpose.msra.mxu0 0.0
        %1115 = vmatpush.xpose.msra.mxu0 0.0
        %1116 = vmatpush.xpose.msra.mxu0 %v1100
        %1117 = vmatpush.xpose.msra.mxu0 %v1097
        %1118 = vmatmul.f32.gmra.mxu0 %v1091
        %v1119 = vpop.f32.mrf.mxu0
        %v1120 = vadd.f32 0.0, %v1119
        %1121 = vmatmul.f32.gmra.mxu0 %v1094
        %v1122 = vpop.f32.mrf.mxu0
        %v1123 = vadd.f32 0.0, %v1122
        %1124 = vdwg.mxu0
        %v1126 = vsel %vm879, %v686, 0
        %v1129 = vsel %vm879, %v689, 0
        %v1132 = vsel %vm879, %v751, 0
        %v1135 = vsel %vm879, %v754, 0
        %1137 = vmatpush.xpose.msra.mxu0 0.0
        %1138 = vmatpush.xpose.msra.mxu0 0.0
        %1139 = vmatpush.xpose.msra.mxu0 0.0
        %1140 = vmatpush.xpose.msra.mxu0 0.0
        %1141 = vmatpush.xpose.msra.mxu0 0.0
        %1142 = vmatpush.xpose.msra.mxu0 0.0
        %1143 = vmatpush.xpose.msra.mxu0 0.0
        %1144 = vmatpush.xpose.msra.mxu0 0.0
        %1145 = vmatpush.xpose.msra.mxu0 0.0
        %1146 = vmatpush.xpose.msra.mxu0 0.0
        %1147 = vmatpush.xpose.msra.mxu0 0.0
        %1148 = vmatpush.xpose.msra.mxu0 0.0
        %1149 = vmatpush.xpose.msra.mxu0 0.0
        %1150 = vmatpush.xpose.msra.mxu0 0.0
        %1151 = vmatpush.xpose.msra.mxu0 %v1135
        %1152 = vmatpush.xpose.msra.mxu0 %v1132
        %1153 = vmatmul.f32.gmra.mxu0 %v1126
        %v1154 = vpop.f32.mrf.mxu0
        %v1155 = vadd.f32 0.0, %v1154
        %1156 = vmatmul.f32.gmra.mxu0 %v1129
        %v1157 = vpop.f32.mrf.mxu0
        %v1158 = vadd.f32 0.0, %v1157
        %1159 = vdwg.mxu0
        %v1160 = vmul.f32 %v910, 0.17677669
        %v1161 = vmul.f32 %v913, 0.17677669
        %v1162 = vmul.f32 %v945, 0.17677669
        %v1163 = vmul.f32 %v948, 0.17677669
        %v1164 = vmul.f32 %v980, 0.17677669
        %v1165 = vmul.f32 %v983, 0.17677669
        %v1166 = vmul.f32 %v1015, 0.17677669
        %v1167 = vmul.f32 %v1018, 0.17677669
        %v1168 = vmul.f32 %v1050, 0.17677669
        %v1169 = vmul.f32 %v1053, 0.17677669
        %v1170 = vmul.f32 %v1085, 0.17677669
        %v1171 = vmul.f32 %v1088, 0.17677669
        %v1172 = vmul.f32 %v1120, 0.17677669
        %v1173 = vmul.f32 %v1123, 0.17677669
        %v1174 = vmul.f32 %v1155, 0.17677669
        %v1175 = vmul.f32 %v1158, 0.17677669
        %v1176 = vadd.f32 %v1160, %v827
        %v1177 = vadd.f32 %v1161, %v827
        %v1178 = vadd.f32 %v1162, %v832
        %v1179 = vadd.f32 %v1163, %v832
        %v1180 = vadd.f32 %v1164, %v837
        %v1181 = vadd.f32 %v1165, %v837
        %v1182 = vadd.f32 %v1166, %v842
        %v1183 = vadd.f32 %v1167, %v842
        %v1184 = vadd.f32 %v1168, %v847
        %v1185 = vadd.f32 %v1169, %v847
        %v1186 = vadd.f32 %v1170, %v852
        %v1187 = vadd.f32 %v1171, %v852
        %v1188 = vadd.f32 %v1172, %v857
        %v1189 = vadd.f32 %v1173, %v857
        %v1190 = vadd.f32 %v1174, %v862
        %v1191 = vadd.f32 %v1175, %v862
        %vm1192 = vcmask 130048
        %v1193 = vsel %vm1192, %v1176, -inf
        %1194 = vmax.xlane.f32.xlu0 %v1193
        %v1195 = vpop.xlane.xlu0 %1194
        %v1196 = vsel %vm1192, %v1177, -inf
        %1197 = vmax.xlane.f32.xlu0 %v1196
        %v1198 = vpop.xlane.xlu0 %1197
        %v1199 = vsel %vm1192, %v1178, -inf
        %1200 = vmax.xlane.f32.xlu0 %v1199
        %v1201 = vpop.xlane.xlu0 %1200
        %v1202 = vsel %vm1192, %v1179, -inf
        %1203 = vmax.xlane.f32.xlu0 %v1202
        %v1204 = vpop.xlane.xlu0 %1203
        %v1205 = vsel %vm1192, %v1180, -inf
        %1206 = vmax.xlane.f32.xlu0 %v1205
        %v1207 = vpop.xlane.xlu0 %1206
        %v1208 = vsel %vm1192, %v1181, -inf
        %1209 = vmax.xlane.f32.xlu0 %v1208
        %v1210 = vpop.xlane.xlu0 %1209
        %v1211 = vsel %vm1192, %v1182, -inf
        %1212 = vmax.xlane.f32.xlu0 %v1211
        %v1213 = vpop.xlane.xlu0 %1212
        %v1214 = vsel %vm1192, %v1183, -inf
        %1215 = vmax.xlane.f32.xlu0 %v1214
        %v1216 = vpop.xlane.xlu0 %1215
        %v1217 = vsel %vm1192, %v1184, -inf
        %1218 = vmax.xlane.f32.xlu0 %v1217
        %v1219 = vpop.xlane.xlu0 %1218
        %v1220 = vsel %vm1192, %v1185, -inf
        %1221 = vmax.xlane.f32.xlu0 %v1220
        %v1222 = vpop.xlane.xlu0 %1221
        %v1223 = vsel %vm1192, %v1186, -inf
        %1224 = vmax.xlane.f32.xlu0 %v1223
        %v1225 = vpop.xlane.xlu0 %1224
        %v1226 = vsel %vm1192, %v1187, -inf
        %1227 = vmax.xlane.f32.xlu0 %v1226
        %v1228 = vpop.xlane.xlu0 %1227
        %v1229 = vsel %vm1192, %v1188, -inf
        %1230 = vmax.xlane.f32.xlu0 %v1229
        %v1231 = vpop.xlane.xlu0 %1230
        %v1232 = vsel %vm1192, %v1189, -inf
        %1233 = vmax.xlane.f32.xlu0 %v1232
        %v1234 = vpop.xlane.xlu0 %1233
        %v1235 = vsel %vm1192, %v1190, -inf
        %1236 = vmax.xlane.f32.xlu0 %v1235
        %v1237 = vpop.xlane.xlu0 %1236
        %v1238 = vsel %vm1192, %v1191, -inf
        %1239 = vmax.xlane.f32.xlu0 %v1238
        %v1240 = vpop.xlane.xlu0 %1239
        %v1241 = vsub.f32 %v1176, %v1195
        %v1242 = vsub.f32 %v1177, %v1198
        %v1243 = vsub.f32 %v1178, %v1201
        %v1244 = vsub.f32 %v1179, %v1204
        %v1245 = vsub.f32 %v1180, %v1207
        %v1246 = vsub.f32 %v1181, %v1210
        %v1247 = vsub.f32 %v1182, %v1213
        %v1248 = vsub.f32 %v1183, %v1216
        %v1249 = vsub.f32 %v1184, %v1219
        %v1250 = vsub.f32 %v1185, %v1222
        %v1251 = vsub.f32 %v1186, %v1225
        %v1252 = vsub.f32 %v1187, %v1228
        %v1253 = vsub.f32 %v1188, %v1231
        %v1254 = vsub.f32 %v1189, %v1234
        %v1255 = vsub.f32 %v1190, %v1237
        %v1256 = vsub.f32 %v1191, %v1240
        %v1257 = vmul.f32 %v1241, 1.442695
        %v1258 = vpow.pop %v1257
        %v1259 = vmul.f32 %v1242, 1.442695
        %v1260 = vpow.pop %v1259
        %v1261 = vmul.f32 %v1243, 1.442695
        %v1262 = vpow.pop %v1261
        %v1263 = vmul.f32 %v1244, 1.442695
        %v1264 = vpow.pop %v1263
        %v1265 = vmul.f32 %v1245, 1.442695
        %v1266 = vpow.pop %v1265
        %v1267 = vmul.f32 %v1246, 1.442695
        %v1268 = vpow.pop %v1267
        %v1269 = vmul.f32 %v1247, 1.442695
        %v1270 = vpow.pop %v1269
        %v1271 = vmul.f32 %v1248, 1.442695
        %v1272 = vpow.pop %v1271
        %v1273 = vmul.f32 %v1249, 1.442695
        %v1274 = vpow.pop %v1273
        %v1275 = vmul.f32 %v1250, 1.442695
        %v1276 = vpow.pop %v1275
        %v1277 = vmul.f32 %v1251, 1.442695
        %v1278 = vpow.pop %v1277
        %v1279 = vmul.f32 %v1252, 1.442695
        %v1280 = vpow.pop %v1279
        %v1281 = vmul.f32 %v1253, 1.442695
        %v1282 = vpow.pop %v1281
        %v1283 = vmul.f32 %v1254, 1.442695
        %v1284 = vpow.pop %v1283
        %v1285 = vmul.f32 %v1255, 1.442695
        %v1286 = vpow.pop %v1285
        %v1287 = vmul.f32 %v1256, 1.442695
        %v1288 = vpow.pop %v1287
        %v1289 = vsel %vm1192, %v1258, 0.0
        %1290 = vadd.xlane.f32.xlu0 %v1289
        %v1291 = vpop.xlane.xlu0 %1290
        %v1292 = vsel %vm1192, %v1260, 0.0
        %1293 = vadd.xlane.f32.xlu0 %v1292
        %v1294 = vpop.xlane.xlu0 %1293
        %v1295 = vsel %vm1192, %v1262, 0.0
        %1296 = vadd.xlane.f32.xlu0 %v1295
        %v1297 = vpop.xlane.xlu0 %1296
        %v1298 = vsel %vm1192, %v1264, 0.0
        %1299 = vadd.xlane.f32.xlu0 %v1298
        %v1300 = vpop.xlane.xlu0 %1299
        %v1301 = vsel %vm1192, %v1266, 0.0
        %1302 = vadd.xlane.f32.xlu0 %v1301
        %v1303 = vpop.xlane.xlu0 %1302
        %v1304 = vsel %vm1192, %v1268, 0.0
        %1305 = vadd.xlane.f32.xlu0 %v1304
        %v1306 = vpop.xlane.xlu0 %1305
        %v1307 = vsel %vm1192, %v1270, 0.0
        %1308 = vadd.xlane.f32.xlu0 %v1307
        %v1309 = vpop.xlane.xlu0 %1308
        %v1310 = vsel %vm1192, %v1272, 0.0
        %1311 = vadd.xlane.f32.xlu0 %v1310
        %v1312 = vpop.xlane.xlu0 %1311
        %v1313 = vsel %vm1192, %v1274, 0.0
        %1314 = vadd.xlane.f32.xlu0 %v1313
        %v1315 = vpop.xlane.xlu0 %1314
        %v1316 = vsel %vm1192, %v1276, 0.0
        %1317 = vadd.xlane.f32.xlu0 %v1316
        %v1318 = vpop.xlane.xlu0 %1317
        %v1319 = vsel %vm1192, %v1278, 0.0
        %1320 = vadd.xlane.f32.xlu0 %v1319
        %v1321 = vpop.xlane.xlu0 %1320
        %v1322 = vsel %vm1192, %v1280, 0.0
        %1323 = vadd.xlane.f32.xlu0 %v1322
        %v1324 = vpop.xlane.xlu0 %1323
        %v1325 = vsel %vm1192, %v1282, 0.0
        %1326 = vadd.xlane.f32.xlu0 %v1325
        %v1327 = vpop.xlane.xlu0 %1326
        %v1328 = vsel %vm1192, %v1284, 0.0
        %1329 = vadd.xlane.f32.xlu0 %v1328
        %v1330 = vpop.xlane.xlu0 %1329
        %v1331 = vsel %vm1192, %v1286, 0.0
        %1332 = vadd.xlane.f32.xlu0 %v1331
        %v1333 = vpop.xlane.xlu0 %1332
        %v1334 = vsel %vm1192, %v1288, 0.0
        %1335 = vadd.xlane.f32.xlu0 %v1334
        %v1336 = vpop.xlane.xlu0 %1335
        %v1337 = vrcp.pop %v1291
        %v1338 = vrcp.pop %v1294
        %v1339 = vrcp.pop %v1297
        %v1340 = vrcp.pop %v1300
        %v1341 = vrcp.pop %v1303
        %v1342 = vrcp.pop %v1306
        %v1343 = vrcp.pop %v1309
        %v1344 = vrcp.pop %v1312
        %v1345 = vrcp.pop %v1315
        %v1346 = vrcp.pop %v1318
        %v1347 = vrcp.pop %v1321
        %v1348 = vrcp.pop %v1324
        %v1349 = vrcp.pop %v1327
        %v1350 = vrcp.pop %v1330
        %v1351 = vrcp.pop %v1333
        %v1352 = vrcp.pop %v1336
        %v1353 = vmul.f32 %v1258, %v1337
        %v1354 = vmul.f32 %v1260, %v1338
        %v1355 = vmul.f32 %v1262, %v1339
        %v1356 = vmul.f32 %v1264, %v1340
        %v1357 = vmul.f32 %v1266, %v1341
        %v1358 = vmul.f32 %v1268, %v1342
        %v1359 = vmul.f32 %v1270, %v1343
        %v1360 = vmul.f32 %v1272, %v1344
        %v1361 = vmul.f32 %v1274, %v1345
        %v1362 = vmul.f32 %v1276, %v1346
        %v1363 = vmul.f32 %v1278, %v1347
        %v1364 = vmul.f32 %v1280, %v1348
        %v1365 = vmul.f32 %v1282, %v1349
        %v1366 = vmul.f32 %v1284, %v1350
        %v1367 = vmul.f32 %v1286, %v1351
        %v1368 = vmul.f32 %v1288, %v1352
        %v1370 = vsel %vm1192, %v1353, 0
        %v1373 = vsel %vm1192, %v1354, 0
        %1375 = vmatpush.msra.mxu0 0.0
        %1376 = vmatpush.msra.mxu0 0.0
        %1377 = vmatpush.msra.mxu0 0.0
        %1378 = vmatpush.msra.mxu0 0.0
        %1379 = vmatpush.msra.mxu0 0.0
        %1380 = vmatpush.msra.mxu0 0.0
        %1381 = vmatpush.msra.mxu0 0.0
        %1382 = vmatpush.msra.mxu0 0.0
        %1383 = vmatpush.msra.mxu0 0.0
        %1384 = vmatpush.msra.mxu0 0.0
        %1385 = vmatpush.msra.mxu0 0.0
        %1386 = vmatpush.msra.mxu0 0.0
        %1387 = vmatpush.msra.mxu0 0.0
        %1388 = vmatpush.msra.mxu0 0.0
        %1389 = vmatpush.msra.mxu0 %v777
        %1390 = vmatpush.msra.mxu0 %v774
        %1391 = vmatmul.f32.gmra.mxu0 %v1370
        %v1392 = vpop.f32.mrf.mxu0
        %v1393 = vadd.f32 0.0, %v1392
        %1394 = vmatmul.f32.gmra.mxu0 %v1373
        %v1395 = vpop.f32.mrf.mxu0
        %v1396 = vadd.f32 0.0, %v1395
        %1397 = vdwg.mxu0
        %v1399 = vsel %vm1192, %v1355, 0
        %v1402 = vsel %vm1192, %v1356, 0
        %1404 = vmatpush.msra.mxu0 0.0
        %1405 = vmatpush.msra.mxu0 0.0
        %1406 = vmatpush.msra.mxu0 0.0
        %1407 = vmatpush.msra.mxu0 0.0
        %1408 = vmatpush.msra.mxu0 0.0
        %1409 = vmatpush.msra.mxu0 0.0
        %1410 = vmatpush.msra.mxu0 0.0
        %1411 = vmatpush.msra.mxu0 0.0
        %1412 = vmatpush.msra.mxu0 0.0
        %1413 = vmatpush.msra.mxu0 0.0
        %1414 = vmatpush.msra.mxu0 0.0
        %1415 = vmatpush.msra.mxu0 0.0
        %1416 = vmatpush.msra.mxu0 0.0
        %1417 = vmatpush.msra.mxu0 0.0
        %1418 = vmatpush.msra.mxu0 %v783
        %1419 = vmatpush.msra.mxu0 %v780
        %1420 = vmatmul.f32.gmra.mxu0 %v1399
        %v1421 = vpop.f32.mrf.mxu0
        %v1422 = vadd.f32 0.0, %v1421
        %1423 = vmatmul.f32.gmra.mxu0 %v1402
        %v1424 = vpop.f32.mrf.mxu0
        %v1425 = vadd.f32 0.0, %v1424
        %1426 = vdwg.mxu0
        %v1428 = vsel %vm1192, %v1357, 0
        %v1431 = vsel %vm1192, %v1358, 0
        %1433 = vmatpush.msra.mxu0 0.0
        %1434 = vmatpush.msra.mxu0 0.0
        %1435 = vmatpush.msra.mxu0 0.0
        %1436 = vmatpush.msra.mxu0 0.0
        %1437 = vmatpush.msra.mxu0 0.0
        %1438 = vmatpush.msra.mxu0 0.0
        %1439 = vmatpush.msra.mxu0 0.0
        %1440 = vmatpush.msra.mxu0 0.0
        %1441 = vmatpush.msra.mxu0 0.0
        %1442 = vmatpush.msra.mxu0 0.0
        %1443 = vmatpush.msra.mxu0 0.0
        %1444 = vmatpush.msra.mxu0 0.0
        %1445 = vmatpush.msra.mxu0 0.0
        %1446 = vmatpush.msra.mxu0 0.0
        %1447 = vmatpush.msra.mxu0 %v789
        %1448 = vmatpush.msra.mxu0 %v786
        %1449 = vmatmul.f32.gmra.mxu0 %v1428
        %v1450 = vpop.f32.mrf.mxu0
        %v1451 = vadd.f32 0.0, %v1450
        %1452 = vmatmul.f32.gmra.mxu0 %v1431
        %v1453 = vpop.f32.mrf.mxu0
        %v1454 = vadd.f32 0.0, %v1453
        %1455 = vdwg.mxu0
        %v1457 = vsel %vm1192, %v1359, 0
        %v1460 = vsel %vm1192, %v1360, 0
        %1462 = vmatpush.msra.mxu0 0.0
        %1463 = vmatpush.msra.mxu0 0.0
        %1464 = vmatpush.msra.mxu0 0.0
        %1465 = vmatpush.msra.mxu0 0.0
        %1466 = vmatpush.msra.mxu0 0.0
        %1467 = vmatpush.msra.mxu0 0.0
        %1468 = vmatpush.msra.mxu0 0.0
        %1469 = vmatpush.msra.mxu0 0.0
        %1470 = vmatpush.msra.mxu0 0.0
        %1471 = vmatpush.msra.mxu0 0.0
        %1472 = vmatpush.msra.mxu0 0.0
        %1473 = vmatpush.msra.mxu0 0.0
        %1474 = vmatpush.msra.mxu0 0.0
        %1475 = vmatpush.msra.mxu0 0.0
        %1476 = vmatpush.msra.mxu0 %v795
        %1477 = vmatpush.msra.mxu0 %v792
        %1478 = vmatmul.f32.gmra.mxu0 %v1457
        %v1479 = vpop.f32.mrf.mxu0
        %v1480 = vadd.f32 0.0, %v1479
        %1481 = vmatmul.f32.gmra.mxu0 %v1460
        %v1482 = vpop.f32.mrf.mxu0
        %v1483 = vadd.f32 0.0, %v1482
        %1484 = vdwg.mxu0
        %v1486 = vsel %vm1192, %v1361, 0
        %v1489 = vsel %vm1192, %v1362, 0
        %1491 = vmatpush.msra.mxu0 0.0
        %1492 = vmatpush.msra.mxu0 0.0
        %1493 = vmatpush.msra.mxu0 0.0
        %1494 = vmatpush.msra.mxu0 0.0
        %1495 = vmatpush.msra.mxu0 0.0
        %1496 = vmatpush.msra.mxu0 0.0
        %1497 = vmatpush.msra.mxu0 0.0
        %1498 = vmatpush.msra.mxu0 0.0
        %1499 = vmatpush.msra.mxu0 0.0
        %1500 = vmatpush.msra.mxu0 0.0
        %1501 = vmatpush.msra.mxu0 0.0
        %1502 = vmatpush.msra.mxu0 0.0
        %1503 = vmatpush.msra.mxu0 0.0
        %1504 = vmatpush.msra.mxu0 0.0
        %1505 = vmatpush.msra.mxu0 %v801
        %1506 = vmatpush.msra.mxu0 %v798
        %1507 = vmatmul.f32.gmra.mxu0 %v1486
        %v1508 = vpop.f32.mrf.mxu0
        %v1509 = vadd.f32 0.0, %v1508
        %1510 = vmatmul.f32.gmra.mxu0 %v1489
        %v1511 = vpop.f32.mrf.mxu0
        %v1512 = vadd.f32 0.0, %v1511
        %1513 = vdwg.mxu0
        %v1515 = vsel %vm1192, %v1363, 0
        %v1518 = vsel %vm1192, %v1364, 0
        %1520 = vmatpush.msra.mxu0 0.0
        %1521 = vmatpush.msra.mxu0 0.0
        %1522 = vmatpush.msra.mxu0 0.0
        %1523 = vmatpush.msra.mxu0 0.0
        %1524 = vmatpush.msra.mxu0 0.0
        %1525 = vmatpush.msra.mxu0 0.0
        %1526 = vmatpush.msra.mxu0 0.0
        %1527 = vmatpush.msra.mxu0 0.0
        %1528 = vmatpush.msra.mxu0 0.0
        %1529 = vmatpush.msra.mxu0 0.0
        %1530 = vmatpush.msra.mxu0 0.0
        %1531 = vmatpush.msra.mxu0 0.0
        %1532 = vmatpush.msra.mxu0 0.0
        %1533 = vmatpush.msra.mxu0 0.0
        %1534 = vmatpush.msra.mxu0 %v807
        %1535 = vmatpush.msra.mxu0 %v804
        %1536 = vmatmul.f32.gmra.mxu0 %v1515
        %v1537 = vpop.f32.mrf.mxu0
        %v1538 = vadd.f32 0.0, %v1537
        %1539 = vmatmul.f32.gmra.mxu0 %v1518
        %v1540 = vpop.f32.mrf.mxu0
        %v1541 = vadd.f32 0.0, %v1540
        %1542 = vdwg.mxu0
        %v1544 = vsel %vm1192, %v1365, 0
        %v1547 = vsel %vm1192, %v1366, 0
        %1549 = vmatpush.msra.mxu0 0.0
        %1550 = vmatpush.msra.mxu0 0.0
        %1551 = vmatpush.msra.mxu0 0.0
        %1552 = vmatpush.msra.mxu0 0.0
        %1553 = vmatpush.msra.mxu0 0.0
        %1554 = vmatpush.msra.mxu0 0.0
        %1555 = vmatpush.msra.mxu0 0.0
        %1556 = vmatpush.msra.mxu0 0.0
        %1557 = vmatpush.msra.mxu0 0.0
        %1558 = vmatpush.msra.mxu0 0.0
        %1559 = vmatpush.msra.mxu0 0.0
        %1560 = vmatpush.msra.mxu0 0.0
        %1561 = vmatpush.msra.mxu0 0.0
        %1562 = vmatpush.msra.mxu0 0.0
        %1563 = vmatpush.msra.mxu0 %v813
        %1564 = vmatpush.msra.mxu0 %v810
        %1565 = vmatmul.f32.gmra.mxu0 %v1544
        %v1566 = vpop.f32.mrf.mxu0
        %v1567 = vadd.f32 0.0, %v1566
        %1568 = vmatmul.f32.gmra.mxu0 %v1547
        %v1569 = vpop.f32.mrf.mxu0
        %v1570 = vadd.f32 0.0, %v1569
        %1571 = vdwg.mxu0
        %v1573 = vsel %vm1192, %v1367, 0
        %v1576 = vsel %vm1192, %v1368, 0
        %1578 = vmatpush.msra.mxu0 0.0
        %1579 = vmatpush.msra.mxu0 0.0
        %1580 = vmatpush.msra.mxu0 0.0
        %1581 = vmatpush.msra.mxu0 0.0
        %1582 = vmatpush.msra.mxu0 0.0
        %1583 = vmatpush.msra.mxu0 0.0
        %1584 = vmatpush.msra.mxu0 0.0
        %1585 = vmatpush.msra.mxu0 0.0
        %1586 = vmatpush.msra.mxu0 0.0
        %1587 = vmatpush.msra.mxu0 0.0
        %1588 = vmatpush.msra.mxu0 0.0
        %1589 = vmatpush.msra.mxu0 0.0
        %1590 = vmatpush.msra.mxu0 0.0
        %1591 = vmatpush.msra.mxu0 0.0
        %1592 = vmatpush.msra.mxu0 %v819
        %1593 = vmatpush.msra.mxu0 %v816
        %1594 = vmatmul.f32.gmra.mxu0 %v1573
        %v1595 = vpop.f32.mrf.mxu0
        %v1596 = vadd.f32 0.0, %v1595
        %1597 = vmatmul.f32.gmra.mxu0 %v1576
        %v1598 = vpop.f32.mrf.mxu0
        %v1599 = vadd.f32 0.0, %v1598
        %1600 = vdwg.mxu0
        %1601 = vrot.lane.b32.xlu0 %v644, 96
        %v1602 = vpop.permute.xlu0 %1601
        %1603 = vrot.lane.b32.xlu0 %v647, 96
        %v1604 = vpop.permute.xlu0 %1603
        %1605 = vrot.lane.b32.xlu0 %v709, 96
        %v1606 = vpop.permute.xlu0 %1605
        %1607 = vrot.lane.b32.xlu0 %v712, 96
        %v1608 = vpop.permute.xlu0 %1607
        %v1609 = vsel %vm879, %v1602, 0
        %v1611 = vsel %vm879, %v1604, 0
        %v1613 = vsel %vm879, %v1606, 0
        %v1615 = vsel %vm879, %v1608, 0
        %1617 = vmatpush.xpose.msra.mxu0 0.0
        %1618 = vmatpush.xpose.msra.mxu0 0.0
        %1619 = vmatpush.xpose.msra.mxu0 0.0
        %1620 = vmatpush.xpose.msra.mxu0 0.0
        %1621 = vmatpush.xpose.msra.mxu0 0.0
        %1622 = vmatpush.xpose.msra.mxu0 0.0
        %1623 = vmatpush.xpose.msra.mxu0 0.0
        %1624 = vmatpush.xpose.msra.mxu0 0.0
        %1625 = vmatpush.xpose.msra.mxu0 0.0
        %1626 = vmatpush.xpose.msra.mxu0 0.0
        %1627 = vmatpush.xpose.msra.mxu0 0.0
        %1628 = vmatpush.xpose.msra.mxu0 0.0
        %1629 = vmatpush.xpose.msra.mxu0 0.0
        %1630 = vmatpush.xpose.msra.mxu0 0.0
        %1631 = vmatpush.xpose.msra.mxu0 %v1615
        %1632 = vmatpush.xpose.msra.mxu0 %v1613
        %1633 = vmatmul.f32.gmra.mxu0 %v1609
        %v1634 = vpop.f32.mrf.mxu0
        %v1635 = vadd.f32 0.0, %v1634
        %1636 = vmatmul.f32.gmra.mxu0 %v1611
        %v1637 = vpop.f32.mrf.mxu0
        %v1638 = vadd.f32 0.0, %v1637
        %1639 = vdwg.mxu0
        %1640 = vrot.lane.b32.xlu0 %v650, 96
        %v1641 = vpop.permute.xlu0 %1640
        %1642 = vrot.lane.b32.xlu0 %v653, 96
        %v1643 = vpop.permute.xlu0 %1642
        %1644 = vrot.lane.b32.xlu0 %v715, 96
        %v1645 = vpop.permute.xlu0 %1644
        %1646 = vrot.lane.b32.xlu0 %v718, 96
        %v1647 = vpop.permute.xlu0 %1646
        %v1648 = vsel %vm879, %v1641, 0
        %v1650 = vsel %vm879, %v1643, 0
        %v1652 = vsel %vm879, %v1645, 0
        %v1654 = vsel %vm879, %v1647, 0
        %1656 = vmatpush.xpose.msra.mxu0 0.0
        %1657 = vmatpush.xpose.msra.mxu0 0.0
        %1658 = vmatpush.xpose.msra.mxu0 0.0
        %1659 = vmatpush.xpose.msra.mxu0 0.0
        %1660 = vmatpush.xpose.msra.mxu0 0.0
        %1661 = vmatpush.xpose.msra.mxu0 0.0
        %1662 = vmatpush.xpose.msra.mxu0 0.0
        %1663 = vmatpush.xpose.msra.mxu0 0.0
        %1664 = vmatpush.xpose.msra.mxu0 0.0
        %1665 = vmatpush.xpose.msra.mxu0 0.0
        %1666 = vmatpush.xpose.msra.mxu0 0.0
        %1667 = vmatpush.xpose.msra.mxu0 0.0
        %1668 = vmatpush.xpose.msra.mxu0 0.0
        %1669 = vmatpush.xpose.msra.mxu0 0.0
        %1670 = vmatpush.xpose.msra.mxu0 %v1654
        %1671 = vmatpush.xpose.msra.mxu0 %v1652
        %1672 = vmatmul.f32.gmra.mxu0 %v1648
        %v1673 = vpop.f32.mrf.mxu0
        %v1674 = vadd.f32 0.0, %v1673
        %1675 = vmatmul.f32.gmra.mxu0 %v1650
        %v1676 = vpop.f32.mrf.mxu0
        %v1677 = vadd.f32 0.0, %v1676
        %1678 = vdwg.mxu0
        %1679 = vrot.lane.b32.xlu0 %v656, 96
        %v1680 = vpop.permute.xlu0 %1679
        %1681 = vrot.lane.b32.xlu0 %v659, 96
        %v1682 = vpop.permute.xlu0 %1681
        %1683 = vrot.lane.b32.xlu0 %v721, 96
        %v1684 = vpop.permute.xlu0 %1683
        %1685 = vrot.lane.b32.xlu0 %v724, 96
        %v1686 = vpop.permute.xlu0 %1685
        %v1687 = vsel %vm879, %v1680, 0
        %v1689 = vsel %vm879, %v1682, 0
        %v1691 = vsel %vm879, %v1684, 0
        %v1693 = vsel %vm879, %v1686, 0
        %1695 = vmatpush.xpose.msra.mxu0 0.0
        %1696 = vmatpush.xpose.msra.mxu0 0.0
        %1697 = vmatpush.xpose.msra.mxu0 0.0
        %1698 = vmatpush.xpose.msra.mxu0 0.0
        %1699 = vmatpush.xpose.msra.mxu0 0.0
        %1700 = vmatpush.xpose.msra.mxu0 0.0
        %1701 = vmatpush.xpose.msra.mxu0 0.0
        %1702 = vmatpush.xpose.msra.mxu0 0.0
        %1703 = vmatpush.xpose.msra.mxu0 0.0
        %1704 = vmatpush.xpose.msra.mxu0 0.0
        %1705 = vmatpush.xpose.msra.mxu0 0.0
        %1706 = vmatpush.xpose.msra.mxu0 0.0
        %1707 = vmatpush.xpose.msra.mxu0 0.0
        %1708 = vmatpush.xpose.msra.mxu0 0.0
        %1709 = vmatpush.xpose.msra.mxu0 %v1693
        %1710 = vmatpush.xpose.msra.mxu0 %v1691
        %1711 = vmatmul.f32.gmra.mxu0 %v1687
        %v1712 = vpop.f32.mrf.mxu0
        %v1713 = vadd.f32 0.0, %v1712
        %1714 = vmatmul.f32.gmra.mxu0 %v1689
        %v1715 = vpop.f32.mrf.mxu0
        %v1716 = vadd.f32 0.0, %v1715
        %1717 = vdwg.mxu0
        %1718 = vrot.lane.b32.xlu0 %v662, 96
        %v1719 = vpop.permute.xlu0 %1718
        %1720 = vrot.lane.b32.xlu0 %v665, 96
        %v1721 = vpop.permute.xlu0 %1720
        %1722 = vrot.lane.b32.xlu0 %v727, 96
        %v1723 = vpop.permute.xlu0 %1722
        %1724 = vrot.lane.b32.xlu0 %v730, 96
        %v1725 = vpop.permute.xlu0 %1724
        %v1726 = vsel %vm879, %v1719, 0
        %v1728 = vsel %vm879, %v1721, 0
        %v1730 = vsel %vm879, %v1723, 0
        %v1732 = vsel %vm879, %v1725, 0
        %1734 = vmatpush.xpose.msra.mxu0 0.0
        %1735 = vmatpush.xpose.msra.mxu0 0.0
        %1736 = vmatpush.xpose.msra.mxu0 0.0
        %1737 = vmatpush.xpose.msra.mxu0 0.0
        %1738 = vmatpush.xpose.msra.mxu0 0.0
        %1739 = vmatpush.xpose.msra.mxu0 0.0
        %1740 = vmatpush.xpose.msra.mxu0 0.0
        %1741 = vmatpush.xpose.msra.mxu0 0.0
        %1742 = vmatpush.xpose.msra.mxu0 0.0
        %1743 = vmatpush.xpose.msra.mxu0 0.0
        %1744 = vmatpush.xpose.msra.mxu0 0.0
        %1745 = vmatpush.xpose.msra.mxu0 0.0
        %1746 = vmatpush.xpose.msra.mxu0 0.0
        %1747 = vmatpush.xpose.msra.mxu0 0.0
        %1748 = vmatpush.xpose.msra.mxu0 %v1732
        %1749 = vmatpush.xpose.msra.mxu0 %v1730
        %1750 = vmatmul.f32.gmra.mxu0 %v1726
        %v1751 = vpop.f32.mrf.mxu0
        %v1752 = vadd.f32 0.0, %v1751
        %1753 = vmatmul.f32.gmra.mxu0 %v1728
        %v1754 = vpop.f32.mrf.mxu0
        %v1755 = vadd.f32 0.0, %v1754
        %1756 = vdwg.mxu0
        %1757 = vrot.lane.b32.xlu0 %v668, 96
        %v1758 = vpop.permute.xlu0 %1757
        %1759 = vrot.lane.b32.xlu0 %v671, 96
        %v1760 = vpop.permute.xlu0 %1759
        %1761 = vrot.lane.b32.xlu0 %v733, 96
        %v1762 = vpop.permute.xlu0 %1761
        %1763 = vrot.lane.b32.xlu0 %v736, 96
        %v1764 = vpop.permute.xlu0 %1763
        %v1765 = vsel %vm879, %v1758, 0
        %v1767 = vsel %vm879, %v1760, 0
        %v1769 = vsel %vm879, %v1762, 0
        %v1771 = vsel %vm879, %v1764, 0
        %1773 = vmatpush.xpose.msra.mxu0 0.0
        %1774 = vmatpush.xpose.msra.mxu0 0.0
        %1775 = vmatpush.xpose.msra.mxu0 0.0
        %1776 = vmatpush.xpose.msra.mxu0 0.0
        %1777 = vmatpush.xpose.msra.mxu0 0.0
        %1778 = vmatpush.xpose.msra.mxu0 0.0
        %1779 = vmatpush.xpose.msra.mxu0 0.0
        %1780 = vmatpush.xpose.msra.mxu0 0.0
        %1781 = vmatpush.xpose.msra.mxu0 0.0
        %1782 = vmatpush.xpose.msra.mxu0 0.0
        %1783 = vmatpush.xpose.msra.mxu0 0.0
        %1784 = vmatpush.xpose.msra.mxu0 0.0
        %1785 = vmatpush.xpose.msra.mxu0 0.0
        %1786 = vmatpush.xpose.msra.mxu0 0.0
        %1787 = vmatpush.xpose.msra.mxu0 %v1771
        %1788 = vmatpush.xpose.msra.mxu0 %v1769
        %1789 = vmatmul.f32.gmra.mxu0 %v1765
        %v1790 = vpop.f32.mrf.mxu0
        %v1791 = vadd.f32 0.0, %v1790
        %1792 = vmatmul.f32.gmra.mxu0 %v1767
        %v1793 = vpop.f32.mrf.mxu0
        %v1794 = vadd.f32 0.0, %v1793
        %1795 = vdwg.mxu0
        %1796 = vrot.lane.b32.xlu0 %v674, 96
        %v1797 = vpop.permute.xlu0 %1796
        %1798 = vrot.lane.b32.xlu0 %v677, 96
        %v1799 = vpop.permute.xlu0 %1798
        %1800 = vrot.lane.b32.xlu0 %v739, 96
        %v1801 = vpop.permute.xlu0 %1800
        %1802 = vrot.lane.b32.xlu0 %v742, 96
        %v1803 = vpop.permute.xlu0 %1802
        %v1804 = vsel %vm879, %v1797, 0
        %v1806 = vsel %vm879, %v1799, 0
        %v1808 = vsel %vm879, %v1801, 0
        %v1810 = vsel %vm879, %v1803, 0
        %1812 = vmatpush.xpose.msra.mxu0 0.0
        %1813 = vmatpush.xpose.msra.mxu0 0.0
        %1814 = vmatpush.xpose.msra.mxu0 0.0
        %1815 = vmatpush.xpose.msra.mxu0 0.0
        %1816 = vmatpush.xpose.msra.mxu0 0.0
        %1817 = vmatpush.xpose.msra.mxu0 0.0
        %1818 = vmatpush.xpose.msra.mxu0 0.0
        %1819 = vmatpush.xpose.msra.mxu0 0.0
        %1820 = vmatpush.xpose.msra.mxu0 0.0
        %1821 = vmatpush.xpose.msra.mxu0 0.0
        %1822 = vmatpush.xpose.msra.mxu0 0.0
        %1823 = vmatpush.xpose.msra.mxu0 0.0
        %1824 = vmatpush.xpose.msra.mxu0 0.0
        %1825 = vmatpush.xpose.msra.mxu0 0.0
        %1826 = vmatpush.xpose.msra.mxu0 %v1810
        %1827 = vmatpush.xpose.msra.mxu0 %v1808
        %1828 = vmatmul.f32.gmra.mxu0 %v1804
        %v1829 = vpop.f32.mrf.mxu0
        %v1830 = vadd.f32 0.0, %v1829
        %1831 = vmatmul.f32.gmra.mxu0 %v1806
        %v1832 = vpop.f32.mrf.mxu0
        %v1833 = vadd.f32 0.0, %v1832
        %1834 = vdwg.mxu0
        %1835 = vrot.lane.b32.xlu0 %v680, 96
        %v1836 = vpop.permute.xlu0 %1835
        %1837 = vrot.lane.b32.xlu0 %v683, 96
        %v1838 = vpop.permute.xlu0 %1837
        %1839 = vrot.lane.b32.xlu0 %v745, 96
        %v1840 = vpop.permute.xlu0 %1839
        %1841 = vrot.lane.b32.xlu0 %v748, 96
        %v1842 = vpop.permute.xlu0 %1841
        %v1843 = vsel %vm879, %v1836, 0
        %v1845 = vsel %vm879, %v1838, 0
        %v1847 = vsel %vm879, %v1840, 0
        %v1849 = vsel %vm879, %v1842, 0
        %1851 = vmatpush.xpose.msra.mxu0 0.0
        %1852 = vmatpush.xpose.msra.mxu0 0.0
        %1853 = vmatpush.xpose.msra.mxu0 0.0
        %1854 = vmatpush.xpose.msra.mxu0 0.0
        %1855 = vmatpush.xpose.msra.mxu0 0.0
        %1856 = vmatpush.xpose.msra.mxu0 0.0
        %1857 = vmatpush.xpose.msra.mxu0 0.0
        %1858 = vmatpush.xpose.msra.mxu0 0.0
        %1859 = vmatpush.xpose.msra.mxu0 0.0
        %1860 = vmatpush.xpose.msra.mxu0 0.0
        %1861 = vmatpush.xpose.msra.mxu0 0.0
        %1862 = vmatpush.xpose.msra.mxu0 0.0
        %1863 = vmatpush.xpose.msra.mxu0 0.0
        %1864 = vmatpush.xpose.msra.mxu0 0.0
        %1865 = vmatpush.xpose.msra.mxu0 %v1849
        %1866 = vmatpush.xpose.msra.mxu0 %v1847
        %1867 = vmatmul.f32.gmra.mxu0 %v1843
        %v1868 = vpop.f32.mrf.mxu0
        %v1869 = vadd.f32 0.0, %v1868
        %1870 = vmatmul.f32.gmra.mxu0 %v1845
        %v1871 = vpop.f32.mrf.mxu0
        %v1872 = vadd.f32 0.0, %v1871
        %1873 = vdwg.mxu0
        %1874 = vrot.lane.b32.xlu0 %v686, 96
        %v1875 = vpop.permute.xlu0 %1874
        %1876 = vrot.lane.b32.xlu0 %v689, 96
        %v1877 = vpop.permute.xlu0 %1876
        %1878 = vrot.lane.b32.xlu0 %v751, 96
        %v1879 = vpop.permute.xlu0 %1878
        %1880 = vrot.lane.b32.xlu0 %v754, 96
        %v1881 = vpop.permute.xlu0 %1880
        %v1882 = vsel %vm879, %v1875, 0
        %v1884 = vsel %vm879, %v1877, 0
        %v1886 = vsel %vm879, %v1879, 0
        %v1888 = vsel %vm879, %v1881, 0
        %1890 = vmatpush.xpose.msra.mxu0 0.0
        %1891 = vmatpush.xpose.msra.mxu0 0.0
        %1892 = vmatpush.xpose.msra.mxu0 0.0
        %1893 = vmatpush.xpose.msra.mxu0 0.0
        %1894 = vmatpush.xpose.msra.mxu0 0.0
        %1895 = vmatpush.xpose.msra.mxu0 0.0
        %1896 = vmatpush.xpose.msra.mxu0 0.0
        %1897 = vmatpush.xpose.msra.mxu0 0.0
        %1898 = vmatpush.xpose.msra.mxu0 0.0
        %1899 = vmatpush.xpose.msra.mxu0 0.0
        %1900 = vmatpush.xpose.msra.mxu0 0.0
        %1901 = vmatpush.xpose.msra.mxu0 0.0
        %1902 = vmatpush.xpose.msra.mxu0 0.0
        %1903 = vmatpush.xpose.msra.mxu0 0.0
        %1904 = vmatpush.xpose.msra.mxu0 %v1888
        %1905 = vmatpush.xpose.msra.mxu0 %v1886
        %1906 = vmatmul.f32.gmra.mxu0 %v1882
        %v1907 = vpop.f32.mrf.mxu0
        %v1908 = vadd.f32 0.0, %v1907
        %1909 = vmatmul.f32.gmra.mxu0 %v1884
        %v1910 = vpop.f32.mrf.mxu0
        %v1911 = vadd.f32 0.0, %v1910
        %1912 = vdwg.mxu0
        %v1913 = vmul.f32 %v1635, 0.17677669
        %v1914 = vmul.f32 %v1638, 0.17677669
        %v1915 = vmul.f32 %v1674, 0.17677669
        %v1916 = vmul.f32 %v1677, 0.17677669
        %v1917 = vmul.f32 %v1713, 0.17677669
        %v1918 = vmul.f32 %v1716, 0.17677669
        %v1919 = vmul.f32 %v1752, 0.17677669
        %v1920 = vmul.f32 %v1755, 0.17677669
        %v1921 = vmul.f32 %v1791, 0.17677669
        %v1922 = vmul.f32 %v1794, 0.17677669
        %v1923 = vmul.f32 %v1830, 0.17677669
        %v1924 = vmul.f32 %v1833, 0.17677669
        %v1925 = vmul.f32 %v1869, 0.17677669
        %v1926 = vmul.f32 %v1872, 0.17677669
        %v1927 = vmul.f32 %v1908, 0.17677669
        %v1928 = vmul.f32 %v1911, 0.17677669
        %v1929 = vadd.f32 %v1913, %v827
        %v1930 = vadd.f32 %v1914, %v827
        %v1931 = vadd.f32 %v1915, %v832
        %v1932 = vadd.f32 %v1916, %v832
        %v1933 = vadd.f32 %v1917, %v837
        %v1934 = vadd.f32 %v1918, %v837
        %v1935 = vadd.f32 %v1919, %v842
        %v1936 = vadd.f32 %v1920, %v842
        %v1937 = vadd.f32 %v1921, %v847
        %v1938 = vadd.f32 %v1922, %v847
        %v1939 = vadd.f32 %v1923, %v852
        %v1940 = vadd.f32 %v1924, %v852
        %v1941 = vadd.f32 %v1925, %v857
        %v1942 = vadd.f32 %v1926, %v857
        %v1943 = vadd.f32 %v1927, %v862
        %v1944 = vadd.f32 %v1928, %v862
        %v1945 = vsel %vm1192, %v1929, -inf
        %1946 = vmax.xlane.f32.xlu0 %v1945
        %v1947 = vpop.xlane.xlu0 %1946
        %v1948 = vsel %vm1192, %v1930, -inf
        %1949 = vmax.xlane.f32.xlu0 %v1948
        %v1950 = vpop.xlane.xlu0 %1949
        %v1951 = vsel %vm1192, %v1931, -inf
        %1952 = vmax.xlane.f32.xlu0 %v1951
        %v1953 = vpop.xlane.xlu0 %1952
        %v1954 = vsel %vm1192, %v1932, -inf
        %1955 = vmax.xlane.f32.xlu0 %v1954
        %v1956 = vpop.xlane.xlu0 %1955
        %v1957 = vsel %vm1192, %v1933, -inf
        %1958 = vmax.xlane.f32.xlu0 %v1957
        %v1959 = vpop.xlane.xlu0 %1958
        %v1960 = vsel %vm1192, %v1934, -inf
        %1961 = vmax.xlane.f32.xlu0 %v1960
        %v1962 = vpop.xlane.xlu0 %1961
        %v1963 = vsel %vm1192, %v1935, -inf
        %1964 = vmax.xlane.f32.xlu0 %v1963
        %v1965 = vpop.xlane.xlu0 %1964
        %v1966 = vsel %vm1192, %v1936, -inf
        %1967 = vmax.xlane.f32.xlu0 %v1966
        %v1968 = vpop.xlane.xlu0 %1967
        %v1969 = vsel %vm1192, %v1937, -inf
        %1970 = vmax.xlane.f32.xlu0 %v1969
        %v1971 = vpop.xlane.xlu0 %1970
        %v1972 = vsel %vm1192, %v1938, -inf
        %1973 = vmax.xlane.f32.xlu0 %v1972
        %v1974 = vpop.xlane.xlu0 %1973
        %v1975 = vsel %vm1192, %v1939, -inf
        %1976 = vmax.xlane.f32.xlu0 %v1975
        %v1977 = vpop.xlane.xlu0 %1976
        %v1978 = vsel %vm1192, %v1940, -inf
        %1979 = vmax.xlane.f32.xlu0 %v1978
        %v1980 = vpop.xlane.xlu0 %1979
        %v1981 = vsel %vm1192, %v1941, -inf
        %1982 = vmax.xlane.f32.xlu0 %v1981
        %v1983 = vpop.xlane.xlu0 %1982
        %v1984 = vsel %vm1192, %v1942, -inf
        %1985 = vmax.xlane.f32.xlu0 %v1984
        %v1986 = vpop.xlane.xlu0 %1985
        %v1987 = vsel %vm1192, %v1943, -inf
        %1988 = vmax.xlane.f32.xlu0 %v1987
        %v1989 = vpop.xlane.xlu0 %1988
        %v1990 = vsel %vm1192, %v1944, -inf
        %1991 = vmax.xlane.f32.xlu0 %v1990
        %v1992 = vpop.xlane.xlu0 %1991
        %v1993 = vsub.f32 %v1929, %v1947
        %v1994 = vsub.f32 %v1930, %v1950
        %v1995 = vsub.f32 %v1931, %v1953
        %v1996 = vsub.f32 %v1932, %v1956
        %v1997 = vsub.f32 %v1933, %v1959
        %v1998 = vsub.f32 %v1934, %v1962
        %v1999 = vsub.f32 %v1935, %v1965
        %v2000 = vsub.f32 %v1936, %v1968
        %v2001 = vsub.f32 %v1937, %v1971
        %v2002 = vsub.f32 %v1938, %v1974
        %v2003 = vsub.f32 %v1939, %v1977
        %v2004 = vsub.f32 %v1940, %v1980
        %v2005 = vsub.f32 %v1941, %v1983
        %v2006 = vsub.f32 %v1942, %v1986
        %v2007 = vsub.f32 %v1943, %v1989
        %v2008 = vsub.f32 %v1944, %v1992
        %v2009 = vmul.f32 %v1993, 1.442695
        %v2010 = vpow.pop %v2009
        %v2011 = vmul.f32 %v1994, 1.442695
        %v2012 = vpow.pop %v2011
        %v2013 = vmul.f32 %v1995, 1.442695
        %v2014 = vpow.pop %v2013
        %v2015 = vmul.f32 %v1996, 1.442695
        %v2016 = vpow.pop %v2015
        %v2017 = vmul.f32 %v1997, 1.442695
        %v2018 = vpow.pop %v2017
        %v2019 = vmul.f32 %v1998, 1.442695
        %v2020 = vpow.pop %v2019
        %v2021 = vmul.f32 %v1999, 1.442695
        %v2022 = vpow.pop %v2021
        %v2023 = vmul.f32 %v2000, 1.442695
        %v2024 = vpow.pop %v2023
        %v2025 = vmul.f32 %v2001, 1.442695
        %v2026 = vpow.pop %v2025
        %v2027 = vmul.f32 %v2002, 1.442695
        %v2028 = vpow.pop %v2027
        %v2029 = vmul.f32 %v2003, 1.442695
        %v2030 = vpow.pop %v2029
        %v2031 = vmul.f32 %v2004, 1.442695
        %v2032 = vpow.pop %v2031
        %v2033 = vmul.f32 %v2005, 1.442695
        %v2034 = vpow.pop %v2033
        %v2035 = vmul.f32 %v2006, 1.442695
        %v2036 = vpow.pop %v2035
        %v2037 = vmul.f32 %v2007, 1.442695
        %v2038 = vpow.pop %v2037
        %v2039 = vmul.f32 %v2008, 1.442695
        %v2040 = vpow.pop %v2039
        %v2041 = vsel %vm1192, %v2010, 0.0
        %2042 = vadd.xlane.f32.xlu0 %v2041
        %v2043 = vpop.xlane.xlu0 %2042
        %v2044 = vsel %vm1192, %v2012, 0.0
        %2045 = vadd.xlane.f32.xlu0 %v2044
        %v2046 = vpop.xlane.xlu0 %2045
        %v2047 = vsel %vm1192, %v2014, 0.0
        %2048 = vadd.xlane.f32.xlu0 %v2047
        %v2049 = vpop.xlane.xlu0 %2048
        %v2050 = vsel %vm1192, %v2016, 0.0
        %2051 = vadd.xlane.f32.xlu0 %v2050
        %v2052 = vpop.xlane.xlu0 %2051
        %v2053 = vsel %vm1192, %v2018, 0.0
        %2054 = vadd.xlane.f32.xlu0 %v2053
        %v2055 = vpop.xlane.xlu0 %2054
        %v2056 = vsel %vm1192, %v2020, 0.0
        %2057 = vadd.xlane.f32.xlu0 %v2056
        %v2058 = vpop.xlane.xlu0 %2057
        %v2059 = vsel %vm1192, %v2022, 0.0
        %2060 = vadd.xlane.f32.xlu0 %v2059
        %v2061 = vpop.xlane.xlu0 %2060
        %v2062 = vsel %vm1192, %v2024, 0.0
        %2063 = vadd.xlane.f32.xlu0 %v2062
        %v2064 = vpop.xlane.xlu0 %2063
        %v2065 = vsel %vm1192, %v2026, 0.0
        %2066 = vadd.xlane.f32.xlu0 %v2065
        %v2067 = vpop.xlane.xlu0 %2066
        %v2068 = vsel %vm1192, %v2028, 0.0
        %2069 = vadd.xlane.f32.xlu0 %v2068
        %v2070 = vpop.xlane.xlu0 %2069
        %v2071 = vsel %vm1192, %v2030, 0.0
        %2072 = vadd.xlane.f32.xlu0 %v2071
        %v2073 = vpop.xlane.xlu0 %2072
        %v2074 = vsel %vm1192, %v2032, 0.0
        %2075 = vadd.xlane.f32.xlu0 %v2074
        %v2076 = vpop.xlane.xlu0 %2075
        %v2077 = vsel %vm1192, %v2034, 0.0
        %2078 = vadd.xlane.f32.xlu0 %v2077
        %v2079 = vpop.xlane.xlu0 %2078
        %v2080 = vsel %vm1192, %v2036, 0.0
        %2081 = vadd.xlane.f32.xlu0 %v2080
        %v2082 = vpop.xlane.xlu0 %2081
        %v2083 = vsel %vm1192, %v2038, 0.0
        %2084 = vadd.xlane.f32.xlu0 %v2083
        %v2085 = vpop.xlane.xlu0 %2084
        %v2086 = vsel %vm1192, %v2040, 0.0
        %2087 = vadd.xlane.f32.xlu0 %v2086
        %v2088 = vpop.xlane.xlu0 %2087
        %v2089 = vrcp.pop %v2043
        %v2090 = vrcp.pop %v2046
        %v2091 = vrcp.pop %v2049
        %v2092 = vrcp.pop %v2052
        %v2093 = vrcp.pop %v2055
        %v2094 = vrcp.pop %v2058
        %v2095 = vrcp.pop %v2061
        %v2096 = vrcp.pop %v2064
        %v2097 = vrcp.pop %v2067
        %v2098 = vrcp.pop %v2070
        %v2099 = vrcp.pop %v2073
        %v2100 = vrcp.pop %v2076
        %v2101 = vrcp.pop %v2079
        %v2102 = vrcp.pop %v2082
        %v2103 = vrcp.pop %v2085
        %v2104 = vrcp.pop %v2088
        %v2105 = vmul.f32 %v2010, %v2089
        %v2106 = vmul.f32 %v2012, %v2090
        %v2107 = vmul.f32 %v2014, %v2091
        %v2108 = vmul.f32 %v2016, %v2092
        %v2109 = vmul.f32 %v2018, %v2093
        %v2110 = vmul.f32 %v2020, %v2094
        %v2111 = vmul.f32 %v2022, %v2095
        %v2112 = vmul.f32 %v2024, %v2096
        %v2113 = vmul.f32 %v2026, %v2097
        %v2114 = vmul.f32 %v2028, %v2098
        %v2115 = vmul.f32 %v2030, %v2099
        %v2116 = vmul.f32 %v2032, %v2100
        %v2117 = vmul.f32 %v2034, %v2101
        %v2118 = vmul.f32 %v2036, %v2102
        %v2119 = vmul.f32 %v2038, %v2103
        %v2120 = vmul.f32 %v2040, %v2104
        %2123 = vrot.lane.b32.xlu0 %v774, 96
        %v2124 = vpop.permute.xlu0 %2123
        %2125 = vrot.lane.b32.xlu0 %v777, 96
        %v2126 = vpop.permute.xlu0 %2125
        %v2130 = vsel %vm1192, %v2105, 0
        %v2133 = vsel %vm1192, %v2106, 0
        %2135 = vmatpush.msra.mxu0 0.0
        %2136 = vmatpush.msra.mxu0 0.0
        %2137 = vmatpush.msra.mxu0 0.0
        %2138 = vmatpush.msra.mxu0 0.0
        %2139 = vmatpush.msra.mxu0 0.0
        %2140 = vmatpush.msra.mxu0 0.0
        %2141 = vmatpush.msra.mxu0 0.0
        %2142 = vmatpush.msra.mxu0 0.0
        %2143 = vmatpush.msra.mxu0 0.0
        %2144 = vmatpush.msra.mxu0 0.0
        %2145 = vmatpush.msra.mxu0 0.0
        %2146 = vmatpush.msra.mxu0 0.0
        %2147 = vmatpush.msra.mxu0 0.0
        %2148 = vmatpush.msra.mxu0 0.0
        %2149 = vmatpush.msra.mxu0 %v2126
        %2150 = vmatpush.msra.mxu0 %v2124
        %2151 = vmatmul.f32.gmra.mxu0 %v2130
        %v2152 = vpop.f32.mrf.mxu0
        %v2153 = vadd.f32 0.0, %v2152
        %2154 = vmatmul.f32.gmra.mxu0 %v2133
        %v2155 = vpop.f32.mrf.mxu0
        %v2156 = vadd.f32 0.0, %v2155
        %2157 = vdwg.mxu0
        %2160 = vrot.lane.b32.xlu0 %v780, 96
        %v2161 = vpop.permute.xlu0 %2160
        %2162 = vrot.lane.b32.xlu0 %v783, 96
        %v2163 = vpop.permute.xlu0 %2162
        %v2167 = vsel %vm1192, %v2107, 0
        %v2170 = vsel %vm1192, %v2108, 0
        %2172 = vmatpush.msra.mxu0 0.0
        %2173 = vmatpush.msra.mxu0 0.0
        %2174 = vmatpush.msra.mxu0 0.0
        %2175 = vmatpush.msra.mxu0 0.0
        %2176 = vmatpush.msra.mxu0 0.0
        %2177 = vmatpush.msra.mxu0 0.0
        %2178 = vmatpush.msra.mxu0 0.0
        %2179 = vmatpush.msra.mxu0 0.0
        %2180 = vmatpush.msra.mxu0 0.0
        %2181 = vmatpush.msra.mxu0 0.0
        %2182 = vmatpush.msra.mxu0 0.0
        %2183 = vmatpush.msra.mxu0 0.0
        %2184 = vmatpush.msra.mxu0 0.0
        %2185 = vmatpush.msra.mxu0 0.0
        %2186 = vmatpush.msra.mxu0 %v2163
        %2187 = vmatpush.msra.mxu0 %v2161
        %2188 = vmatmul.f32.gmra.mxu0 %v2167
        %v2189 = vpop.f32.mrf.mxu0
        %v2190 = vadd.f32 0.0, %v2189
        %2191 = vmatmul.f32.gmra.mxu0 %v2170
        %v2192 = vpop.f32.mrf.mxu0
        %v2193 = vadd.f32 0.0, %v2192
        %2194 = vdwg.mxu0
        %2197 = vrot.lane.b32.xlu0 %v786, 96
        %v2198 = vpop.permute.xlu0 %2197
        %2199 = vrot.lane.b32.xlu0 %v789, 96
        %v2200 = vpop.permute.xlu0 %2199
        %v2204 = vsel %vm1192, %v2109, 0
        %v2207 = vsel %vm1192, %v2110, 0
        %2209 = vmatpush.msra.mxu0 0.0
        %2210 = vmatpush.msra.mxu0 0.0
        %2211 = vmatpush.msra.mxu0 0.0
        %2212 = vmatpush.msra.mxu0 0.0
        %2213 = vmatpush.msra.mxu0 0.0
        %2214 = vmatpush.msra.mxu0 0.0
        %2215 = vmatpush.msra.mxu0 0.0
        %2216 = vmatpush.msra.mxu0 0.0
        %2217 = vmatpush.msra.mxu0 0.0
        %2218 = vmatpush.msra.mxu0 0.0
        %2219 = vmatpush.msra.mxu0 0.0
        %2220 = vmatpush.msra.mxu0 0.0
        %2221 = vmatpush.msra.mxu0 0.0
        %2222 = vmatpush.msra.mxu0 0.0
        %2223 = vmatpush.msra.mxu0 %v2200
        %2224 = vmatpush.msra.mxu0 %v2198
        %2225 = vmatmul.f32.gmra.mxu0 %v2204
        %v2226 = vpop.f32.mrf.mxu0
        %v2227 = vadd.f32 0.0, %v2226
        %2228 = vmatmul.f32.gmra.mxu0 %v2207
        %v2229 = vpop.f32.mrf.mxu0
        %v2230 = vadd.f32 0.0, %v2229
        %2231 = vdwg.mxu0
        %2234 = vrot.lane.b32.xlu0 %v792, 96
        %v2235 = vpop.permute.xlu0 %2234
        %2236 = vrot.lane.b32.xlu0 %v795, 96
        %v2237 = vpop.permute.xlu0 %2236
        %v2241 = vsel %vm1192, %v2111, 0
        %v2244 = vsel %vm1192, %v2112, 0
        %2246 = vmatpush.msra.mxu0 0.0
        %2247 = vmatpush.msra.mxu0 0.0
        %2248 = vmatpush.msra.mxu0 0.0
        %2249 = vmatpush.msra.mxu0 0.0
        %2250 = vmatpush.msra.mxu0 0.0
        %2251 = vmatpush.msra.mxu0 0.0
        %2252 = vmatpush.msra.mxu0 0.0
        %2253 = vmatpush.msra.mxu0 0.0
        %2254 = vmatpush.msra.mxu0 0.0
        %2255 = vmatpush.msra.mxu0 0.0
        %2256 = vmatpush.msra.mxu0 0.0
        %2257 = vmatpush.msra.mxu0 0.0
        %2258 = vmatpush.msra.mxu0 0.0
        %2259 = vmatpush.msra.mxu0 0.0
        %2260 = vmatpush.msra.mxu0 %v2237
        %2261 = vmatpush.msra.mxu0 %v2235
        %2262 = vmatmul.f32.gmra.mxu0 %v2241
        %v2263 = vpop.f32.mrf.mxu0
        %v2264 = vadd.f32 0.0, %v2263
        %2265 = vmatmul.f32.gmra.mxu0 %v2244
        %v2266 = vpop.f32.mrf.mxu0
        %v2267 = vadd.f32 0.0, %v2266
        %2268 = vdwg.mxu0
        %2271 = vrot.lane.b32.xlu0 %v798, 96
        %v2272 = vpop.permute.xlu0 %2271
        %2273 = vrot.lane.b32.xlu0 %v801, 96
        %v2274 = vpop.permute.xlu0 %2273
        %v2278 = vsel %vm1192, %v2113, 0
        %v2281 = vsel %vm1192, %v2114, 0
        %2283 = vmatpush.msra.mxu0 0.0
        %2284 = vmatpush.msra.mxu0 0.0
        %2285 = vmatpush.msra.mxu0 0.0
        %2286 = vmatpush.msra.mxu0 0.0
        %2287 = vmatpush.msra.mxu0 0.0
        %2288 = vmatpush.msra.mxu0 0.0
        %2289 = vmatpush.msra.mxu0 0.0
        %2290 = vmatpush.msra.mxu0 0.0
        %2291 = vmatpush.msra.mxu0 0.0
        %2292 = vmatpush.msra.mxu0 0.0
        %2293 = vmatpush.msra.mxu0 0.0
        %2294 = vmatpush.msra.mxu0 0.0
        %2295 = vmatpush.msra.mxu0 0.0
        %2296 = vmatpush.msra.mxu0 0.0
        %2297 = vmatpush.msra.mxu0 %v2274
        %2298 = vmatpush.msra.mxu0 %v2272
        %2299 = vmatmul.f32.gmra.mxu0 %v2278
        %v2300 = vpop.f32.mrf.mxu0
        %v2301 = vadd.f32 0.0, %v2300
        %2302 = vmatmul.f32.gmra.mxu0 %v2281
        %v2303 = vpop.f32.mrf.mxu0
        %v2304 = vadd.f32 0.0, %v2303
        %2305 = vdwg.mxu0
        %2308 = vrot.lane.b32.xlu0 %v804, 96
        %v2309 = vpop.permute.xlu0 %2308
        %2310 = vrot.lane.b32.xlu0 %v807, 96
        %v2311 = vpop.permute.xlu0 %2310
        %v2315 = vsel %vm1192, %v2115, 0
        %v2318 = vsel %vm1192, %v2116, 0
        %2320 = vmatpush.msra.mxu0 0.0
        %2321 = vmatpush.msra.mxu0 0.0
        %2322 = vmatpush.msra.mxu0 0.0
        %2323 = vmatpush.msra.mxu0 0.0
        %2324 = vmatpush.msra.mxu0 0.0
        %2325 = vmatpush.msra.mxu0 0.0
        %2326 = vmatpush.msra.mxu0 0.0
        %2327 = vmatpush.msra.mxu0 0.0
        %2328 = vmatpush.msra.mxu0 0.0
        %2329 = vmatpush.msra.mxu0 0.0
        %2330 = vmatpush.msra.mxu0 0.0
        %2331 = vmatpush.msra.mxu0 0.0
        %2332 = vmatpush.msra.mxu0 0.0
        %2333 = vmatpush.msra.mxu0 0.0
        %2334 = vmatpush.msra.mxu0 %v2311
        %2335 = vmatpush.msra.mxu0 %v2309
        %2336 = vmatmul.f32.gmra.mxu0 %v2315
        %v2337 = vpop.f32.mrf.mxu0
        %v2338 = vadd.f32 0.0, %v2337
        %2339 = vmatmul.f32.gmra.mxu0 %v2318
        %v2340 = vpop.f32.mrf.mxu0
        %v2341 = vadd.f32 0.0, %v2340
        %2342 = vdwg.mxu0
        %2345 = vrot.lane.b32.xlu0 %v810, 96
        %v2346 = vpop.permute.xlu0 %2345
        %2347 = vrot.lane.b32.xlu0 %v813, 96
        %v2348 = vpop.permute.xlu0 %2347
        %v2352 = vsel %vm1192, %v2117, 0
        %v2355 = vsel %vm1192, %v2118, 0
        %2357 = vmatpush.msra.mxu0 0.0
        %2358 = vmatpush.msra.mxu0 0.0
        %2359 = vmatpush.msra.mxu0 0.0
        %2360 = vmatpush.msra.mxu0 0.0
        %2361 = vmatpush.msra.mxu0 0.0
        %2362 = vmatpush.msra.mxu0 0.0
        %2363 = vmatpush.msra.mxu0 0.0
        %2364 = vmatpush.msra.mxu0 0.0
        %2365 = vmatpush.msra.mxu0 0.0
        %2366 = vmatpush.msra.mxu0 0.0
        %2367 = vmatpush.msra.mxu0 0.0
        %2368 = vmatpush.msra.mxu0 0.0
        %2369 = vmatpush.msra.mxu0 0.0
        %2370 = vmatpush.msra.mxu0 0.0
        %2371 = vmatpush.msra.mxu0 %v2348
        %2372 = vmatpush.msra.mxu0 %v2346
        %2373 = vmatmul.f32.gmra.mxu0 %v2352
        %v2374 = vpop.f32.mrf.mxu0
        %v2375 = vadd.f32 0.0, %v2374
        %2376 = vmatmul.f32.gmra.mxu0 %v2355
        %v2377 = vpop.f32.mrf.mxu0
        %v2378 = vadd.f32 0.0, %v2377
        %2379 = vdwg.mxu0
        %2382 = vrot.lane.b32.xlu0 %v816, 96
        %v2383 = vpop.permute.xlu0 %2382
        %2384 = vrot.lane.b32.xlu0 %v819, 96
        %v2385 = vpop.permute.xlu0 %2384
        %v2389 = vsel %vm1192, %v2119, 0
        %v2392 = vsel %vm1192, %v2120, 0
        %2394 = vmatpush.msra.mxu0 0.0
        %2395 = vmatpush.msra.mxu0 0.0
        %2396 = vmatpush.msra.mxu0 0.0
        %2397 = vmatpush.msra.mxu0 0.0
        %2398 = vmatpush.msra.mxu0 0.0
        %2399 = vmatpush.msra.mxu0 0.0
        %2400 = vmatpush.msra.mxu0 0.0
        %2401 = vmatpush.msra.mxu0 0.0
        %2402 = vmatpush.msra.mxu0 0.0
        %2403 = vmatpush.msra.mxu0 0.0
        %2404 = vmatpush.msra.mxu0 0.0
        %2405 = vmatpush.msra.mxu0 0.0
        %2406 = vmatpush.msra.mxu0 0.0
        %2407 = vmatpush.msra.mxu0 0.0
        %2408 = vmatpush.msra.mxu0 %v2385
        %2409 = vmatpush.msra.mxu0 %v2383
        %2410 = vmatmul.f32.gmra.mxu0 %v2389
        %v2411 = vpop.f32.mrf.mxu0
        %v2412 = vadd.f32 0.0, %v2411
        %2413 = vmatmul.f32.gmra.mxu0 %v2392
        %v2414 = vpop.f32.mrf.mxu0
        %v2415 = vadd.f32 0.0, %v2414
        %2416 = vdwg.mxu0
        %v2418 = vsel %vm879, %v2153, 0
        %v2421 = vsel %vm879, %v2156, 0
        %v2424 = vsel %vm879, %v2190, 0
        %v2427 = vsel %vm879, %v2193, 0
        %v2430 = vsel %vm879, %v2227, 0
        %v2433 = vsel %vm879, %v2230, 0
        %v2436 = vsel %vm879, %v2264, 0
        %v2439 = vsel %vm879, %v2267, 0
        %v2442 = vsel %vm879, %v2301, 0
        %v2445 = vsel %vm879, %v2304, 0
        %v2448 = vsel %vm879, %v2338, 0
        %v2451 = vsel %vm879, %v2341, 0
        %v2454 = vsel %vm879, %v2375, 0
        %v2457 = vsel %vm879, %v2378, 0
        %v2460 = vsel %vm879, %v2412, 0
        %v2463 = vsel %vm879, %v2415, 0
        %2465 = vmatpush.msra.mxu0 0.0
        %2466 = vmatpush.msra.mxu0 0.0
        %2467 = vmatpush.msra.mxu0 0.0
        %2468 = vmatpush.msra.mxu0 0.0
        %2469 = vmatpush.msra.mxu0 0.0
        %2470 = vmatpush.msra.mxu0 0.0
        %2471 = vmatpush.msra.mxu0 0.0
        %2472 = vmatpush.msra.mxu0 0.0
        %2473 = vmatpush.msra.mxu0 0.0
        %2474 = vmatpush.msra.mxu0 0.0
        %2475 = vmatpush.msra.mxu0 0.0
        %2476 = vmatpush.msra.mxu0 0.0
        %2477 = vmatpush.msra.mxu0 %v870
        %2478 = vmatpush.msra.mxu0 %v869
        %2479 = vmatpush.msra.mxu0 %v868
        %2480 = vmatpush.msra.mxu0 %v867
        %2481 = vmatmul.f32.gmra.mxu0 %v2418
        %v2482 = vpop.f32.mrf.mxu0
        %v2483 = vadd.f32 0.0, %v2482
        %2484 = vmatmul.f32.gmra.mxu0 %v2421
        %v2485 = vpop.f32.mrf.mxu0
        %v2486 = vadd.f32 0.0, %v2485
        %2487 = vmatmul.f32.gmra.mxu0 %v2424
        %v2488 = vpop.f32.mrf.mxu0
        %v2489 = vadd.f32 0.0, %v2488
        %2490 = vmatmul.f32.gmra.mxu0 %v2427
        %v2491 = vpop.f32.mrf.mxu0
        %v2492 = vadd.f32 0.0, %v2491
        %2493 = vmatmul.f32.gmra.mxu0 %v2430
        %v2494 = vpop.f32.mrf.mxu0
        %v2495 = vadd.f32 0.0, %v2494
        %2496 = vmatmul.f32.gmra.mxu0 %v2433
        %v2497 = vpop.f32.mrf.mxu0
        %v2498 = vadd.f32 0.0, %v2497
        %2499 = vmatmul.f32.gmra.mxu0 %v2436
        %v2500 = vpop.f32.mrf.mxu0
        %v2501 = vadd.f32 0.0, %v2500
        %2502 = vmatmul.f32.gmra.mxu0 %v2439
        %v2503 = vpop.f32.mrf.mxu0
        %v2504 = vadd.f32 0.0, %v2503
        %2505 = vmatmul.f32.gmra.mxu0 %v2442
        %v2506 = vpop.f32.mrf.mxu0
        %v2507 = vadd.f32 0.0, %v2506
        %2508 = vmatmul.f32.gmra.mxu0 %v2445
        %v2509 = vpop.f32.mrf.mxu0
        %v2510 = vadd.f32 0.0, %v2509
        %2511 = vmatmul.f32.gmra.mxu0 %v2448
        %v2512 = vpop.f32.mrf.mxu0
        %v2513 = vadd.f32 0.0, %v2512
        %2514 = vmatmul.f32.gmra.mxu0 %v2451
        %v2515 = vpop.f32.mrf.mxu0
        %v2516 = vadd.f32 0.0, %v2515
        %2517 = vmatmul.f32.gmra.mxu0 %v2454
        %v2518 = vpop.f32.mrf.mxu0
        %v2519 = vadd.f32 0.0, %v2518
        %2520 = vmatmul.f32.gmra.mxu0 %v2457
        %v2521 = vpop.f32.mrf.mxu0
        %v2522 = vadd.f32 0.0, %v2521
        %2523 = vmatmul.f32.gmra.mxu0 %v2460
        %v2524 = vpop.f32.mrf.mxu0
        %v2525 = vadd.f32 0.0, %v2524
        %2526 = vmatmul.f32.gmra.mxu0 %v2463
        %v2527 = vpop.f32.mrf.mxu0
        %v2528 = vadd.f32 0.0, %v2527
        %2529 = vdwg.mxu0
        %v2531 = vsel %vm879, %v1393, 0
        %v2534 = vsel %vm879, %v1396, 0
        %v2537 = vsel %vm879, %v1422, 0
        %v2540 = vsel %vm879, %v1425, 0
        %v2543 = vsel %vm879, %v1451, 0
        %v2546 = vsel %vm879, %v1454, 0
        %v2549 = vsel %vm879, %v1480, 0
        %v2552 = vsel %vm879, %v1483, 0
        %v2555 = vsel %vm879, %v1509, 0
        %v2558 = vsel %vm879, %v1512, 0
        %v2561 = vsel %vm879, %v1538, 0
        %v2564 = vsel %vm879, %v1541, 0
        %v2567 = vsel %vm879, %v1567, 0
        %v2570 = vsel %vm879, %v1570, 0
        %v2573 = vsel %vm879, %v1596, 0
        %v2576 = vsel %vm879, %v1599, 0
        %2578 = vmatpush.msra.mxu0 0.0
        %2579 = vmatpush.msra.mxu0 0.0
        %2580 = vmatpush.msra.mxu0 0.0
        %2581 = vmatpush.msra.mxu0 0.0
        %2582 = vmatpush.msra.mxu0 0.0
        %2583 = vmatpush.msra.mxu0 0.0
        %2584 = vmatpush.msra.mxu0 0.0
        %2585 = vmatpush.msra.mxu0 0.0
        %2586 = vmatpush.msra.mxu0 0.0
        %2587 = vmatpush.msra.mxu0 0.0
        %2588 = vmatpush.msra.mxu0 0.0
        %2589 = vmatpush.msra.mxu0 0.0
        %2590 = vmatpush.msra.mxu0 %v866
        %2591 = vmatpush.msra.mxu0 %v865
        %2592 = vmatpush.msra.mxu0 %v864
        %2593 = vmatpush.msra.mxu0 %v863
        %2594 = vmatmul.f32.gmra.mxu0 %v2531
        %v2595 = vpop.f32.mrf.mxu0
        %v2596 = vadd.f32 %v2483, %v2595
        %2597 = vmatmul.f32.gmra.mxu0 %v2534
        %v2598 = vpop.f32.mrf.mxu0
        %v2599 = vadd.f32 %v2486, %v2598
        %2600 = vmatmul.f32.gmra.mxu0 %v2537
        %v2601 = vpop.f32.mrf.mxu0
        %v2602 = vadd.f32 %v2489, %v2601
        %2603 = vmatmul.f32.gmra.mxu0 %v2540
        %v2604 = vpop.f32.mrf.mxu0
        %v2605 = vadd.f32 %v2492, %v2604
        %2606 = vmatmul.f32.gmra.mxu0 %v2543
        %v2607 = vpop.f32.mrf.mxu0
        %v2608 = vadd.f32 %v2495, %v2607
        %2609 = vmatmul.f32.gmra.mxu0 %v2546
        %v2610 = vpop.f32.mrf.mxu0
        %v2611 = vadd.f32 %v2498, %v2610
        %2612 = vmatmul.f32.gmra.mxu0 %v2549
        %v2613 = vpop.f32.mrf.mxu0
        %v2614 = vadd.f32 %v2501, %v2613
        %2615 = vmatmul.f32.gmra.mxu0 %v2552
        %v2616 = vpop.f32.mrf.mxu0
        %v2617 = vadd.f32 %v2504, %v2616
        %2618 = vmatmul.f32.gmra.mxu0 %v2555
        %v2619 = vpop.f32.mrf.mxu0
        %v2620 = vadd.f32 %v2507, %v2619
        %2621 = vmatmul.f32.gmra.mxu0 %v2558
        %v2622 = vpop.f32.mrf.mxu0
        %v2623 = vadd.f32 %v2510, %v2622
        %2624 = vmatmul.f32.gmra.mxu0 %v2561
        %v2625 = vpop.f32.mrf.mxu0
        %v2626 = vadd.f32 %v2513, %v2625
        %2627 = vmatmul.f32.gmra.mxu0 %v2564
        %v2628 = vpop.f32.mrf.mxu0
        %v2629 = vadd.f32 %v2516, %v2628
        %2630 = vmatmul.f32.gmra.mxu0 %v2567
        %v2631 = vpop.f32.mrf.mxu0
        %v2632 = vadd.f32 %v2519, %v2631
        %2633 = vmatmul.f32.gmra.mxu0 %v2570
        %v2634 = vpop.f32.mrf.mxu0
        %v2635 = vadd.f32 %v2522, %v2634
        %2636 = vmatmul.f32.gmra.mxu0 %v2573
        %v2637 = vpop.f32.mrf.mxu0
        %v2638 = vadd.f32 %v2525, %v2637
        %2639 = vmatmul.f32.gmra.mxu0 %v2576
        %v2640 = vpop.f32.mrf.mxu0
        %v2641 = vadd.f32 %v2528, %v2640
        %2642 = vdwg.mxu0
        %2643 = vrot.lane.b32.xlu0 %v644, 64
        %v2644 = vpop.permute.xlu0 %2643
        %2645 = vrot.lane.b32.xlu0 %v647, 64
        %v2646 = vpop.permute.xlu0 %2645
        %2647 = vrot.lane.b32.xlu0 %v709, 64
        %v2648 = vpop.permute.xlu0 %2647
        %2649 = vrot.lane.b32.xlu0 %v712, 64
        %v2650 = vpop.permute.xlu0 %2649
        %v2651 = vsel %vm879, %v2644, 0
        %v2653 = vsel %vm879, %v2646, 0
        %v2655 = vsel %vm879, %v2648, 0
        %v2657 = vsel %vm879, %v2650, 0
        %2659 = vmatpush.xpose.msra.mxu0 0.0
        %2660 = vmatpush.xpose.msra.mxu0 0.0
        %2661 = vmatpush.xpose.msra.mxu0 0.0
        %2662 = vmatpush.xpose.msra.mxu0 0.0
        %2663 = vmatpush.xpose.msra.mxu0 0.0
        %2664 = vmatpush.xpose.msra.mxu0 0.0
        %2665 = vmatpush.xpose.msra.mxu0 0.0
        %2666 = vmatpush.xpose.msra.mxu0 0.0
        %2667 = vmatpush.xpose.msra.mxu0 0.0
        %2668 = vmatpush.xpose.msra.mxu0 0.0
        %2669 = vmatpush.xpose.msra.mxu0 0.0
        %2670 = vmatpush.xpose.msra.mxu0 0.0
        %2671 = vmatpush.xpose.msra.mxu0 0.0
        %2672 = vmatpush.xpose.msra.mxu0 0.0
        %2673 = vmatpush.xpose.msra.mxu0 %v2657
        %2674 = vmatpush.xpose.msra.mxu0 %v2655
        %2675 = vmatmul.f32.gmra.mxu0 %v2651
        %v2676 = vpop.f32.mrf.mxu0
        %v2677 = vadd.f32 0.0, %v2676
        %2678 = vmatmul.f32.gmra.mxu0 %v2653
        %v2679 = vpop.f32.mrf.mxu0
        %v2680 = vadd.f32 0.0, %v2679
        %2681 = vdwg.mxu0
        %2682 = vrot.lane.b32.xlu0 %v650, 64
        %v2683 = vpop.permute.xlu0 %2682
        %2684 = vrot.lane.b32.xlu0 %v653, 64
        %v2685 = vpop.permute.xlu0 %2684
        %2686 = vrot.lane.b32.xlu0 %v715, 64
        %v2687 = vpop.permute.xlu0 %2686
        %2688 = vrot.lane.b32.xlu0 %v718, 64
        %v2689 = vpop.permute.xlu0 %2688
        %v2690 = vsel %vm879, %v2683, 0
        %v2692 = vsel %vm879, %v2685, 0
        %v2694 = vsel %vm879, %v2687, 0
        %v2696 = vsel %vm879, %v2689, 0
        %2698 = vmatpush.xpose.msra.mxu0 0.0
        %2699 = vmatpush.xpose.msra.mxu0 0.0
        %2700 = vmatpush.xpose.msra.mxu0 0.0
        %2701 = vmatpush.xpose.msra.mxu0 0.0
        %2702 = vmatpush.xpose.msra.mxu0 0.0
        %2703 = vmatpush.xpose.msra.mxu0 0.0
        %2704 = vmatpush.xpose.msra.mxu0 0.0
        %2705 = vmatpush.xpose.msra.mxu0 0.0
        %2706 = vmatpush.xpose.msra.mxu0 0.0
        %2707 = vmatpush.xpose.msra.mxu0 0.0
        %2708 = vmatpush.xpose.msra.mxu0 0.0
        %2709 = vmatpush.xpose.msra.mxu0 0.0
        %2710 = vmatpush.xpose.msra.mxu0 0.0
        %2711 = vmatpush.xpose.msra.mxu0 0.0
        %2712 = vmatpush.xpose.msra.mxu0 %v2696
        %2713 = vmatpush.xpose.msra.mxu0 %v2694
        %2714 = vmatmul.f32.gmra.mxu0 %v2690
        %v2715 = vpop.f32.mrf.mxu0
        %v2716 = vadd.f32 0.0, %v2715
        %2717 = vmatmul.f32.gmra.mxu0 %v2692
        %v2718 = vpop.f32.mrf.mxu0
        %v2719 = vadd.f32 0.0, %v2718
        %2720 = vdwg.mxu0
        %2721 = vrot.lane.b32.xlu0 %v656, 64
        %v2722 = vpop.permute.xlu0 %2721
        %2723 = vrot.lane.b32.xlu0 %v659, 64
        %v2724 = vpop.permute.xlu0 %2723
        %2725 = vrot.lane.b32.xlu0 %v721, 64
        %v2726 = vpop.permute.xlu0 %2725
        %2727 = vrot.lane.b32.xlu0 %v724, 64
        %v2728 = vpop.permute.xlu0 %2727
        %v2729 = vsel %vm879, %v2722, 0
        %v2731 = vsel %vm879, %v2724, 0
        %v2733 = vsel %vm879, %v2726, 0
        %v2735 = vsel %vm879, %v2728, 0
        %2737 = vmatpush.xpose.msra.mxu0 0.0
        %2738 = vmatpush.xpose.msra.mxu0 0.0
        %2739 = vmatpush.xpose.msra.mxu0 0.0
        %2740 = vmatpush.xpose.msra.mxu0 0.0
        %2741 = vmatpush.xpose.msra.mxu0 0.0
        %2742 = vmatpush.xpose.msra.mxu0 0.0
        %2743 = vmatpush.xpose.msra.mxu0 0.0
        %2744 = vmatpush.xpose.msra.mxu0 0.0
        %2745 = vmatpush.xpose.msra.mxu0 0.0
        %2746 = vmatpush.xpose.msra.mxu0 0.0
        %2747 = vmatpush.xpose.msra.mxu0 0.0
        %2748 = vmatpush.xpose.msra.mxu0 0.0
        %2749 = vmatpush.xpose.msra.mxu0 0.0
        %2750 = vmatpush.xpose.msra.mxu0 0.0
        %2751 = vmatpush.xpose.msra.mxu0 %v2735
        %2752 = vmatpush.xpose.msra.mxu0 %v2733
        %2753 = vmatmul.f32.gmra.mxu0 %v2729
        %v2754 = vpop.f32.mrf.mxu0
        %v2755 = vadd.f32 0.0, %v2754
        %2756 = vmatmul.f32.gmra.mxu0 %v2731
        %v2757 = vpop.f32.mrf.mxu0
        %v2758 = vadd.f32 0.0, %v2757
        %2759 = vdwg.mxu0
        %2760 = vrot.lane.b32.xlu0 %v662, 64
        %v2761 = vpop.permute.xlu0 %2760
        %2762 = vrot.lane.b32.xlu0 %v665, 64
        %v2763 = vpop.permute.xlu0 %2762
        %2764 = vrot.lane.b32.xlu0 %v727, 64
        %v2765 = vpop.permute.xlu0 %2764
        %2766 = vrot.lane.b32.xlu0 %v730, 64
        %v2767 = vpop.permute.xlu0 %2766
        %v2768 = vsel %vm879, %v2761, 0
        %v2770 = vsel %vm879, %v2763, 0
        %v2772 = vsel %vm879, %v2765, 0
        %v2774 = vsel %vm879, %v2767, 0
        %2776 = vmatpush.xpose.msra.mxu0 0.0
        %2777 = vmatpush.xpose.msra.mxu0 0.0
        %2778 = vmatpush.xpose.msra.mxu0 0.0
        %2779 = vmatpush.xpose.msra.mxu0 0.0
        %2780 = vmatpush.xpose.msra.mxu0 0.0
        %2781 = vmatpush.xpose.msra.mxu0 0.0
        %2782 = vmatpush.xpose.msra.mxu0 0.0
        %2783 = vmatpush.xpose.msra.mxu0 0.0
        %2784 = vmatpush.xpose.msra.mxu0 0.0
        %2785 = vmatpush.xpose.msra.mxu0 0.0
        %2786 = vmatpush.xpose.msra.mxu0 0.0
        %2787 = vmatpush.xpose.msra.mxu0 0.0
        %2788 = vmatpush.xpose.msra.mxu0 0.0
        %2789 = vmatpush.xpose.msra.mxu0 0.0
        %2790 = vmatpush.xpose.msra.mxu0 %v2774
        %2791 = vmatpush.xpose.msra.mxu0 %v2772
        %2792 = vmatmul.f32.gmra.mxu0 %v2768
        %v2793 = vpop.f32.mrf.mxu0
        %v2794 = vadd.f32 0.0, %v2793
        %2795 = vmatmul.f32.gmra.mxu0 %v2770
        %v2796 = vpop.f32.mrf.mxu0
        %v2797 = vadd.f32 0.0, %v2796
        %2798 = vdwg.mxu0
        %2799 = vrot.lane.b32.xlu0 %v668, 64
        %v2800 = vpop.permute.xlu0 %2799
        %2801 = vrot.lane.b32.xlu0 %v671, 64
        %v2802 = vpop.permute.xlu0 %2801
        %2803 = vrot.lane.b32.xlu0 %v733, 64
        %v2804 = vpop.permute.xlu0 %2803
        %2805 = vrot.lane.b32.xlu0 %v736, 64
        %v2806 = vpop.permute.xlu0 %2805
        %v2807 = vsel %vm879, %v2800, 0
        %v2809 = vsel %vm879, %v2802, 0
        %v2811 = vsel %vm879, %v2804, 0
        %v2813 = vsel %vm879, %v2806, 0
        %2815 = vmatpush.xpose.msra.mxu0 0.0
        %2816 = vmatpush.xpose.msra.mxu0 0.0
        %2817 = vmatpush.xpose.msra.mxu0 0.0
        %2818 = vmatpush.xpose.msra.mxu0 0.0
        %2819 = vmatpush.xpose.msra.mxu0 0.0
        %2820 = vmatpush.xpose.msra.mxu0 0.0
        %2821 = vmatpush.xpose.msra.mxu0 0.0
        %2822 = vmatpush.xpose.msra.mxu0 0.0
        %2823 = vmatpush.xpose.msra.mxu0 0.0
        %2824 = vmatpush.xpose.msra.mxu0 0.0
        %2825 = vmatpush.xpose.msra.mxu0 0.0
        %2826 = vmatpush.xpose.msra.mxu0 0.0
        %2827 = vmatpush.xpose.msra.mxu0 0.0
        %2828 = vmatpush.xpose.msra.mxu0 0.0
        %2829 = vmatpush.xpose.msra.mxu0 %v2813
        %2830 = vmatpush.xpose.msra.mxu0 %v2811
        %2831 = vmatmul.f32.gmra.mxu0 %v2807
        %v2832 = vpop.f32.mrf.mxu0
        %v2833 = vadd.f32 0.0, %v2832
        %2834 = vmatmul.f32.gmra.mxu0 %v2809
        %v2835 = vpop.f32.mrf.mxu0
        %v2836 = vadd.f32 0.0, %v2835
        %2837 = vdwg.mxu0
        %2838 = vrot.lane.b32.xlu0 %v674, 64
        %v2839 = vpop.permute.xlu0 %2838
        %2840 = vrot.lane.b32.xlu0 %v677, 64
        %v2841 = vpop.permute.xlu0 %2840
        %2842 = vrot.lane.b32.xlu0 %v739, 64
        %v2843 = vpop.permute.xlu0 %2842
        %2844 = vrot.lane.b32.xlu0 %v742, 64
        %v2845 = vpop.permute.xlu0 %2844
        %v2846 = vsel %vm879, %v2839, 0
        %v2848 = vsel %vm879, %v2841, 0
        %v2850 = vsel %vm879, %v2843, 0
        %v2852 = vsel %vm879, %v2845, 0
        %2854 = vmatpush.xpose.msra.mxu0 0.0
        %2855 = vmatpush.xpose.msra.mxu0 0.0
        %2856 = vmatpush.xpose.msra.mxu0 0.0
        %2857 = vmatpush.xpose.msra.mxu0 0.0
        %2858 = vmatpush.xpose.msra.mxu0 0.0
        %2859 = vmatpush.xpose.msra.mxu0 0.0
        %2860 = vmatpush.xpose.msra.mxu0 0.0
        %2861 = vmatpush.xpose.msra.mxu0 0.0
        %2862 = vmatpush.xpose.msra.mxu0 0.0
        %2863 = vmatpush.xpose.msra.mxu0 0.0
        %2864 = vmatpush.xpose.msra.mxu0 0.0
        %2865 = vmatpush.xpose.msra.mxu0 0.0
        %2866 = vmatpush.xpose.msra.mxu0 0.0
        %2867 = vmatpush.xpose.msra.mxu0 0.0
        %2868 = vmatpush.xpose.msra.mxu0 %v2852
        %2869 = vmatpush.xpose.msra.mxu0 %v2850
        %2870 = vmatmul.f32.gmra.mxu0 %v2846
        %v2871 = vpop.f32.mrf.mxu0
        %v2872 = vadd.f32 0.0, %v2871
        %2873 = vmatmul.f32.gmra.mxu0 %v2848
        %v2874 = vpop.f32.mrf.mxu0
        %v2875 = vadd.f32 0.0, %v2874
        %2876 = vdwg.mxu0
        %2877 = vrot.lane.b32.xlu0 %v680, 64
        %v2878 = vpop.permute.xlu0 %2877
        %2879 = vrot.lane.b32.xlu0 %v683, 64
        %v2880 = vpop.permute.xlu0 %2879
        %2881 = vrot.lane.b32.xlu0 %v745, 64
        %v2882 = vpop.permute.xlu0 %2881
        %2883 = vrot.lane.b32.xlu0 %v748, 64
        %v2884 = vpop.permute.xlu0 %2883
        %v2885 = vsel %vm879, %v2878, 0
        %v2887 = vsel %vm879, %v2880, 0
        %v2889 = vsel %vm879, %v2882, 0
        %v2891 = vsel %vm879, %v2884, 0
        %2893 = vmatpush.xpose.msra.mxu0 0.0
        %2894 = vmatpush.xpose.msra.mxu0 0.0
        %2895 = vmatpush.xpose.msra.mxu0 0.0
        %2896 = vmatpush.xpose.msra.mxu0 0.0
        %2897 = vmatpush.xpose.msra.mxu0 0.0
        %2898 = vmatpush.xpose.msra.mxu0 0.0
        %2899 = vmatpush.xpose.msra.mxu0 0.0
        %2900 = vmatpush.xpose.msra.mxu0 0.0
        %2901 = vmatpush.xpose.msra.mxu0 0.0
        %2902 = vmatpush.xpose.msra.mxu0 0.0
        %2903 = vmatpush.xpose.msra.mxu0 0.0
        %2904 = vmatpush.xpose.msra.mxu0 0.0
        %2905 = vmatpush.xpose.msra.mxu0 0.0
        %2906 = vmatpush.xpose.msra.mxu0 0.0
        %2907 = vmatpush.xpose.msra.mxu0 %v2891
        %2908 = vmatpush.xpose.msra.mxu0 %v2889
        %2909 = vmatmul.f32.gmra.mxu0 %v2885
        %v2910 = vpop.f32.mrf.mxu0
        %v2911 = vadd.f32 0.0, %v2910
        %2912 = vmatmul.f32.gmra.mxu0 %v2887
        %v2913 = vpop.f32.mrf.mxu0
        %v2914 = vadd.f32 0.0, %v2913
        %2915 = vdwg.mxu0
        %2916 = vrot.lane.b32.xlu0 %v686, 64
        %v2917 = vpop.permute.xlu0 %2916
        %2918 = vrot.lane.b32.xlu0 %v689, 64
        %v2919 = vpop.permute.xlu0 %2918
        %2920 = vrot.lane.b32.xlu0 %v751, 64
        %v2921 = vpop.permute.xlu0 %2920
        %2922 = vrot.lane.b32.xlu0 %v754, 64
        %v2923 = vpop.permute.xlu0 %2922
        %v2924 = vsel %vm879, %v2917, 0
        %v2926 = vsel %vm879, %v2919, 0
        %v2928 = vsel %vm879, %v2921, 0
        %v2930 = vsel %vm879, %v2923, 0
        %2932 = vmatpush.xpose.msra.mxu0 0.0
        %2933 = vmatpush.xpose.msra.mxu0 0.0
        %2934 = vmatpush.xpose.msra.mxu0 0.0
        %2935 = vmatpush.xpose.msra.mxu0 0.0
        %2936 = vmatpush.xpose.msra.mxu0 0.0
        %2937 = vmatpush.xpose.msra.mxu0 0.0
        %2938 = vmatpush.xpose.msra.mxu0 0.0
        %2939 = vmatpush.xpose.msra.mxu0 0.0
        %2940 = vmatpush.xpose.msra.mxu0 0.0
        %2941 = vmatpush.xpose.msra.mxu0 0.0
        %2942 = vmatpush.xpose.msra.mxu0 0.0
        %2943 = vmatpush.xpose.msra.mxu0 0.0
        %2944 = vmatpush.xpose.msra.mxu0 0.0
        %2945 = vmatpush.xpose.msra.mxu0 0.0
        %2946 = vmatpush.xpose.msra.mxu0 %v2930
        %2947 = vmatpush.xpose.msra.mxu0 %v2928
        %2948 = vmatmul.f32.gmra.mxu0 %v2924
        %v2949 = vpop.f32.mrf.mxu0
        %v2950 = vadd.f32 0.0, %v2949
        %2951 = vmatmul.f32.gmra.mxu0 %v2926
        %v2952 = vpop.f32.mrf.mxu0
        %v2953 = vadd.f32 0.0, %v2952
        %2954 = vdwg.mxu0
        %v2955 = vmul.f32 %v2677, 0.17677669
        %v2956 = vmul.f32 %v2680, 0.17677669
        %v2957 = vmul.f32 %v2716, 0.17677669
        %v2958 = vmul.f32 %v2719, 0.17677669
        %v2959 = vmul.f32 %v2755, 0.17677669
        %v2960 = vmul.f32 %v2758, 0.17677669
        %v2961 = vmul.f32 %v2794, 0.17677669
        %v2962 = vmul.f32 %v2797, 0.17677669
        %v2963 = vmul.f32 %v2833, 0.17677669
        %v2964 = vmul.f32 %v2836, 0.17677669
        %v2965 = vmul.f32 %v2872, 0.17677669
        %v2966 = vmul.f32 %v2875, 0.17677669
        %v2967 = vmul.f32 %v2911, 0.17677669
        %v2968 = vmul.f32 %v2914, 0.17677669
        %v2969 = vmul.f32 %v2950, 0.17677669
        %v2970 = vmul.f32 %v2953, 0.17677669
        %v2971 = vadd.f32 %v2955, %v827
        %v2972 = vadd.f32 %v2956, %v827
        %v2973 = vadd.f32 %v2957, %v832
        %v2974 = vadd.f32 %v2958, %v832
        %v2975 = vadd.f32 %v2959, %v837
        %v2976 = vadd.f32 %v2960, %v837
        %v2977 = vadd.f32 %v2961, %v842
        %v2978 = vadd.f32 %v2962, %v842
        %v2979 = vadd.f32 %v2963, %v847
        %v2980 = vadd.f32 %v2964, %v847
        %v2981 = vadd.f32 %v2965, %v852
        %v2982 = vadd.f32 %v2966, %v852
        %v2983 = vadd.f32 %v2967, %v857
        %v2984 = vadd.f32 %v2968, %v857
        %v2985 = vadd.f32 %v2969, %v862
        %v2986 = vadd.f32 %v2970, %v862
        %v2987 = vsel %vm1192, %v2971, -inf
        %2988 = vmax.xlane.f32.xlu0 %v2987
        %v2989 = vpop.xlane.xlu0 %2988
        %v2990 = vsel %vm1192, %v2972, -inf
        %2991 = vmax.xlane.f32.xlu0 %v2990
        %v2992 = vpop.xlane.xlu0 %2991
        %v2993 = vsel %vm1192, %v2973, -inf
        %2994 = vmax.xlane.f32.xlu0 %v2993
        %v2995 = vpop.xlane.xlu0 %2994
        %v2996 = vsel %vm1192, %v2974, -inf
        %2997 = vmax.xlane.f32.xlu0 %v2996
        %v2998 = vpop.xlane.xlu0 %2997
        %v2999 = vsel %vm1192, %v2975, -inf
        %3000 = vmax.xlane.f32.xlu0 %v2999
        %v3001 = vpop.xlane.xlu0 %3000
        %v3002 = vsel %vm1192, %v2976, -inf
        %3003 = vmax.xlane.f32.xlu0 %v3002
        %v3004 = vpop.xlane.xlu0 %3003
        %v3005 = vsel %vm1192, %v2977, -inf
        %3006 = vmax.xlane.f32.xlu0 %v3005
        %v3007 = vpop.xlane.xlu0 %3006
        %v3008 = vsel %vm1192, %v2978, -inf
        %3009 = vmax.xlane.f32.xlu0 %v3008
        %v3010 = vpop.xlane.xlu0 %3009
        %v3011 = vsel %vm1192, %v2979, -inf
        %3012 = vmax.xlane.f32.xlu0 %v3011
        %v3013 = vpop.xlane.xlu0 %3012
        %v3014 = vsel %vm1192, %v2980, -inf
        %3015 = vmax.xlane.f32.xlu0 %v3014
        %v3016 = vpop.xlane.xlu0 %3015
        %v3017 = vsel %vm1192, %v2981, -inf
        %3018 = vmax.xlane.f32.xlu0 %v3017
        %v3019 = vpop.xlane.xlu0 %3018
        %v3020 = vsel %vm1192, %v2982, -inf
        %3021 = vmax.xlane.f32.xlu0 %v3020
        %v3022 = vpop.xlane.xlu0 %3021
        %v3023 = vsel %vm1192, %v2983, -inf
        %3024 = vmax.xlane.f32.xlu0 %v3023
        %v3025 = vpop.xlane.xlu0 %3024
        %v3026 = vsel %vm1192, %v2984, -inf
        %3027 = vmax.xlane.f32.xlu0 %v3026
        %v3028 = vpop.xlane.xlu0 %3027
        %v3029 = vsel %vm1192, %v2985, -inf
        %3030 = vmax.xlane.f32.xlu0 %v3029
        %v3031 = vpop.xlane.xlu0 %3030
        %v3032 = vsel %vm1192, %v2986, -inf
        %3033 = vmax.xlane.f32.xlu0 %v3032
        %v3034 = vpop.xlane.xlu0 %3033
        %v3035 = vsub.f32 %v2971, %v2989
        %v3036 = vsub.f32 %v2972, %v2992
        %v3037 = vsub.f32 %v2973, %v2995
        %v3038 = vsub.f32 %v2974, %v2998
        %v3039 = vsub.f32 %v2975, %v3001
        %v3040 = vsub.f32 %v2976, %v3004
        %v3041 = vsub.f32 %v2977, %v3007
        %v3042 = vsub.f32 %v2978, %v3010
        %v3043 = vsub.f32 %v2979, %v3013
        %v3044 = vsub.f32 %v2980, %v3016
        %v3045 = vsub.f32 %v2981, %v3019
        %v3046 = vsub.f32 %v2982, %v3022
        %v3047 = vsub.f32 %v2983, %v3025
        %v3048 = vsub.f32 %v2984, %v3028
        %v3049 = vsub.f32 %v2985, %v3031
        %v3050 = vsub.f32 %v2986, %v3034
        %v3051 = vmul.f32 %v3035, 1.442695
        %v3052 = vpow.pop %v3051
        %v3053 = vmul.f32 %v3036, 1.442695
        %v3054 = vpow.pop %v3053
        %v3055 = vmul.f32 %v3037, 1.442695
        %v3056 = vpow.pop %v3055
        %v3057 = vmul.f32 %v3038, 1.442695
        %v3058 = vpow.pop %v3057
        %v3059 = vmul.f32 %v3039, 1.442695
        %v3060 = vpow.pop %v3059
        %v3061 = vmul.f32 %v3040, 1.442695
        %v3062 = vpow.pop %v3061
        %v3063 = vmul.f32 %v3041, 1.442695
        %v3064 = vpow.pop %v3063
        %v3065 = vmul.f32 %v3042, 1.442695
        %v3066 = vpow.pop %v3065
        %v3067 = vmul.f32 %v3043, 1.442695
        %v3068 = vpow.pop %v3067
        %v3069 = vmul.f32 %v3044, 1.442695
        %v3070 = vpow.pop %v3069
        %v3071 = vmul.f32 %v3045, 1.442695
        %v3072 = vpow.pop %v3071
        %v3073 = vmul.f32 %v3046, 1.442695
        %v3074 = vpow.pop %v3073
        %v3075 = vmul.f32 %v3047, 1.442695
        %v3076 = vpow.pop %v3075
        %v3077 = vmul.f32 %v3048, 1.442695
        %v3078 = vpow.pop %v3077
        %v3079 = vmul.f32 %v3049, 1.442695
        %v3080 = vpow.pop %v3079
        %v3081 = vmul.f32 %v3050, 1.442695
        %v3082 = vpow.pop %v3081
        %v3083 = vsel %vm1192, %v3052, 0.0
        %3084 = vadd.xlane.f32.xlu0 %v3083
        %v3085 = vpop.xlane.xlu0 %3084
        %v3086 = vsel %vm1192, %v3054, 0.0
        %3087 = vadd.xlane.f32.xlu0 %v3086
        %v3088 = vpop.xlane.xlu0 %3087
        %v3089 = vsel %vm1192, %v3056, 0.0
        %3090 = vadd.xlane.f32.xlu0 %v3089
        %v3091 = vpop.xlane.xlu0 %3090
        %v3092 = vsel %vm1192, %v3058, 0.0
        %3093 = vadd.xlane.f32.xlu0 %v3092
        %v3094 = vpop.xlane.xlu0 %3093
        %v3095 = vsel %vm1192, %v3060, 0.0
        %3096 = vadd.xlane.f32.xlu0 %v3095
        %v3097 = vpop.xlane.xlu0 %3096
        %v3098 = vsel %vm1192, %v3062, 0.0
        %3099 = vadd.xlane.f32.xlu0 %v3098
        %v3100 = vpop.xlane.xlu0 %3099
        %v3101 = vsel %vm1192, %v3064, 0.0
        %3102 = vadd.xlane.f32.xlu0 %v3101
        %v3103 = vpop.xlane.xlu0 %3102
        %v3104 = vsel %vm1192, %v3066, 0.0
        %3105 = vadd.xlane.f32.xlu0 %v3104
        %v3106 = vpop.xlane.xlu0 %3105
        %v3107 = vsel %vm1192, %v3068, 0.0
        %3108 = vadd.xlane.f32.xlu0 %v3107
        %v3109 = vpop.xlane.xlu0 %3108
        %v3110 = vsel %vm1192, %v3070, 0.0
        %3111 = vadd.xlane.f32.xlu0 %v3110
        %v3112 = vpop.xlane.xlu0 %3111
        %v3113 = vsel %vm1192, %v3072, 0.0
        %3114 = vadd.xlane.f32.xlu0 %v3113
        %v3115 = vpop.xlane.xlu0 %3114
        %v3116 = vsel %vm1192, %v3074, 0.0
        %3117 = vadd.xlane.f32.xlu0 %v3116
        %v3118 = vpop.xlane.xlu0 %3117
        %v3119 = vsel %vm1192, %v3076, 0.0
        %3120 = vadd.xlane.f32.xlu0 %v3119
        %v3121 = vpop.xlane.xlu0 %3120
        %v3122 = vsel %vm1192, %v3078, 0.0
        %3123 = vadd.xlane.f32.xlu0 %v3122
        %v3124 = vpop.xlane.xlu0 %3123
        %v3125 = vsel %vm1192, %v3080, 0.0
        %3126 = vadd.xlane.f32.xlu0 %v3125
        %v3127 = vpop.xlane.xlu0 %3126
        %v3128 = vsel %vm1192, %v3082, 0.0
        %3129 = vadd.xlane.f32.xlu0 %v3128
        %v3130 = vpop.xlane.xlu0 %3129
        %v3131 = vrcp.pop %v3085
        %v3132 = vrcp.pop %v3088
        %v3133 = vrcp.pop %v3091
        %v3134 = vrcp.pop %v3094
        %v3135 = vrcp.pop %v3097
        %v3136 = vrcp.pop %v3100
        %v3137 = vrcp.pop %v3103
        %v3138 = vrcp.pop %v3106
        %v3139 = vrcp.pop %v3109
        %v3140 = vrcp.pop %v3112
        %v3141 = vrcp.pop %v3115
        %v3142 = vrcp.pop %v3118
        %v3143 = vrcp.pop %v3121
        %v3144 = vrcp.pop %v3124
        %v3145 = vrcp.pop %v3127
        %v3146 = vrcp.pop %v3130
        %v3147 = vmul.f32 %v3052, %v3131
        %v3148 = vmul.f32 %v3054, %v3132
        %v3149 = vmul.f32 %v3056, %v3133
        %v3150 = vmul.f32 %v3058, %v3134
        %v3151 = vmul.f32 %v3060, %v3135
        %v3152 = vmul.f32 %v3062, %v3136
        %v3153 = vmul.f32 %v3064, %v3137
        %v3154 = vmul.f32 %v3066, %v3138
        %v3155 = vmul.f32 %v3068, %v3139
        %v3156 = vmul.f32 %v3070, %v3140
        %v3157 = vmul.f32 %v3072, %v3141
        %v3158 = vmul.f32 %v3074, %v3142
        %v3159 = vmul.f32 %v3076, %v3143
        %v3160 = vmul.f32 %v3078, %v3144
        %v3161 = vmul.f32 %v3080, %v3145
        %v3162 = vmul.f32 %v3082, %v3146
        %3163 = vrot.lane.b32.xlu0 %v774, 64
        %v3164 = vpop.permute.xlu0 %3163
        %3165 = vrot.lane.b32.xlu0 %v777, 64
        %v3166 = vpop.permute.xlu0 %3165
        %v3170 = vsel %vm1192, %v3147, 0
        %v3173 = vsel %vm1192, %v3148, 0
        %3175 = vmatpush.msra.mxu0 0.0
        %3176 = vmatpush.msra.mxu0 0.0
        %3177 = vmatpush.msra.mxu0 0.0
        %3178 = vmatpush.msra.mxu0 0.0
        %3179 = vmatpush.msra.mxu0 0.0
        %3180 = vmatpush.msra.mxu0 0.0
        %3181 = vmatpush.msra.mxu0 0.0
        %3182 = vmatpush.msra.mxu0 0.0
        %3183 = vmatpush.msra.mxu0 0.0
        %3184 = vmatpush.msra.mxu0 0.0
        %3185 = vmatpush.msra.mxu0 0.0
        %3186 = vmatpush.msra.mxu0 0.0
        %3187 = vmatpush.msra.mxu0 0.0
        %3188 = vmatpush.msra.mxu0 0.0
        %3189 = vmatpush.msra.mxu0 %v3166
        %3190 = vmatpush.msra.mxu0 %v3164
        %3191 = vmatmul.f32.gmra.mxu0 %v3170
        %v3192 = vpop.f32.mrf.mxu0
        %v3193 = vadd.f32 0.0, %v3192
        %3194 = vmatmul.f32.gmra.mxu0 %v3173
        %v3195 = vpop.f32.mrf.mxu0
        %v3196 = vadd.f32 0.0, %v3195
        %3197 = vdwg.mxu0
        %3198 = vrot.lane.b32.xlu0 %v780, 64
        %v3199 = vpop.permute.xlu0 %3198
        %3200 = vrot.lane.b32.xlu0 %v783, 64
        %v3201 = vpop.permute.xlu0 %3200
        %v3205 = vsel %vm1192, %v3149, 0
        %v3208 = vsel %vm1192, %v3150, 0
        %3210 = vmatpush.msra.mxu0 0.0
        %3211 = vmatpush.msra.mxu0 0.0
        %3212 = vmatpush.msra.mxu0 0.0
        %3213 = vmatpush.msra.mxu0 0.0
        %3214 = vmatpush.msra.mxu0 0.0
        %3215 = vmatpush.msra.mxu0 0.0
        %3216 = vmatpush.msra.mxu0 0.0
        %3217 = vmatpush.msra.mxu0 0.0
        %3218 = vmatpush.msra.mxu0 0.0
        %3219 = vmatpush.msra.mxu0 0.0
        %3220 = vmatpush.msra.mxu0 0.0
        %3221 = vmatpush.msra.mxu0 0.0
        %3222 = vmatpush.msra.mxu0 0.0
        %3223 = vmatpush.msra.mxu0 0.0
        %3224 = vmatpush.msra.mxu0 %v3201
        %3225 = vmatpush.msra.mxu0 %v3199
        %3226 = vmatmul.f32.gmra.mxu0 %v3205
        %v3227 = vpop.f32.mrf.mxu0
        %v3228 = vadd.f32 0.0, %v3227
        %3229 = vmatmul.f32.gmra.mxu0 %v3208
        %v3230 = vpop.f32.mrf.mxu0
        %v3231 = vadd.f32 0.0, %v3230
        %3232 = vdwg.mxu0
        %3233 = vrot.lane.b32.xlu0 %v786, 64
        %v3234 = vpop.permute.xlu0 %3233
        %3235 = vrot.lane.b32.xlu0 %v789, 64
        %v3236 = vpop.permute.xlu0 %3235
        %v3240 = vsel %vm1192, %v3151, 0
        %v3243 = vsel %vm1192, %v3152, 0
        %3245 = vmatpush.msra.mxu0 0.0
        %3246 = vmatpush.msra.mxu0 0.0
        %3247 = vmatpush.msra.mxu0 0.0
        %3248 = vmatpush.msra.mxu0 0.0
        %3249 = vmatpush.msra.mxu0 0.0
        %3250 = vmatpush.msra.mxu0 0.0
        %3251 = vmatpush.msra.mxu0 0.0
        %3252 = vmatpush.msra.mxu0 0.0
        %3253 = vmatpush.msra.mxu0 0.0
        %3254 = vmatpush.msra.mxu0 0.0
        %3255 = vmatpush.msra.mxu0 0.0
        %3256 = vmatpush.msra.mxu0 0.0
        %3257 = vmatpush.msra.mxu0 0.0
        %3258 = vmatpush.msra.mxu0 0.0
        %3259 = vmatpush.msra.mxu0 %v3236
        %3260 = vmatpush.msra.mxu0 %v3234
        %3261 = vmatmul.f32.gmra.mxu0 %v3240
        %v3262 = vpop.f32.mrf.mxu0
        %v3263 = vadd.f32 0.0, %v3262
        %3264 = vmatmul.f32.gmra.mxu0 %v3243
        %v3265 = vpop.f32.mrf.mxu0
        %v3266 = vadd.f32 0.0, %v3265
        %3267 = vdwg.mxu0
        %3268 = vrot.lane.b32.xlu0 %v792, 64
        %v3269 = vpop.permute.xlu0 %3268
        %3270 = vrot.lane.b32.xlu0 %v795, 64
        %v3271 = vpop.permute.xlu0 %3270
        %v3275 = vsel %vm1192, %v3153, 0
        %v3278 = vsel %vm1192, %v3154, 0
        %3280 = vmatpush.msra.mxu0 0.0
        %3281 = vmatpush.msra.mxu0 0.0
        %3282 = vmatpush.msra.mxu0 0.0
        %3283 = vmatpush.msra.mxu0 0.0
        %3284 = vmatpush.msra.mxu0 0.0
        %3285 = vmatpush.msra.mxu0 0.0
        %3286 = vmatpush.msra.mxu0 0.0
        %3287 = vmatpush.msra.mxu0 0.0
        %3288 = vmatpush.msra.mxu0 0.0
        %3289 = vmatpush.msra.mxu0 0.0
        %3290 = vmatpush.msra.mxu0 0.0
        %3291 = vmatpush.msra.mxu0 0.0
        %3292 = vmatpush.msra.mxu0 0.0
        %3293 = vmatpush.msra.mxu0 0.0
        %3294 = vmatpush.msra.mxu0 %v3271
        %3295 = vmatpush.msra.mxu0 %v3269
        %3296 = vmatmul.f32.gmra.mxu0 %v3275
        %v3297 = vpop.f32.mrf.mxu0
        %v3298 = vadd.f32 0.0, %v3297
        %3299 = vmatmul.f32.gmra.mxu0 %v3278
        %v3300 = vpop.f32.mrf.mxu0
        %v3301 = vadd.f32 0.0, %v3300
        %3302 = vdwg.mxu0
        %3303 = vrot.lane.b32.xlu0 %v798, 64
        %v3304 = vpop.permute.xlu0 %3303
        %3305 = vrot.lane.b32.xlu0 %v801, 64
        %v3306 = vpop.permute.xlu0 %3305
        %v3310 = vsel %vm1192, %v3155, 0
        %v3313 = vsel %vm1192, %v3156, 0
        %3315 = vmatpush.msra.mxu0 0.0
        %3316 = vmatpush.msra.mxu0 0.0
        %3317 = vmatpush.msra.mxu0 0.0
        %3318 = vmatpush.msra.mxu0 0.0
        %3319 = vmatpush.msra.mxu0 0.0
        %3320 = vmatpush.msra.mxu0 0.0
        %3321 = vmatpush.msra.mxu0 0.0
        %3322 = vmatpush.msra.mxu0 0.0
        %3323 = vmatpush.msra.mxu0 0.0
        %3324 = vmatpush.msra.mxu0 0.0
        %3325 = vmatpush.msra.mxu0 0.0
        %3326 = vmatpush.msra.mxu0 0.0
        %3327 = vmatpush.msra.mxu0 0.0
        %3328 = vmatpush.msra.mxu0 0.0
        %3329 = vmatpush.msra.mxu0 %v3306
        %3330 = vmatpush.msra.mxu0 %v3304
        %3331 = vmatmul.f32.gmra.mxu0 %v3310
        %v3332 = vpop.f32.mrf.mxu0
        %v3333 = vadd.f32 0.0, %v3332
        %3334 = vmatmul.f32.gmra.mxu0 %v3313
        %v3335 = vpop.f32.mrf.mxu0
        %v3336 = vadd.f32 0.0, %v3335
        %3337 = vdwg.mxu0
        %3338 = vrot.lane.b32.xlu0 %v804, 64
        %v3339 = vpop.permute.xlu0 %3338
        %3340 = vrot.lane.b32.xlu0 %v807, 64
        %v3341 = vpop.permute.xlu0 %3340
        %v3345 = vsel %vm1192, %v3157, 0
        %v3348 = vsel %vm1192, %v3158, 0
        %3350 = vmatpush.msra.mxu0 0.0
        %3351 = vmatpush.msra.mxu0 0.0
        %3352 = vmatpush.msra.mxu0 0.0
        %3353 = vmatpush.msra.mxu0 0.0
        %3354 = vmatpush.msra.mxu0 0.0
        %3355 = vmatpush.msra.mxu0 0.0
        %3356 = vmatpush.msra.mxu0 0.0
        %3357 = vmatpush.msra.mxu0 0.0
        %3358 = vmatpush.msra.mxu0 0.0
        %3359 = vmatpush.msra.mxu0 0.0
        %3360 = vmatpush.msra.mxu0 0.0
        %3361 = vmatpush.msra.mxu0 0.0
        %3362 = vmatpush.msra.mxu0 0.0
        %3363 = vmatpush.msra.mxu0 0.0
        %3364 = vmatpush.msra.mxu0 %v3341
        %3365 = vmatpush.msra.mxu0 %v3339
        %3366 = vmatmul.f32.gmra.mxu0 %v3345
        %v3367 = vpop.f32.mrf.mxu0
        %v3368 = vadd.f32 0.0, %v3367
        %3369 = vmatmul.f32.gmra.mxu0 %v3348
        %v3370 = vpop.f32.mrf.mxu0
        %v3371 = vadd.f32 0.0, %v3370
        %3372 = vdwg.mxu0
        %3373 = vrot.lane.b32.xlu0 %v810, 64
        %v3374 = vpop.permute.xlu0 %3373
        %3375 = vrot.lane.b32.xlu0 %v813, 64
        %v3376 = vpop.permute.xlu0 %3375
        %v3380 = vsel %vm1192, %v3159, 0
        %v3383 = vsel %vm1192, %v3160, 0
        %3385 = vmatpush.msra.mxu0 0.0
        %3386 = vmatpush.msra.mxu0 0.0
        %3387 = vmatpush.msra.mxu0 0.0
        %3388 = vmatpush.msra.mxu0 0.0
        %3389 = vmatpush.msra.mxu0 0.0
        %3390 = vmatpush.msra.mxu0 0.0
        %3391 = vmatpush.msra.mxu0 0.0
        %3392 = vmatpush.msra.mxu0 0.0
        %3393 = vmatpush.msra.mxu0 0.0
        %3394 = vmatpush.msra.mxu0 0.0
        %3395 = vmatpush.msra.mxu0 0.0
        %3396 = vmatpush.msra.mxu0 0.0
        %3397 = vmatpush.msra.mxu0 0.0
        %3398 = vmatpush.msra.mxu0 0.0
        %3399 = vmatpush.msra.mxu0 %v3376
        %3400 = vmatpush.msra.mxu0 %v3374
        %3401 = vmatmul.f32.gmra.mxu0 %v3380
        %v3402 = vpop.f32.mrf.mxu0
        %v3403 = vadd.f32 0.0, %v3402
        %3404 = vmatmul.f32.gmra.mxu0 %v3383
        %v3405 = vpop.f32.mrf.mxu0
        %v3406 = vadd.f32 0.0, %v3405
        %3407 = vdwg.mxu0
        %3408 = vrot.lane.b32.xlu0 %v816, 64
        %v3409 = vpop.permute.xlu0 %3408
        %3410 = vrot.lane.b32.xlu0 %v819, 64
        %v3411 = vpop.permute.xlu0 %3410
        %v3415 = vsel %vm1192, %v3161, 0
        %v3418 = vsel %vm1192, %v3162, 0
        %3420 = vmatpush.msra.mxu0 0.0
        %3421 = vmatpush.msra.mxu0 0.0
        %3422 = vmatpush.msra.mxu0 0.0
        %3423 = vmatpush.msra.mxu0 0.0
        %3424 = vmatpush.msra.mxu0 0.0
        %3425 = vmatpush.msra.mxu0 0.0
        %3426 = vmatpush.msra.mxu0 0.0
        %3427 = vmatpush.msra.mxu0 0.0
        %3428 = vmatpush.msra.mxu0 0.0
        %3429 = vmatpush.msra.mxu0 0.0
        %3430 = vmatpush.msra.mxu0 0.0
        %3431 = vmatpush.msra.mxu0 0.0
        %3432 = vmatpush.msra.mxu0 0.0
        %3433 = vmatpush.msra.mxu0 0.0
        %3434 = vmatpush.msra.mxu0 %v3411
        %3435 = vmatpush.msra.mxu0 %v3409
        %3436 = vmatmul.f32.gmra.mxu0 %v3415
        %v3437 = vpop.f32.mrf.mxu0
        %v3438 = vadd.f32 0.0, %v3437
        %3439 = vmatmul.f32.gmra.mxu0 %v3418
        %v3440 = vpop.f32.mrf.mxu0
        %v3441 = vadd.f32 0.0, %v3440
        %3442 = vdwg.mxu0
        %v3444 = vsel %vm879, %v3193, 0
        %v3447 = vsel %vm879, %v3196, 0
        %v3450 = vsel %vm879, %v3228, 0
        %v3453 = vsel %vm879, %v3231, 0
        %v3456 = vsel %vm879, %v3263, 0
        %v3459 = vsel %vm879, %v3266, 0
        %v3462 = vsel %vm879, %v3298, 0
        %v3465 = vsel %vm879, %v3301, 0
        %v3468 = vsel %vm879, %v3333, 0
        %v3471 = vsel %vm879, %v3336, 0
        %v3474 = vsel %vm879, %v3368, 0
        %v3477 = vsel %vm879, %v3371, 0
        %v3480 = vsel %vm879, %v3403, 0
        %v3483 = vsel %vm879, %v3406, 0
        %v3486 = vsel %vm879, %v3438, 0
        %v3489 = vsel %vm879, %v3441, 0
        %3491 = vmatpush.msra.mxu0 0.0
        %3492 = vmatpush.msra.mxu0 0.0
        %3493 = vmatpush.msra.mxu0 0.0
        %3494 = vmatpush.msra.mxu0 0.0
        %3495 = vmatpush.msra.mxu0 0.0
        %3496 = vmatpush.msra.mxu0 0.0
        %3497 = vmatpush.msra.mxu0 0.0
        %3498 = vmatpush.msra.mxu0 0.0
        %3499 = vmatpush.msra.mxu0 0.0
        %3500 = vmatpush.msra.mxu0 0.0
        %3501 = vmatpush.msra.mxu0 0.0
        %3502 = vmatpush.msra.mxu0 0.0
        %3503 = vmatpush.msra.mxu0 %v874
        %3504 = vmatpush.msra.mxu0 %v873
        %3505 = vmatpush.msra.mxu0 %v872
        %3506 = vmatpush.msra.mxu0 %v871
        %3507 = vmatmul.f32.gmra.mxu0 %v3444
        %v3508 = vpop.f32.mrf.mxu0
        %v3509 = vadd.f32 0.0, %v3508
        %3510 = vmatmul.f32.gmra.mxu0 %v3447
        %v3511 = vpop.f32.mrf.mxu0
        %v3512 = vadd.f32 0.0, %v3511
        %3513 = vmatmul.f32.gmra.mxu0 %v3450
        %v3514 = vpop.f32.mrf.mxu0
        %v3515 = vadd.f32 0.0, %v3514
        %3516 = vmatmul.f32.gmra.mxu0 %v3453
        %v3517 = vpop.f32.mrf.mxu0
        %v3518 = vadd.f32 0.0, %v3517
        %3519 = vmatmul.f32.gmra.mxu0 %v3456
        %v3520 = vpop.f32.mrf.mxu0
        %v3521 = vadd.f32 0.0, %v3520
        %3522 = vmatmul.f32.gmra.mxu0 %v3459
        %v3523 = vpop.f32.mrf.mxu0
        %v3524 = vadd.f32 0.0, %v3523
        %3525 = vmatmul.f32.gmra.mxu0 %v3462
        %v3526 = vpop.f32.mrf.mxu0
        %v3527 = vadd.f32 0.0, %v3526
        %3528 = vmatmul.f32.gmra.mxu0 %v3465
        %v3529 = vpop.f32.mrf.mxu0
        %v3530 = vadd.f32 0.0, %v3529
        %3531 = vmatmul.f32.gmra.mxu0 %v3468
        %v3532 = vpop.f32.mrf.mxu0
        %v3533 = vadd.f32 0.0, %v3532
        %3534 = vmatmul.f32.gmra.mxu0 %v3471
        %v3535 = vpop.f32.mrf.mxu0
        %v3536 = vadd.f32 0.0, %v3535
        %3537 = vmatmul.f32.gmra.mxu0 %v3474
        %v3538 = vpop.f32.mrf.mxu0
        %v3539 = vadd.f32 0.0, %v3538
        %3540 = vmatmul.f32.gmra.mxu0 %v3477
        %v3541 = vpop.f32.mrf.mxu0
        %v3542 = vadd.f32 0.0, %v3541
        %3543 = vmatmul.f32.gmra.mxu0 %v3480
        %v3544 = vpop.f32.mrf.mxu0
        %v3545 = vadd.f32 0.0, %v3544
        %3546 = vmatmul.f32.gmra.mxu0 %v3483
        %v3547 = vpop.f32.mrf.mxu0
        %v3548 = vadd.f32 0.0, %v3547
        %3549 = vmatmul.f32.gmra.mxu0 %v3486
        %v3550 = vpop.f32.mrf.mxu0
        %v3551 = vadd.f32 0.0, %v3550
        %3552 = vmatmul.f32.gmra.mxu0 %v3489
        %v3553 = vpop.f32.mrf.mxu0
        %v3554 = vadd.f32 0.0, %v3553
        %3555 = vdwg.mxu0
        %v3556 = vadd.f32 %v2596, %v3509
        %v3557 = vadd.f32 %v2599, %v3512
        %v3558 = vadd.f32 %v2602, %v3515
        %v3559 = vadd.f32 %v2605, %v3518
        %v3560 = vadd.f32 %v2608, %v3521
        %v3561 = vadd.f32 %v2611, %v3524
        %v3562 = vadd.f32 %v2614, %v3527
        %v3563 = vadd.f32 %v2617, %v3530
        %v3564 = vadd.f32 %v2620, %v3533
        %v3565 = vadd.f32 %v2623, %v3536
        %v3566 = vadd.f32 %v2626, %v3539
        %v3567 = vadd.f32 %v2629, %v3542
        %v3568 = vadd.f32 %v2632, %v3545
        %v3569 = vadd.f32 %v2635, %v3548
        %v3570 = vadd.f32 %v2638, %v3551
        %v3571 = vadd.f32 %v2641, %v3554
        %3572 = vrot.lane.b32.xlu0 %v644, 32
        %v3573 = vpop.permute.xlu0 %3572
        %3574 = vrot.lane.b32.xlu0 %v647, 32
        %v3575 = vpop.permute.xlu0 %3574
        %3576 = vrot.lane.b32.xlu0 %v709, 32
        %v3577 = vpop.permute.xlu0 %3576
        %3578 = vrot.lane.b32.xlu0 %v712, 32
        %v3579 = vpop.permute.xlu0 %3578
        %v3580 = vsel %vm879, %v3573, 0
        %v3582 = vsel %vm879, %v3575, 0
        %v3584 = vsel %vm879, %v3577, 0
        %v3586 = vsel %vm879, %v3579, 0
        %3588 = vmatpush.xpose.msra.mxu0 0.0
        %3589 = vmatpush.xpose.msra.mxu0 0.0
        %3590 = vmatpush.xpose.msra.mxu0 0.0
        %3591 = vmatpush.xpose.msra.mxu0 0.0
        %3592 = vmatpush.xpose.msra.mxu0 0.0
        %3593 = vmatpush.xpose.msra.mxu0 0.0
        %3594 = vmatpush.xpose.msra.mxu0 0.0
        %3595 = vmatpush.xpose.msra.mxu0 0.0
        %3596 = vmatpush.xpose.msra.mxu0 0.0
        %3597 = vmatpush.xpose.msra.mxu0 0.0
        %3598 = vmatpush.xpose.msra.mxu0 0.0
        %3599 = vmatpush.xpose.msra.mxu0 0.0
        %3600 = vmatpush.xpose.msra.mxu0 0.0
        %3601 = vmatpush.xpose.msra.mxu0 0.0
        %3602 = vmatpush.xpose.msra.mxu0 %v3586
        %3603 = vmatpush.xpose.msra.mxu0 %v3584
        %3604 = vmatmul.f32.gmra.mxu0 %v3580
        %v3605 = vpop.f32.mrf.mxu0
        %v3606 = vadd.f32 0.0, %v3605
        %3607 = vmatmul.f32.gmra.mxu0 %v3582
        %v3608 = vpop.f32.mrf.mxu0
        %v3609 = vadd.f32 0.0, %v3608
        %3610 = vdwg.mxu0
        %3611 = vrot.lane.b32.xlu0 %v650, 32
        %v3612 = vpop.permute.xlu0 %3611
        %3613 = vrot.lane.b32.xlu0 %v653, 32
        %v3614 = vpop.permute.xlu0 %3613
        %3615 = vrot.lane.b32.xlu0 %v715, 32
        %v3616 = vpop.permute.xlu0 %3615
        %3617 = vrot.lane.b32.xlu0 %v718, 32
        %v3618 = vpop.permute.xlu0 %3617
        %v3619 = vsel %vm879, %v3612, 0
        %v3621 = vsel %vm879, %v3614, 0
        %v3623 = vsel %vm879, %v3616, 0
        %v3625 = vsel %vm879, %v3618, 0
        %3627 = vmatpush.xpose.msra.mxu0 0.0
        %3628 = vmatpush.xpose.msra.mxu0 0.0
        %3629 = vmatpush.xpose.msra.mxu0 0.0
        %3630 = vmatpush.xpose.msra.mxu0 0.0
        %3631 = vmatpush.xpose.msra.mxu0 0.0
        %3632 = vmatpush.xpose.msra.mxu0 0.0
        %3633 = vmatpush.xpose.msra.mxu0 0.0
        %3634 = vmatpush.xpose.msra.mxu0 0.0
        %3635 = vmatpush.xpose.msra.mxu0 0.0
        %3636 = vmatpush.xpose.msra.mxu0 0.0
        %3637 = vmatpush.xpose.msra.mxu0 0.0
        %3638 = vmatpush.xpose.msra.mxu0 0.0
        %3639 = vmatpush.xpose.msra.mxu0 0.0
        %3640 = vmatpush.xpose.msra.mxu0 0.0
        %3641 = vmatpush.xpose.msra.mxu0 %v3625
        %3642 = vmatpush.xpose.msra.mxu0 %v3623
        %3643 = vmatmul.f32.gmra.mxu0 %v3619
        %v3644 = vpop.f32.mrf.mxu0
        %v3645 = vadd.f32 0.0, %v3644
        %3646 = vmatmul.f32.gmra.mxu0 %v3621
        %v3647 = vpop.f32.mrf.mxu0
        %v3648 = vadd.f32 0.0, %v3647
        %3649 = vdwg.mxu0
        %3650 = vrot.lane.b32.xlu0 %v656, 32
        %v3651 = vpop.permute.xlu0 %3650
        %3652 = vrot.lane.b32.xlu0 %v659, 32
        %v3653 = vpop.permute.xlu0 %3652
        %3654 = vrot.lane.b32.xlu0 %v721, 32
        %v3655 = vpop.permute.xlu0 %3654
        %3656 = vrot.lane.b32.xlu0 %v724, 32
        %v3657 = vpop.permute.xlu0 %3656
        %v3658 = vsel %vm879, %v3651, 0
        %v3660 = vsel %vm879, %v3653, 0
        %v3662 = vsel %vm879, %v3655, 0
        %v3664 = vsel %vm879, %v3657, 0
        %3666 = vmatpush.xpose.msra.mxu0 0.0
        %3667 = vmatpush.xpose.msra.mxu0 0.0
        %3668 = vmatpush.xpose.msra.mxu0 0.0
        %3669 = vmatpush.xpose.msra.mxu0 0.0
        %3670 = vmatpush.xpose.msra.mxu0 0.0
        %3671 = vmatpush.xpose.msra.mxu0 0.0
        %3672 = vmatpush.xpose.msra.mxu0 0.0
        %3673 = vmatpush.xpose.msra.mxu0 0.0
        %3674 = vmatpush.xpose.msra.mxu0 0.0
        %3675 = vmatpush.xpose.msra.mxu0 0.0
        %3676 = vmatpush.xpose.msra.mxu0 0.0
        %3677 = vmatpush.xpose.msra.mxu0 0.0
        %3678 = vmatpush.xpose.msra.mxu0 0.0
        %3679 = vmatpush.xpose.msra.mxu0 0.0
        %3680 = vmatpush.xpose.msra.mxu0 %v3664
        %3681 = vmatpush.xpose.msra.mxu0 %v3662
        %3682 = vmatmul.f32.gmra.mxu0 %v3658
        %v3683 = vpop.f32.mrf.mxu0
        %v3684 = vadd.f32 0.0, %v3683
        %3685 = vmatmul.f32.gmra.mxu0 %v3660
        %v3686 = vpop.f32.mrf.mxu0
        %v3687 = vadd.f32 0.0, %v3686
        %3688 = vdwg.mxu0
        %3689 = vrot.lane.b32.xlu0 %v662, 32
        %v3690 = vpop.permute.xlu0 %3689
        %3691 = vrot.lane.b32.xlu0 %v665, 32
        %v3692 = vpop.permute.xlu0 %3691
        %3693 = vrot.lane.b32.xlu0 %v727, 32
        %v3694 = vpop.permute.xlu0 %3693
        %3695 = vrot.lane.b32.xlu0 %v730, 32
        %v3696 = vpop.permute.xlu0 %3695
        %v3697 = vsel %vm879, %v3690, 0
        %v3699 = vsel %vm879, %v3692, 0
        %v3701 = vsel %vm879, %v3694, 0
        %v3703 = vsel %vm879, %v3696, 0
        %3705 = vmatpush.xpose.msra.mxu0 0.0
        %3706 = vmatpush.xpose.msra.mxu0 0.0
        %3707 = vmatpush.xpose.msra.mxu0 0.0
        %3708 = vmatpush.xpose.msra.mxu0 0.0
        %3709 = vmatpush.xpose.msra.mxu0 0.0
        %3710 = vmatpush.xpose.msra.mxu0 0.0
        %3711 = vmatpush.xpose.msra.mxu0 0.0
        %3712 = vmatpush.xpose.msra.mxu0 0.0
        %3713 = vmatpush.xpose.msra.mxu0 0.0
        %3714 = vmatpush.xpose.msra.mxu0 0.0
        %3715 = vmatpush.xpose.msra.mxu0 0.0
        %3716 = vmatpush.xpose.msra.mxu0 0.0
        %3717 = vmatpush.xpose.msra.mxu0 0.0
        %3718 = vmatpush.xpose.msra.mxu0 0.0
        %3719 = vmatpush.xpose.msra.mxu0 %v3703
        %3720 = vmatpush.xpose.msra.mxu0 %v3701
        %3721 = vmatmul.f32.gmra.mxu0 %v3697
        %v3722 = vpop.f32.mrf.mxu0
        %v3723 = vadd.f32 0.0, %v3722
        %3724 = vmatmul.f32.gmra.mxu0 %v3699
        %v3725 = vpop.f32.mrf.mxu0
        %v3726 = vadd.f32 0.0, %v3725
        %3727 = vdwg.mxu0
        %3728 = vrot.lane.b32.xlu0 %v668, 32
        %v3729 = vpop.permute.xlu0 %3728
        %3730 = vrot.lane.b32.xlu0 %v671, 32
        %v3731 = vpop.permute.xlu0 %3730
        %3732 = vrot.lane.b32.xlu0 %v733, 32
        %v3733 = vpop.permute.xlu0 %3732
        %3734 = vrot.lane.b32.xlu0 %v736, 32
        %v3735 = vpop.permute.xlu0 %3734
        %v3736 = vsel %vm879, %v3729, 0
        %v3738 = vsel %vm879, %v3731, 0
        %v3740 = vsel %vm879, %v3733, 0
        %v3742 = vsel %vm879, %v3735, 0
        %3744 = vmatpush.xpose.msra.mxu0 0.0
        %3745 = vmatpush.xpose.msra.mxu0 0.0
        %3746 = vmatpush.xpose.msra.mxu0 0.0
        %3747 = vmatpush.xpose.msra.mxu0 0.0
        %3748 = vmatpush.xpose.msra.mxu0 0.0
        %3749 = vmatpush.xpose.msra.mxu0 0.0
        %3750 = vmatpush.xpose.msra.mxu0 0.0
        %3751 = vmatpush.xpose.msra.mxu0 0.0
        %3752 = vmatpush.xpose.msra.mxu0 0.0
        %3753 = vmatpush.xpose.msra.mxu0 0.0
        %3754 = vmatpush.xpose.msra.mxu0 0.0
        %3755 = vmatpush.xpose.msra.mxu0 0.0
        %3756 = vmatpush.xpose.msra.mxu0 0.0
        %3757 = vmatpush.xpose.msra.mxu0 0.0
        %3758 = vmatpush.xpose.msra.mxu0 %v3742
        %3759 = vmatpush.xpose.msra.mxu0 %v3740
        %3760 = vmatmul.f32.gmra.mxu0 %v3736
        %v3761 = vpop.f32.mrf.mxu0
        %v3762 = vadd.f32 0.0, %v3761
        %3763 = vmatmul.f32.gmra.mxu0 %v3738
        %v3764 = vpop.f32.mrf.mxu0
        %v3765 = vadd.f32 0.0, %v3764
        %3766 = vdwg.mxu0
        %3767 = vrot.lane.b32.xlu0 %v674, 32
        %v3768 = vpop.permute.xlu0 %3767
        %3769 = vrot.lane.b32.xlu0 %v677, 32
        %v3770 = vpop.permute.xlu0 %3769
        %3771 = vrot.lane.b32.xlu0 %v739, 32
        %v3772 = vpop.permute.xlu0 %3771
        %3773 = vrot.lane.b32.xlu0 %v742, 32
        %v3774 = vpop.permute.xlu0 %3773
        %v3775 = vsel %vm879, %v3768, 0
        %v3777 = vsel %vm879, %v3770, 0
        %v3779 = vsel %vm879, %v3772, 0
        %v3781 = vsel %vm879, %v3774, 0
        %3783 = vmatpush.xpose.msra.mxu0 0.0
        %3784 = vmatpush.xpose.msra.mxu0 0.0
        %3785 = vmatpush.xpose.msra.mxu0 0.0
        %3786 = vmatpush.xpose.msra.mxu0 0.0
        %3787 = vmatpush.xpose.msra.mxu0 0.0
        %3788 = vmatpush.xpose.msra.mxu0 0.0
        %3789 = vmatpush.xpose.msra.mxu0 0.0
        %3790 = vmatpush.xpose.msra.mxu0 0.0
        %3791 = vmatpush.xpose.msra.mxu0 0.0
        %3792 = vmatpush.xpose.msra.mxu0 0.0
        %3793 = vmatpush.xpose.msra.mxu0 0.0
        %3794 = vmatpush.xpose.msra.mxu0 0.0
        %3795 = vmatpush.xpose.msra.mxu0 0.0
        %3796 = vmatpush.xpose.msra.mxu0 0.0
        %3797 = vmatpush.xpose.msra.mxu0 %v3781
        %3798 = vmatpush.xpose.msra.mxu0 %v3779
        %3799 = vmatmul.f32.gmra.mxu0 %v3775
        %v3800 = vpop.f32.mrf.mxu0
        %v3801 = vadd.f32 0.0, %v3800
        %3802 = vmatmul.f32.gmra.mxu0 %v3777
        %v3803 = vpop.f32.mrf.mxu0
        %v3804 = vadd.f32 0.0, %v3803
        %3805 = vdwg.mxu0
        %3806 = vrot.lane.b32.xlu0 %v680, 32
        %v3807 = vpop.permute.xlu0 %3806
        %3808 = vrot.lane.b32.xlu0 %v683, 32
        %v3809 = vpop.permute.xlu0 %3808
        %3810 = vrot.lane.b32.xlu0 %v745, 32
        %v3811 = vpop.permute.xlu0 %3810
        %3812 = vrot.lane.b32.xlu0 %v748, 32
        %v3813 = vpop.permute.xlu0 %3812
        %v3814 = vsel %vm879, %v3807, 0
        %v3816 = vsel %vm879, %v3809, 0
        %v3818 = vsel %vm879, %v3811, 0
        %v3820 = vsel %vm879, %v3813, 0
        %3822 = vmatpush.xpose.msra.mxu0 0.0
        %3823 = vmatpush.xpose.msra.mxu0 0.0
        %3824 = vmatpush.xpose.msra.mxu0 0.0
        %3825 = vmatpush.xpose.msra.mxu0 0.0
        %3826 = vmatpush.xpose.msra.mxu0 0.0
        %3827 = vmatpush.xpose.msra.mxu0 0.0
        %3828 = vmatpush.xpose.msra.mxu0 0.0
        %3829 = vmatpush.xpose.msra.mxu0 0.0
        %3830 = vmatpush.xpose.msra.mxu0 0.0
        %3831 = vmatpush.xpose.msra.mxu0 0.0
        %3832 = vmatpush.xpose.msra.mxu0 0.0
        %3833 = vmatpush.xpose.msra.mxu0 0.0
        %3834 = vmatpush.xpose.msra.mxu0 0.0
        %3835 = vmatpush.xpose.msra.mxu0 0.0
        %3836 = vmatpush.xpose.msra.mxu0 %v3820
        %3837 = vmatpush.xpose.msra.mxu0 %v3818
        %3838 = vmatmul.f32.gmra.mxu0 %v3814
        %v3839 = vpop.f32.mrf.mxu0
        %v3840 = vadd.f32 0.0, %v3839
        %3841 = vmatmul.f32.gmra.mxu0 %v3816
        %v3842 = vpop.f32.mrf.mxu0
        %v3843 = vadd.f32 0.0, %v3842
        %3844 = vdwg.mxu0
        %3845 = vrot.lane.b32.xlu0 %v686, 32
        %v3846 = vpop.permute.xlu0 %3845
        %3847 = vrot.lane.b32.xlu0 %v689, 32
        %v3848 = vpop.permute.xlu0 %3847
        %3849 = vrot.lane.b32.xlu0 %v751, 32
        %v3850 = vpop.permute.xlu0 %3849
        %3851 = vrot.lane.b32.xlu0 %v754, 32
        %v3852 = vpop.permute.xlu0 %3851
        %v3853 = vsel %vm879, %v3846, 0
        %v3855 = vsel %vm879, %v3848, 0
        %v3857 = vsel %vm879, %v3850, 0
        %v3859 = vsel %vm879, %v3852, 0
        %3861 = vmatpush.xpose.msra.mxu0 0.0
        %3862 = vmatpush.xpose.msra.mxu0 0.0
        %3863 = vmatpush.xpose.msra.mxu0 0.0
        %3864 = vmatpush.xpose.msra.mxu0 0.0
        %3865 = vmatpush.xpose.msra.mxu0 0.0
        %3866 = vmatpush.xpose.msra.mxu0 0.0
        %3867 = vmatpush.xpose.msra.mxu0 0.0
        %3868 = vmatpush.xpose.msra.mxu0 0.0
        %3869 = vmatpush.xpose.msra.mxu0 0.0
        %3870 = vmatpush.xpose.msra.mxu0 0.0
        %3871 = vmatpush.xpose.msra.mxu0 0.0
        %3872 = vmatpush.xpose.msra.mxu0 0.0
        %3873 = vmatpush.xpose.msra.mxu0 0.0
        %3874 = vmatpush.xpose.msra.mxu0 0.0
        %3875 = vmatpush.xpose.msra.mxu0 %v3859
        %3876 = vmatpush.xpose.msra.mxu0 %v3857
        %3877 = vmatmul.f32.gmra.mxu0 %v3853
        %v3878 = vpop.f32.mrf.mxu0
        %v3879 = vadd.f32 0.0, %v3878
        %3880 = vmatmul.f32.gmra.mxu0 %v3855
        %v3881 = vpop.f32.mrf.mxu0
        %v3882 = vadd.f32 0.0, %v3881
        %3883 = vdwg.mxu0
        %v3884 = vmul.f32 %v3606, 0.17677669
        %v3885 = vmul.f32 %v3609, 0.17677669
        %v3886 = vmul.f32 %v3645, 0.17677669
        %v3887 = vmul.f32 %v3648, 0.17677669
        %v3888 = vmul.f32 %v3684, 0.17677669
        %v3889 = vmul.f32 %v3687, 0.17677669
        %v3890 = vmul.f32 %v3723, 0.17677669
        %v3891 = vmul.f32 %v3726, 0.17677669
        %v3892 = vmul.f32 %v3762, 0.17677669
        %v3893 = vmul.f32 %v3765, 0.17677669
        %v3894 = vmul.f32 %v3801, 0.17677669
        %v3895 = vmul.f32 %v3804, 0.17677669
        %v3896 = vmul.f32 %v3840, 0.17677669
        %v3897 = vmul.f32 %v3843, 0.17677669
        %v3898 = vmul.f32 %v3879, 0.17677669
        %v3899 = vmul.f32 %v3882, 0.17677669
        %v3900 = vadd.f32 %v3884, %v827
        %v3901 = vadd.f32 %v3885, %v827
        %v3902 = vadd.f32 %v3886, %v832
        %v3903 = vadd.f32 %v3887, %v832
        %v3904 = vadd.f32 %v3888, %v837
        %v3905 = vadd.f32 %v3889, %v837
        %v3906 = vadd.f32 %v3890, %v842
        %v3907 = vadd.f32 %v3891, %v842
        %v3908 = vadd.f32 %v3892, %v847
        %v3909 = vadd.f32 %v3893, %v847
        %v3910 = vadd.f32 %v3894, %v852
        %v3911 = vadd.f32 %v3895, %v852
        %v3912 = vadd.f32 %v3896, %v857
        %v3913 = vadd.f32 %v3897, %v857
        %v3914 = vadd.f32 %v3898, %v862
        %v3915 = vadd.f32 %v3899, %v862
        %v3916 = vsel %vm1192, %v3900, -inf
        %3917 = vmax.xlane.f32.xlu0 %v3916
        %v3918 = vpop.xlane.xlu0 %3917
        %v3919 = vsel %vm1192, %v3901, -inf
        %3920 = vmax.xlane.f32.xlu0 %v3919
        %v3921 = vpop.xlane.xlu0 %3920
        %v3922 = vsel %vm1192, %v3902, -inf
        %3923 = vmax.xlane.f32.xlu0 %v3922
        %v3924 = vpop.xlane.xlu0 %3923
        %v3925 = vsel %vm1192, %v3903, -inf
        %3926 = vmax.xlane.f32.xlu0 %v3925
        %v3927 = vpop.xlane.xlu0 %3926
        %v3928 = vsel %vm1192, %v3904, -inf
        %3929 = vmax.xlane.f32.xlu0 %v3928
        %v3930 = vpop.xlane.xlu0 %3929
        %v3931 = vsel %vm1192, %v3905, -inf
        %3932 = vmax.xlane.f32.xlu0 %v3931
        %v3933 = vpop.xlane.xlu0 %3932
        %v3934 = vsel %vm1192, %v3906, -inf
        %3935 = vmax.xlane.f32.xlu0 %v3934
        %v3936 = vpop.xlane.xlu0 %3935
        %v3937 = vsel %vm1192, %v3907, -inf
        %3938 = vmax.xlane.f32.xlu0 %v3937
        %v3939 = vpop.xlane.xlu0 %3938
        %v3940 = vsel %vm1192, %v3908, -inf
        %3941 = vmax.xlane.f32.xlu0 %v3940
        %v3942 = vpop.xlane.xlu0 %3941
        %v3943 = vsel %vm1192, %v3909, -inf
        %3944 = vmax.xlane.f32.xlu0 %v3943
        %v3945 = vpop.xlane.xlu0 %3944
        %v3946 = vsel %vm1192, %v3910, -inf
        %3947 = vmax.xlane.f32.xlu0 %v3946
        %v3948 = vpop.xlane.xlu0 %3947
        %v3949 = vsel %vm1192, %v3911, -inf
        %3950 = vmax.xlane.f32.xlu0 %v3949
        %v3951 = vpop.xlane.xlu0 %3950
        %v3952 = vsel %vm1192, %v3912, -inf
        %3953 = vmax.xlane.f32.xlu0 %v3952
        %v3954 = vpop.xlane.xlu0 %3953
        %v3955 = vsel %vm1192, %v3913, -inf
        %3956 = vmax.xlane.f32.xlu0 %v3955
        %v3957 = vpop.xlane.xlu0 %3956
        %v3958 = vsel %vm1192, %v3914, -inf
        %3959 = vmax.xlane.f32.xlu0 %v3958
        %v3960 = vpop.xlane.xlu0 %3959
        %v3961 = vsel %vm1192, %v3915, -inf
        %3962 = vmax.xlane.f32.xlu0 %v3961
        %v3963 = vpop.xlane.xlu0 %3962
        %v3964 = vsub.f32 %v3900, %v3918
        %v3965 = vsub.f32 %v3901, %v3921
        %v3966 = vsub.f32 %v3902, %v3924
        %v3967 = vsub.f32 %v3903, %v3927
        %v3968 = vsub.f32 %v3904, %v3930
        %v3969 = vsub.f32 %v3905, %v3933
        %v3970 = vsub.f32 %v3906, %v3936
        %v3971 = vsub.f32 %v3907, %v3939
        %v3972 = vsub.f32 %v3908, %v3942
        %v3973 = vsub.f32 %v3909, %v3945
        %v3974 = vsub.f32 %v3910, %v3948
        %v3975 = vsub.f32 %v3911, %v3951
        %v3976 = vsub.f32 %v3912, %v3954
        %v3977 = vsub.f32 %v3913, %v3957
        %v3978 = vsub.f32 %v3914, %v3960
        %v3979 = vsub.f32 %v3915, %v3963
        %v3980 = vmul.f32 %v3964, 1.442695
        %v3981 = vpow.pop %v3980
        %v3982 = vmul.f32 %v3965, 1.442695
        %v3983 = vpow.pop %v3982
        %v3984 = vmul.f32 %v3966, 1.442695
        %v3985 = vpow.pop %v3984
        %v3986 = vmul.f32 %v3967, 1.442695
        %v3987 = vpow.pop %v3986
        %v3988 = vmul.f32 %v3968, 1.442695
        %v3989 = vpow.pop %v3988
        %v3990 = vmul.f32 %v3969, 1.442695
        %v3991 = vpow.pop %v3990
        %v3992 = vmul.f32 %v3970, 1.442695
        %v3993 = vpow.pop %v3992
        %v3994 = vmul.f32 %v3971, 1.442695
        %v3995 = vpow.pop %v3994
        %v3996 = vmul.f32 %v3972, 1.442695
        %v3997 = vpow.pop %v3996
        %v3998 = vmul.f32 %v3973, 1.442695
        %v3999 = vpow.pop %v3998
        %v4000 = vmul.f32 %v3974, 1.442695
        %v4001 = vpow.pop %v4000
        %v4002 = vmul.f32 %v3975, 1.442695
        %v4003 = vpow.pop %v4002
        %v4004 = vmul.f32 %v3976, 1.442695
        %v4005 = vpow.pop %v4004
        %v4006 = vmul.f32 %v3977, 1.442695
        %v4007 = vpow.pop %v4006
        %v4008 = vmul.f32 %v3978, 1.442695
        %v4009 = vpow.pop %v4008
        %v4010 = vmul.f32 %v3979, 1.442695
        %v4011 = vpow.pop %v4010
        %v4012 = vsel %vm1192, %v3981, 0.0
        %4013 = vadd.xlane.f32.xlu0 %v4012
        %v4014 = vpop.xlane.xlu0 %4013
        %v4015 = vsel %vm1192, %v3983, 0.0
        %4016 = vadd.xlane.f32.xlu0 %v4015
        %v4017 = vpop.xlane.xlu0 %4016
        %v4018 = vsel %vm1192, %v3985, 0.0
        %4019 = vadd.xlane.f32.xlu0 %v4018
        %v4020 = vpop.xlane.xlu0 %4019
        %v4021 = vsel %vm1192, %v3987, 0.0
        %4022 = vadd.xlane.f32.xlu0 %v4021
        %v4023 = vpop.xlane.xlu0 %4022
        %v4024 = vsel %vm1192, %v3989, 0.0
        %4025 = vadd.xlane.f32.xlu0 %v4024
        %v4026 = vpop.xlane.xlu0 %4025
        %v4027 = vsel %vm1192, %v3991, 0.0
        %4028 = vadd.xlane.f32.xlu0 %v4027
        %v4029 = vpop.xlane.xlu0 %4028
        %v4030 = vsel %vm1192, %v3993, 0.0
        %4031 = vadd.xlane.f32.xlu0 %v4030
        %v4032 = vpop.xlane.xlu0 %4031
        %v4033 = vsel %vm1192, %v3995, 0.0
        %4034 = vadd.xlane.f32.xlu0 %v4033
        %v4035 = vpop.xlane.xlu0 %4034
        %v4036 = vsel %vm1192, %v3997, 0.0
        %4037 = vadd.xlane.f32.xlu0 %v4036
        %v4038 = vpop.xlane.xlu0 %4037
        %v4039 = vsel %vm1192, %v3999, 0.0
        %4040 = vadd.xlane.f32.xlu0 %v4039
        %v4041 = vpop.xlane.xlu0 %4040
        %v4042 = vsel %vm1192, %v4001, 0.0
        %4043 = vadd.xlane.f32.xlu0 %v4042
        %v4044 = vpop.xlane.xlu0 %4043
        %v4045 = vsel %vm1192, %v4003, 0.0
        %4046 = vadd.xlane.f32.xlu0 %v4045
        %v4047 = vpop.xlane.xlu0 %4046
        %v4048 = vsel %vm1192, %v4005, 0.0
        %4049 = vadd.xlane.f32.xlu0 %v4048
        %v4050 = vpop.xlane.xlu0 %4049
        %v4051 = vsel %vm1192, %v4007, 0.0
        %4052 = vadd.xlane.f32.xlu0 %v4051
        %v4053 = vpop.xlane.xlu0 %4052
        %v4054 = vsel %vm1192, %v4009, 0.0
        %4055 = vadd.xlane.f32.xlu0 %v4054
        %v4056 = vpop.xlane.xlu0 %4055
        %v4057 = vsel %vm1192, %v4011, 0.0
        %4058 = vadd.xlane.f32.xlu0 %v4057
        %v4059 = vpop.xlane.xlu0 %4058
        %v4060 = vrcp.pop %v4014
        %v4061 = vrcp.pop %v4017
        %v4062 = vrcp.pop %v4020
        %v4063 = vrcp.pop %v4023
        %v4064 = vrcp.pop %v4026
        %v4065 = vrcp.pop %v4029
        %v4066 = vrcp.pop %v4032
        %v4067 = vrcp.pop %v4035
        %v4068 = vrcp.pop %v4038
        %v4069 = vrcp.pop %v4041
        %v4070 = vrcp.pop %v4044
        %v4071 = vrcp.pop %v4047
        %v4072 = vrcp.pop %v4050
        %v4073 = vrcp.pop %v4053
        %v4074 = vrcp.pop %v4056
        %v4075 = vrcp.pop %v4059
        %v4076 = vmul.f32 %v3981, %v4060
        %v4077 = vmul.f32 %v3983, %v4061
        %v4078 = vmul.f32 %v3985, %v4062
        %v4079 = vmul.f32 %v3987, %v4063
        %v4080 = vmul.f32 %v3989, %v4064
        %v4081 = vmul.f32 %v3991, %v4065
        %v4082 = vmul.f32 %v3993, %v4066
        %v4083 = vmul.f32 %v3995, %v4067
        %v4084 = vmul.f32 %v3997, %v4068
        %v4085 = vmul.f32 %v3999, %v4069
        %v4086 = vmul.f32 %v4001, %v4070
        %v4087 = vmul.f32 %v4003, %v4071
        %v4088 = vmul.f32 %v4005, %v4072
        %v4089 = vmul.f32 %v4007, %v4073
        %v4090 = vmul.f32 %v4009, %v4074
        %v4091 = vmul.f32 %v4011, %v4075
        %4092 = vrot.lane.b32.xlu0 %v774, 32
        %v4093 = vpop.permute.xlu0 %4092
        %4094 = vrot.lane.b32.xlu0 %v777, 32
        %v4095 = vpop.permute.xlu0 %4094
        %v4099 = vsel %vm1192, %v4076, 0
        %v4102 = vsel %vm1192, %v4077, 0
        %4104 = vmatpush.msra.mxu0 0.0
        %4105 = vmatpush.msra.mxu0 0.0
        %4106 = vmatpush.msra.mxu0 0.0
        %4107 = vmatpush.msra.mxu0 0.0
        %4108 = vmatpush.msra.mxu0 0.0
        %4109 = vmatpush.msra.mxu0 0.0
        %4110 = vmatpush.msra.mxu0 0.0
        %4111 = vmatpush.msra.mxu0 0.0
        %4112 = vmatpush.msra.mxu0 0.0
        %4113 = vmatpush.msra.mxu0 0.0
        %4114 = vmatpush.msra.mxu0 0.0
        %4115 = vmatpush.msra.mxu0 0.0
        %4116 = vmatpush.msra.mxu0 0.0
        %4117 = vmatpush.msra.mxu0 0.0
        %4118 = vmatpush.msra.mxu0 %v4095
        %4119 = vmatpush.msra.mxu0 %v4093
        %4120 = vmatmul.f32.gmra.mxu0 %v4099
        %v4121 = vpop.f32.mrf.mxu0
        %v4122 = vadd.f32 0.0, %v4121
        %4123 = vmatmul.f32.gmra.mxu0 %v4102
        %v4124 = vpop.f32.mrf.mxu0
        %v4125 = vadd.f32 0.0, %v4124
        %4126 = vdwg.mxu0
        %4127 = vrot.lane.b32.xlu0 %v780, 32
        %v4128 = vpop.permute.xlu0 %4127
        %4129 = vrot.lane.b32.xlu0 %v783, 32
        %v4130 = vpop.permute.xlu0 %4129
        %v4134 = vsel %vm1192, %v4078, 0
        %v4137 = vsel %vm1192, %v4079, 0
        %4139 = vmatpush.msra.mxu0 0.0
        %4140 = vmatpush.msra.mxu0 0.0
        %4141 = vmatpush.msra.mxu0 0.0
        %4142 = vmatpush.msra.mxu0 0.0
        %4143 = vmatpush.msra.mxu0 0.0
        %4144 = vmatpush.msra.mxu0 0.0
        %4145 = vmatpush.msra.mxu0 0.0
        %4146 = vmatpush.msra.mxu0 0.0
        %4147 = vmatpush.msra.mxu0 0.0
        %4148 = vmatpush.msra.mxu0 0.0
        %4149 = vmatpush.msra.mxu0 0.0
        %4150 = vmatpush.msra.mxu0 0.0
        %4151 = vmatpush.msra.mxu0 0.0
        %4152 = vmatpush.msra.mxu0 0.0
        %4153 = vmatpush.msra.mxu0 %v4130
        %4154 = vmatpush.msra.mxu0 %v4128
        %4155 = vmatmul.f32.gmra.mxu0 %v4134
        %v4156 = vpop.f32.mrf.mxu0
        %v4157 = vadd.f32 0.0, %v4156
        %4158 = vmatmul.f32.gmra.mxu0 %v4137
        %v4159 = vpop.f32.mrf.mxu0
        %v4160 = vadd.f32 0.0, %v4159
        %4161 = vdwg.mxu0
        %4162 = vrot.lane.b32.xlu0 %v786, 32
        %v4163 = vpop.permute.xlu0 %4162
        %4164 = vrot.lane.b32.xlu0 %v789, 32
        %v4165 = vpop.permute.xlu0 %4164
        %v4169 = vsel %vm1192, %v4080, 0
        %v4172 = vsel %vm1192, %v4081, 0
        %4174 = vmatpush.msra.mxu0 0.0
        %4175 = vmatpush.msra.mxu0 0.0
        %4176 = vmatpush.msra.mxu0 0.0
        %4177 = vmatpush.msra.mxu0 0.0
        %4178 = vmatpush.msra.mxu0 0.0
        %4179 = vmatpush.msra.mxu0 0.0
        %4180 = vmatpush.msra.mxu0 0.0
        %4181 = vmatpush.msra.mxu0 0.0
        %4182 = vmatpush.msra.mxu0 0.0
        %4183 = vmatpush.msra.mxu0 0.0
        %4184 = vmatpush.msra.mxu0 0.0
        %4185 = vmatpush.msra.mxu0 0.0
        %4186 = vmatpush.msra.mxu0 0.0
        %4187 = vmatpush.msra.mxu0 0.0
        %4188 = vmatpush.msra.mxu0 %v4165
        %4189 = vmatpush.msra.mxu0 %v4163
        %4190 = vmatmul.f32.gmra.mxu0 %v4169
        %v4191 = vpop.f32.mrf.mxu0
        %v4192 = vadd.f32 0.0, %v4191
        %4193 = vmatmul.f32.gmra.mxu0 %v4172
        %v4194 = vpop.f32.mrf.mxu0
        %v4195 = vadd.f32 0.0, %v4194
        %4196 = vdwg.mxu0
        %4197 = vrot.lane.b32.xlu0 %v792, 32
        %v4198 = vpop.permute.xlu0 %4197
        %4199 = vrot.lane.b32.xlu0 %v795, 32
        %v4200 = vpop.permute.xlu0 %4199
        %v4204 = vsel %vm1192, %v4082, 0
        %v4207 = vsel %vm1192, %v4083, 0
        %4209 = vmatpush.msra.mxu0 0.0
        %4210 = vmatpush.msra.mxu0 0.0
        %4211 = vmatpush.msra.mxu0 0.0
        %4212 = vmatpush.msra.mxu0 0.0
        %4213 = vmatpush.msra.mxu0 0.0
        %4214 = vmatpush.msra.mxu0 0.0
        %4215 = vmatpush.msra.mxu0 0.0
        %4216 = vmatpush.msra.mxu0 0.0
        %4217 = vmatpush.msra.mxu0 0.0
        %4218 = vmatpush.msra.mxu0 0.0
        %4219 = vmatpush.msra.mxu0 0.0
        %4220 = vmatpush.msra.mxu0 0.0
        %4221 = vmatpush.msra.mxu0 0.0
        %4222 = vmatpush.msra.mxu0 0.0
        %4223 = vmatpush.msra.mxu0 %v4200
        %4224 = vmatpush.msra.mxu0 %v4198
        %4225 = vmatmul.f32.gmra.mxu0 %v4204
        %v4226 = vpop.f32.mrf.mxu0
        %v4227 = vadd.f32 0.0, %v4226
        %4228 = vmatmul.f32.gmra.mxu0 %v4207
        %v4229 = vpop.f32.mrf.mxu0
        %v4230 = vadd.f32 0.0, %v4229
        %4231 = vdwg.mxu0
        %4232 = vrot.lane.b32.xlu0 %v798, 32
        %v4233 = vpop.permute.xlu0 %4232
        %4234 = vrot.lane.b32.xlu0 %v801, 32
        %v4235 = vpop.permute.xlu0 %4234
        %v4239 = vsel %vm1192, %v4084, 0
        %v4242 = vsel %vm1192, %v4085, 0
        %4244 = vmatpush.msra.mxu0 0.0
        %4245 = vmatpush.msra.mxu0 0.0
        %4246 = vmatpush.msra.mxu0 0.0
        %4247 = vmatpush.msra.mxu0 0.0
        %4248 = vmatpush.msra.mxu0 0.0
        %4249 = vmatpush.msra.mxu0 0.0
        %4250 = vmatpush.msra.mxu0 0.0
        %4251 = vmatpush.msra.mxu0 0.0
        %4252 = vmatpush.msra.mxu0 0.0
        %4253 = vmatpush.msra.mxu0 0.0
        %4254 = vmatpush.msra.mxu0 0.0
        %4255 = vmatpush.msra.mxu0 0.0
        %4256 = vmatpush.msra.mxu0 0.0
        %4257 = vmatpush.msra.mxu0 0.0
        %4258 = vmatpush.msra.mxu0 %v4235
        %4259 = vmatpush.msra.mxu0 %v4233
        %4260 = vmatmul.f32.gmra.mxu0 %v4239
        %v4261 = vpop.f32.mrf.mxu0
        %v4262 = vadd.f32 0.0, %v4261
        %4263 = vmatmul.f32.gmra.mxu0 %v4242
        %v4264 = vpop.f32.mrf.mxu0
        %v4265 = vadd.f32 0.0, %v4264
        %4266 = vdwg.mxu0
        %4267 = vrot.lane.b32.xlu0 %v804, 32
        %v4268 = vpop.permute.xlu0 %4267
        %4269 = vrot.lane.b32.xlu0 %v807, 32
        %v4270 = vpop.permute.xlu0 %4269
        %v4274 = vsel %vm1192, %v4086, 0
        %v4277 = vsel %vm1192, %v4087, 0
        %4279 = vmatpush.msra.mxu0 0.0
        %4280 = vmatpush.msra.mxu0 0.0
        %4281 = vmatpush.msra.mxu0 0.0
        %4282 = vmatpush.msra.mxu0 0.0
        %4283 = vmatpush.msra.mxu0 0.0
        %4284 = vmatpush.msra.mxu0 0.0
        %4285 = vmatpush.msra.mxu0 0.0
        %4286 = vmatpush.msra.mxu0 0.0
        %4287 = vmatpush.msra.mxu0 0.0
        %4288 = vmatpush.msra.mxu0 0.0
        %4289 = vmatpush.msra.mxu0 0.0
        %4290 = vmatpush.msra.mxu0 0.0
        %4291 = vmatpush.msra.mxu0 0.0
        %4292 = vmatpush.msra.mxu0 0.0
        %4293 = vmatpush.msra.mxu0 %v4270
        %4294 = vmatpush.msra.mxu0 %v4268
        %4295 = vmatmul.f32.gmra.mxu0 %v4274
        %v4296 = vpop.f32.mrf.mxu0
        %v4297 = vadd.f32 0.0, %v4296
        %4298 = vmatmul.f32.gmra.mxu0 %v4277
        %v4299 = vpop.f32.mrf.mxu0
        %v4300 = vadd.f32 0.0, %v4299
        %4301 = vdwg.mxu0
        %4302 = vrot.lane.b32.xlu0 %v810, 32
        %v4303 = vpop.permute.xlu0 %4302
        %4304 = vrot.lane.b32.xlu0 %v813, 32
        %v4305 = vpop.permute.xlu0 %4304
        %v4309 = vsel %vm1192, %v4088, 0
        %v4312 = vsel %vm1192, %v4089, 0
        %4314 = vmatpush.msra.mxu0 0.0
        %4315 = vmatpush.msra.mxu0 0.0
        %4316 = vmatpush.msra.mxu0 0.0
        %4317 = vmatpush.msra.mxu0 0.0
        %4318 = vmatpush.msra.mxu0 0.0
        %4319 = vmatpush.msra.mxu0 0.0
        %4320 = vmatpush.msra.mxu0 0.0
        %4321 = vmatpush.msra.mxu0 0.0
        %4322 = vmatpush.msra.mxu0 0.0
        %4323 = vmatpush.msra.mxu0 0.0
        %4324 = vmatpush.msra.mxu0 0.0
        %4325 = vmatpush.msra.mxu0 0.0
        %4326 = vmatpush.msra.mxu0 0.0
        %4327 = vmatpush.msra.mxu0 0.0
        %4328 = vmatpush.msra.mxu0 %v4305
        %4329 = vmatpush.msra.mxu0 %v4303
        %4330 = vmatmul.f32.gmra.mxu0 %v4309
        %v4331 = vpop.f32.mrf.mxu0
        %v4332 = vadd.f32 0.0, %v4331
        %4333 = vmatmul.f32.gmra.mxu0 %v4312
        %v4334 = vpop.f32.mrf.mxu0
        %v4335 = vadd.f32 0.0, %v4334
        %4336 = vdwg.mxu0
        %4337 = vrot.lane.b32.xlu0 %v816, 32
        %v4338 = vpop.permute.xlu0 %4337
        %4339 = vrot.lane.b32.xlu0 %v819, 32
        %v4340 = vpop.permute.xlu0 %4339
        %v4344 = vsel %vm1192, %v4090, 0
        %v4347 = vsel %vm1192, %v4091, 0
        %4349 = vmatpush.msra.mxu0 0.0
        %4350 = vmatpush.msra.mxu0 0.0
        %4351 = vmatpush.msra.mxu0 0.0
        %4352 = vmatpush.msra.mxu0 0.0
        %4353 = vmatpush.msra.mxu0 0.0
        %4354 = vmatpush.msra.mxu0 0.0
        %4355 = vmatpush.msra.mxu0 0.0
        %4356 = vmatpush.msra.mxu0 0.0
        %4357 = vmatpush.msra.mxu0 0.0
        %4358 = vmatpush.msra.mxu0 0.0
        %4359 = vmatpush.msra.mxu0 0.0
        %4360 = vmatpush.msra.mxu0 0.0
        %4361 = vmatpush.msra.mxu0 0.0
        %4362 = vmatpush.msra.mxu0 0.0
        %4363 = vmatpush.msra.mxu0 %v4340
        %4364 = vmatpush.msra.mxu0 %v4338
        %4365 = vmatmul.f32.gmra.mxu0 %v4344
        %v4366 = vpop.f32.mrf.mxu0
        %v4367 = vadd.f32 0.0, %v4366
        %4368 = vmatmul.f32.gmra.mxu0 %v4347
        %v4369 = vpop.f32.mrf.mxu0
        %v4370 = vadd.f32 0.0, %v4369
        %4371 = vdwg.mxu0
        %v4373 = vsel %vm879, %v4122, 0
        %v4376 = vsel %vm879, %v4125, 0
        %v4379 = vsel %vm879, %v4157, 0
        %v4382 = vsel %vm879, %v4160, 0
        %v4385 = vsel %vm879, %v4192, 0
        %v4388 = vsel %vm879, %v4195, 0
        %v4391 = vsel %vm879, %v4227, 0
        %v4394 = vsel %vm879, %v4230, 0
        %v4397 = vsel %vm879, %v4262, 0
        %v4400 = vsel %vm879, %v4265, 0
        %v4403 = vsel %vm879, %v4297, 0
        %v4406 = vsel %vm879, %v4300, 0
        %v4409 = vsel %vm879, %v4332, 0
        %v4412 = vsel %vm879, %v4335, 0
        %v4415 = vsel %vm879, %v4367, 0
        %v4418 = vsel %vm879, %v4370, 0
        %4420 = vmatpush.msra.mxu0 0.0
        %4421 = vmatpush.msra.mxu0 0.0
        %4422 = vmatpush.msra.mxu0 0.0
        %4423 = vmatpush.msra.mxu0 0.0
        %4424 = vmatpush.msra.mxu0 0.0
        %4425 = vmatpush.msra.mxu0 0.0
        %4426 = vmatpush.msra.mxu0 0.0
        %4427 = vmatpush.msra.mxu0 0.0
        %4428 = vmatpush.msra.mxu0 0.0
        %4429 = vmatpush.msra.mxu0 0.0
        %4430 = vmatpush.msra.mxu0 0.0
        %4431 = vmatpush.msra.mxu0 0.0
        %4432 = vmatpush.msra.mxu0 %v878
        %4433 = vmatpush.msra.mxu0 %v877
        %4434 = vmatpush.msra.mxu0 %v876
        %4435 = vmatpush.msra.mxu0 %v875
        %4436 = vmatmul.f32.gmra.mxu0 %v4373
        %v4437 = vpop.f32.mrf.mxu0
        %v4438 = vadd.f32 0.0, %v4437
        %4439 = vmatmul.f32.gmra.mxu0 %v4376
        %v4440 = vpop.f32.mrf.mxu0
        %v4441 = vadd.f32 0.0, %v4440
        %4442 = vmatmul.f32.gmra.mxu0 %v4379
        %v4443 = vpop.f32.mrf.mxu0
        %v4444 = vadd.f32 0.0, %v4443
        %4445 = vmatmul.f32.gmra.mxu0 %v4382
        %v4446 = vpop.f32.mrf.mxu0
        %v4447 = vadd.f32 0.0, %v4446
        %4448 = vmatmul.f32.gmra.mxu0 %v4385
        %v4449 = vpop.f32.mrf.mxu0
        %v4450 = vadd.f32 0.0, %v4449
        %4451 = vmatmul.f32.gmra.mxu0 %v4388
        %v4452 = vpop.f32.mrf.mxu0
        %v4453 = vadd.f32 0.0, %v4452
        %4454 = vmatmul.f32.gmra.mxu0 %v4391
        %v4455 = vpop.f32.mrf.mxu0
        %v4456 = vadd.f32 0.0, %v4455
        %4457 = vmatmul.f32.gmra.mxu0 %v4394
        %v4458 = vpop.f32.mrf.mxu0
        %v4459 = vadd.f32 0.0, %v4458
        %4460 = vmatmul.f32.gmra.mxu0 %v4397
        %v4461 = vpop.f32.mrf.mxu0
        %v4462 = vadd.f32 0.0, %v4461
        %4463 = vmatmul.f32.gmra.mxu0 %v4400
        %v4464 = vpop.f32.mrf.mxu0
        %v4465 = vadd.f32 0.0, %v4464
        %4466 = vmatmul.f32.gmra.mxu0 %v4403
        %v4467 = vpop.f32.mrf.mxu0
        %v4468 = vadd.f32 0.0, %v4467
        %4469 = vmatmul.f32.gmra.mxu0 %v4406
        %v4470 = vpop.f32.mrf.mxu0
        %v4471 = vadd.f32 0.0, %v4470
        %4472 = vmatmul.f32.gmra.mxu0 %v4409
        %v4473 = vpop.f32.mrf.mxu0
        %v4474 = vadd.f32 0.0, %v4473
        %4475 = vmatmul.f32.gmra.mxu0 %v4412
        %v4476 = vpop.f32.mrf.mxu0
        %v4477 = vadd.f32 0.0, %v4476
        %4478 = vmatmul.f32.gmra.mxu0 %v4415
        %v4479 = vpop.f32.mrf.mxu0
        %v4480 = vadd.f32 0.0, %v4479
        %4481 = vmatmul.f32.gmra.mxu0 %v4418
        %v4482 = vpop.f32.mrf.mxu0
        %v4483 = vadd.f32 0.0, %v4482
        %4484 = vdwg.mxu0
        %v4485 = vadd.f32 %v3556, %v4438
        %v4486 = vadd.f32 %v3557, %v4441
        %v4487 = vadd.f32 %v3558, %v4444
        %v4488 = vadd.f32 %v3559, %v4447
        %v4489 = vadd.f32 %v3560, %v4450
        %v4490 = vadd.f32 %v3561, %v4453
        %v4491 = vadd.f32 %v3562, %v4456
        %v4492 = vadd.f32 %v3563, %v4459
        %v4493 = vadd.f32 %v3564, %v4462
        %v4494 = vadd.f32 %v3565, %v4465
        %v4495 = vadd.f32 %v3566, %v4468
        %v4496 = vadd.f32 %v3567, %v4471
        %v4497 = vadd.f32 %v3568, %v4474
        %v4498 = vadd.f32 %v3569, %v4477
        %v4499 = vadd.f32 %v3570, %v4480
        %v4500 = vadd.f32 %v3571, %v4483
        %v4501 = vld [vmem:[%s5] sm:$0x1]
        %v4503 = vperm.slane %v4501, 0
        %v4505 = vadd.f32 %v4485, %v4503
        %v4506 = vadd.f32 %v4486, %v4503
        %v4507 = vadd.f32 %v4487, %v4503
        %v4508 = vadd.f32 %v4488, %v4503
        %v4509 = vadd.f32 %v4489, %v4503
        %v4510 = vadd.f32 %v4490, %v4503
        %v4511 = vadd.f32 %v4491, %v4503
        %v4512 = vadd.f32 %v4492, %v4503
        %v4513 = vadd.f32 %v4493, %v4503
        %v4514 = vadd.f32 %v4494, %v4503
        %v4515 = vadd.f32 %v4495, %v4503
        %v4516 = vadd.f32 %v4496, %v4503
        %v4517 = vadd.f32 %v4497, %v4503
        %v4518 = vadd.f32 %v4498, %v4503
        %v4519 = vadd.f32 %v4499, %v4503
        %v4520 = vadd.f32 %v4500, %v4503
        %v4521 = vadd.f32 %v4505, %v554
        %v4522 = vadd.f32 %v4506, %v555
        %v4523 = vadd.f32 %v4507, %v556
        %v4524 = vadd.f32 %v4508, %v557
        %v4525 = vadd.f32 %v4509, %v558
        %v4526 = vadd.f32 %v4510, %v559
        %v4527 = vadd.f32 %v4511, %v560
        %v4528 = vadd.f32 %v4512, %v561
        %v4529 = vadd.f32 %v4513, %v562
        %v4530 = vadd.f32 %v4514, %v563
        %v4531 = vadd.f32 %v4515, %v564
        %v4532 = vadd.f32 %v4516, %v565
        %v4533 = vadd.f32 %v4517, %v566
        %v4534 = vadd.f32 %v4518, %v567
        %v4535 = vadd.f32 %v4519, %v568
        %v4536 = vadd.f32 %v4520, %v569
        %v4537 = vld [vmem:[%s6] sm:$0x1]
        %v4538 = vld [vmem:[%s7] sm:$0x1]
        %4539 = vadd.xlane.f32.xlu0 %v4521
        %v4540 = vpop.xlane.xlu0 %4539
        %4541 = vadd.xlane.f32.xlu0 %v4522
        %v4542 = vpop.xlane.xlu0 %4541
        %4543 = vadd.xlane.f32.xlu0 %v4523
        %v4544 = vpop.xlane.xlu0 %4543
        %4545 = vadd.xlane.f32.xlu0 %v4524
        %v4546 = vpop.xlane.xlu0 %4545
        %4547 = vadd.xlane.f32.xlu0 %v4525
        %v4548 = vpop.xlane.xlu0 %4547
        %4549 = vadd.xlane.f32.xlu0 %v4526
        %v4550 = vpop.xlane.xlu0 %4549
        %4551 = vadd.xlane.f32.xlu0 %v4527
        %v4552 = vpop.xlane.xlu0 %4551
        %4553 = vadd.xlane.f32.xlu0 %v4528
        %v4554 = vpop.xlane.xlu0 %4553
        %4555 = vadd.xlane.f32.xlu0 %v4529
        %v4556 = vpop.xlane.xlu0 %4555
        %4557 = vadd.xlane.f32.xlu0 %v4530
        %v4558 = vpop.xlane.xlu0 %4557
        %4559 = vadd.xlane.f32.xlu0 %v4531
        %v4560 = vpop.xlane.xlu0 %4559
        %4561 = vadd.xlane.f32.xlu0 %v4532
        %v4562 = vpop.xlane.xlu0 %4561
        %4563 = vadd.xlane.f32.xlu0 %v4533
        %v4564 = vpop.xlane.xlu0 %4563
        %4565 = vadd.xlane.f32.xlu0 %v4534
        %v4566 = vpop.xlane.xlu0 %4565
        %4567 = vadd.xlane.f32.xlu0 %v4535
        %v4568 = vpop.xlane.xlu0 %4567
        %4569 = vadd.xlane.f32.xlu0 %v4536
        %v4570 = vpop.xlane.xlu0 %4569
        %v4571 = vrcp.pop 128.0
        %v4572 = vmul.f32 128.0, %v4571
        %v4573 = vsub.f32 1.0, %v4572
        %v4574 = vmul.f32 %v4571, %v4573
        %v4575 = vadd.f32 %v4571, %v4574
        %vm4576 = vweird.f32 %v4571
        %v4577 = vsel %vm4576, %v4571, %v4575
        %v4578 = vmul.f32 %v4540, %v4577
        %v4579 = vmul.f32 %v4542, %v4577
        %v4580 = vmul.f32 %v4544, %v4577
        %v4581 = vmul.f32 %v4546, %v4577
        %v4582 = vmul.f32 %v4548, %v4577
        %v4583 = vmul.f32 %v4550, %v4577
        %v4584 = vmul.f32 %v4552, %v4577
        %v4585 = vmul.f32 %v4554, %v4577
        %v4586 = vmul.f32 %v4556, %v4577
        %v4587 = vmul.f32 %v4558, %v4577
        %v4588 = vmul.f32 %v4560, %v4577
        %v4589 = vmul.f32 %v4562, %v4577
        %v4590 = vmul.f32 %v4564, %v4577
        %v4591 = vmul.f32 %v4566, %v4577
        %v4592 = vmul.f32 %v4568, %v4577
        %v4593 = vmul.f32 %v4570, %v4577
        %v4594 = vsub.f32 %v4521, %v4578
        %v4595 = vsub.f32 %v4522, %v4579
        %v4596 = vsub.f32 %v4523, %v4580
        %v4597 = vsub.f32 %v4524, %v4581
        %v4598 = vsub.f32 %v4525, %v4582
        %v4599 = vsub.f32 %v4526, %v4583
        %v4600 = vsub.f32 %v4527, %v4584
        %v4601 = vsub.f32 %v4528, %v4585
        %v4602 = vsub.f32 %v4529, %v4586
        %v4603 = vsub.f32 %v4530, %v4587
        %v4604 = vsub.f32 %v4531, %v4588
        %v4605 = vsub.f32 %v4532, %v4589
        %v4606 = vsub.f32 %v4533, %v4590
        %v4607 = vsub.f32 %v4534, %v4591
        %v4608 = vsub.f32 %v4535, %v4592
        %v4609 = vsub.f32 %v4536, %v4593
        %v4610 = vmul.f32 %v4594, %v4594
        %v4611 = vmul.f32 %v4595, %v4595
        %v4612 = vmul.f32 %v4596, %v4596
        %v4613 = vmul.f32 %v4597, %v4597
        %v4614 = vmul.f32 %v4598, %v4598
        %v4615 = vmul.f32 %v4599, %v4599
        %v4616 = vmul.f32 %v4600, %v4600
        %v4617 = vmul.f32 %v4601, %v4601
        %v4618 = vmul.f32 %v4602, %v4602
        %v4619 = vmul.f32 %v4603, %v4603
        %v4620 = vmul.f32 %v4604, %v4604
        %v4621 = vmul.f32 %v4605, %v4605
        %v4622 = vmul.f32 %v4606, %v4606
        %v4623 = vmul.f32 %v4607, %v4607
        %v4624 = vmul.f32 %v4608, %v4608
        %v4625 = vmul.f32 %v4609, %v4609
        %4626 = vadd.xlane.f32.xlu0 %v4610
        %v4627 = vpop.xlane.xlu0 %4626
        %4628 = vadd.xlane.f32.xlu0 %v4611
        %v4629 = vpop.xlane.xlu0 %4628
        %4630 = vadd.xlane.f32.xlu0 %v4612
        %v4631 = vpop.xlane.xlu0 %4630
        %4632 = vadd.xlane.f32.xlu0 %v4613
        %v4633 = vpop.xlane.xlu0 %4632
        %4634 = vadd.xlane.f32.xlu0 %v4614
        %v4635 = vpop.xlane.xlu0 %4634
        %4636 = vadd.xlane.f32.xlu0 %v4615
        %v4637 = vpop.xlane.xlu0 %4636
        %4638 = vadd.xlane.f32.xlu0 %v4616
        %v4639 = vpop.xlane.xlu0 %4638
        %4640 = vadd.xlane.f32.xlu0 %v4617
        %v4641 = vpop.xlane.xlu0 %4640
        %4642 = vadd.xlane.f32.xlu0 %v4618
        %v4643 = vpop.xlane.xlu0 %4642
        %4644 = vadd.xlane.f32.xlu0 %v4619
        %v4645 = vpop.xlane.xlu0 %4644
        %4646 = vadd.xlane.f32.xlu0 %v4620
        %v4647 = vpop.xlane.xlu0 %4646
        %4648 = vadd.xlane.f32.xlu0 %v4621
        %v4649 = vpop.xlane.xlu0 %4648
        %4650 = vadd.xlane.f32.xlu0 %v4622
        %v4651 = vpop.xlane.xlu0 %4650
        %4652 = vadd.xlane.f32.xlu0 %v4623
        %v4653 = vpop.xlane.xlu0 %4652
        %4654 = vadd.xlane.f32.xlu0 %v4624
        %v4655 = vpop.xlane.xlu0 %4654
        %4656 = vadd.xlane.f32.xlu0 %v4625
        %v4657 = vpop.xlane.xlu0 %4656
        %v4658 = vmul.f32 %v4627, %v4577
        %v4659 = vmul.f32 %v4629, %v4577
        %v4660 = vmul.f32 %v4631, %v4577
        %v4661 = vmul.f32 %v4633, %v4577
        %v4662 = vmul.f32 %v4635, %v4577
        %v4663 = vmul.f32 %v4637, %v4577
        %v4664 = vmul.f32 %v4639, %v4577
        %v4665 = vmul.f32 %v4641, %v4577
        %v4666 = vmul.f32 %v4643, %v4577
        %v4667 = vmul.f32 %v4645, %v4577
        %v4668 = vmul.f32 %v4647, %v4577
        %v4669 = vmul.f32 %v4649, %v4577
        %v4670 = vmul.f32 %v4651, %v4577
        %v4671 = vmul.f32 %v4653, %v4577
        %v4672 = vmul.f32 %v4655, %v4577
        %v4673 = vmul.f32 %v4657, %v4577
        %v4674 = vadd.f32 %v4658, 1e-10
        %v4675 = vadd.f32 %v4659, 1e-10
        %v4676 = vadd.f32 %v4660, 1e-10
        %v4677 = vadd.f32 %v4661, 1e-10
        %v4678 = vadd.f32 %v4662, 1e-10
        %v4679 = vadd.f32 %v4663, 1e-10
        %v4680 = vadd.f32 %v4664, 1e-10
        %v4681 = vadd.f32 %v4665, 1e-10
        %v4682 = vadd.f32 %v4666, 1e-10
        %v4683 = vadd.f32 %v4667, 1e-10
        %v4684 = vadd.f32 %v4668, 1e-10
        %v4685 = vadd.f32 %v4669, 1e-10
        %v4686 = vadd.f32 %v4670, 1e-10
        %v4687 = vadd.f32 %v4671, 1e-10
        %v4688 = vadd.f32 %v4672, 1e-10
        %v4689 = vadd.f32 %v4673, 1e-10
        %v4690 = vrsqrt.pop %v4674
        %v4691 = vmul.f32 %v4690, %v4674
        %v4692 = vmul.f32 %v4691, %v4690
        %v4693 = vmul.f32 0.5, %v4692
        %v4694 = vsub.f32 1.5, %v4693
        %v4695 = vmul.f32 %v4690, %v4694
        %vm4696 = vweird.f32 %v4674
        %vm4697 = vweird.f32 %v4690
        %vm4698 = vmor %vm4696, %vm4697
        %v4699 = vsel %vm4698, %v4690, %v4695
        %v4700 = vrsqrt.pop %v4675
        %v4701 = vmul.f32 %v4700, %v4675
        %v4702 = vmul.f32 %v4701, %v4700
        %v4703 = vmul.f32 0.5, %v4702
        %v4704 = vsub.f32 1.5, %v4703
        %v4705 = vmul.f32 %v4700, %v4704
        %vm4706 = vweird.f32 %v4675
        %vm4707 = vweird.f32 %v4700
        %vm4708 = vmor %vm4706, %vm4707
        %v4709 = vsel %vm4708, %v4700, %v4705
        %v4710 = vrsqrt.pop %v4676
        %v4711 = vmul.f32 %v4710, %v4676
        %v4712 = vmul.f32 %v4711, %v4710
        %v4713 = vmul.f32 0.5, %v4712
        %v4714 = vsub.f32 1.5, %v4713
        %v4715 = vmul.f32 %v4710, %v4714
        %vm4716 = vweird.f32 %v4676
        %vm4717 = vweird.f32 %v4710
        %vm4718 = vmor %vm4716, %vm4717
        %v4719 = vsel %vm4718, %v4710, %v4715
        %v4720 = vrsqrt.pop %v4677
        %v4721 = vmul.f32 %v4720, %v4677
        %v4722 = vmul.f32 %v4721, %v4720
        %v4723 = vmul.f32 0.5, %v4722
        %v4724 = vsub.f32 1.5, %v4723
        %v4725 = vmul.f32 %v4720, %v4724
        %vm4726 = vweird.f32 %v4677
        %vm4727 = vweird.f32 %v4720
        %vm4728 = vmor %vm4726, %vm4727
        %v4729 = vsel %vm4728, %v4720, %v4725
        %v4730 = vrsqrt.pop %v4678
        %v4731 = vmul.f32 %v4730, %v4678
        %v4732 = vmul.f32 %v4731, %v4730
        %v4733 = vmul.f32 0.5, %v4732
        %v4734 = vsub.f32 1.5, %v4733
        %v4735 = vmul.f32 %v4730, %v4734
        %vm4736 = vweird.f32 %v4678
        %vm4737 = vweird.f32 %v4730
        %vm4738 = vmor %vm4736, %vm4737
        %v4739 = vsel %vm4738, %v4730, %v4735
        %v4740 = vrsqrt.pop %v4679
        %v4741 = vmul.f32 %v4740, %v4679
        %v4742 = vmul.f32 %v4741, %v4740
        %v4743 = vmul.f32 0.5, %v4742
        %v4744 = vsub.f32 1.5, %v4743
        %v4745 = vmul.f32 %v4740, %v4744
        %vm4746 = vweird.f32 %v4679
        %vm4747 = vweird.f32 %v4740
        %vm4748 = vmor %vm4746, %vm4747
        %v4749 = vsel %vm4748, %v4740, %v4745
        %v4750 = vrsqrt.pop %v4680
        %v4751 = vmul.f32 %v4750, %v4680
        %v4752 = vmul.f32 %v4751, %v4750
        %v4753 = vmul.f32 0.5, %v4752
        %v4754 = vsub.f32 1.5, %v4753
        %v4755 = vmul.f32 %v4750, %v4754
        %vm4756 = vweird.f32 %v4680
        %vm4757 = vweird.f32 %v4750
        %vm4758 = vmor %vm4756, %vm4757
        %v4759 = vsel %vm4758, %v4750, %v4755
        %v4760 = vrsqrt.pop %v4681
        %v4761 = vmul.f32 %v4760, %v4681
        %v4762 = vmul.f32 %v4761, %v4760
        %v4763 = vmul.f32 0.5, %v4762
        %v4764 = vsub.f32 1.5, %v4763
        %v4765 = vmul.f32 %v4760, %v4764
        %vm4766 = vweird.f32 %v4681
        %vm4767 = vweird.f32 %v4760
        %vm4768 = vmor %vm4766, %vm4767
        %v4769 = vsel %vm4768, %v4760, %v4765
        %v4770 = vrsqrt.pop %v4682
        %v4771 = vmul.f32 %v4770, %v4682
        %v4772 = vmul.f32 %v4771, %v4770
        %v4773 = vmul.f32 0.5, %v4772
        %v4774 = vsub.f32 1.5, %v4773
        %v4775 = vmul.f32 %v4770, %v4774
        %vm4776 = vweird.f32 %v4682
        %vm4777 = vweird.f32 %v4770
        %vm4778 = vmor %vm4776, %vm4777
        %v4779 = vsel %vm4778, %v4770, %v4775
        %v4780 = vrsqrt.pop %v4683
        %v4781 = vmul.f32 %v4780, %v4683
        %v4782 = vmul.f32 %v4781, %v4780
        %v4783 = vmul.f32 0.5, %v4782
        %v4784 = vsub.f32 1.5, %v4783
        %v4785 = vmul.f32 %v4780, %v4784
        %vm4786 = vweird.f32 %v4683
        %vm4787 = vweird.f32 %v4780
        %vm4788 = vmor %vm4786, %vm4787
        %v4789 = vsel %vm4788, %v4780, %v4785
        %v4790 = vrsqrt.pop %v4684
        %v4791 = vmul.f32 %v4790, %v4684
        %v4792 = vmul.f32 %v4791, %v4790
        %v4793 = vmul.f32 0.5, %v4792
        %v4794 = vsub.f32 1.5, %v4793
        %v4795 = vmul.f32 %v4790, %v4794
        %vm4796 = vweird.f32 %v4684
        %vm4797 = vweird.f32 %v4790
        %vm4798 = vmor %vm4796, %vm4797
        %v4799 = vsel %vm4798, %v4790, %v4795
        %v4800 = vrsqrt.pop %v4685
        %v4801 = vmul.f32 %v4800, %v4685
        %v4802 = vmul.f32 %v4801, %v4800
        %v4803 = vmul.f32 0.5, %v4802
        %v4804 = vsub.f32 1.5, %v4803
        %v4805 = vmul.f32 %v4800, %v4804
        %vm4806 = vweird.f32 %v4685
        %vm4807 = vweird.f32 %v4800
        %vm4808 = vmor %vm4806, %vm4807
        %v4809 = vsel %vm4808, %v4800, %v4805
        %v4810 = vrsqrt.pop %v4686
        %v4811 = vmul.f32 %v4810, %v4686
        %v4812 = vmul.f32 %v4811, %v4810
        %v4813 = vmul.f32 0.5, %v4812
        %v4814 = vsub.f32 1.5, %v4813
        %v4815 = vmul.f32 %v4810, %v4814
        %vm4816 = vweird.f32 %v4686
        %vm4817 = vweird.f32 %v4810
        %vm4818 = vmor %vm4816, %vm4817
        %v4819 = vsel %vm4818, %v4810, %v4815
        %v4820 = vrsqrt.pop %v4687
        %v4821 = vmul.f32 %v4820, %v4687
        %v4822 = vmul.f32 %v4821, %v4820
        %v4823 = vmul.f32 0.5, %v4822
        %v4824 = vsub.f32 1.5, %v4823
        %v4825 = vmul.f32 %v4820, %v4824
        %vm4826 = vweird.f32 %v4687
        %vm4827 = vweird.f32 %v4820
        %vm4828 = vmor %vm4826, %vm4827
        %v4829 = vsel %vm4828, %v4820, %v4825
        %v4830 = vrsqrt.pop %v4688
        %v4831 = vmul.f32 %v4830, %v4688
        %v4832 = vmul.f32 %v4831, %v4830
        %v4833 = vmul.f32 0.5, %v4832
        %v4834 = vsub.f32 1.5, %v4833
        %v4835 = vmul.f32 %v4830, %v4834
        %vm4836 = vweird.f32 %v4688
        %vm4837 = vweird.f32 %v4830
        %vm4838 = vmor %vm4836, %vm4837
        %v4839 = vsel %vm4838, %v4830, %v4835
        %v4840 = vrsqrt.pop %v4689
        %v4841 = vmul.f32 %v4840, %v4689
        %v4842 = vmul.f32 %v4841, %v4840
        %v4843 = vmul.f32 0.5, %v4842
        %v4844 = vsub.f32 1.5, %v4843
        %v4845 = vmul.f32 %v4840, %v4844
        %vm4846 = vweird.f32 %v4689
        %vm4847 = vweird.f32 %v4840
        %vm4848 = vmor %vm4846, %vm4847
        %v4849 = vsel %vm4848, %v4840, %v4845
        %v4850 = vmul.f32 %v4594, %v4699
        %v4851 = vmul.f32 %v4595, %v4709
        %v4852 = vmul.f32 %v4596, %v4719
        %v4853 = vmul.f32 %v4597, %v4729
        %v4854 = vmul.f32 %v4598, %v4739
        %v4855 = vmul.f32 %v4599, %v4749
        %v4856 = vmul.f32 %v4600, %v4759
        %v4857 = vmul.f32 %v4601, %v4769
        %v4858 = vmul.f32 %v4602, %v4779
        %v4859 = vmul.f32 %v4603, %v4789
        %v4860 = vmul.f32 %v4604, %v4799
        %v4861 = vmul.f32 %v4605, %v4809
        %v4862 = vmul.f32 %v4606, %v4819
        %v4863 = vmul.f32 %v4607, %v4829
        %v4864 = vmul.f32 %v4608, %v4839
        %v4865 = vmul.f32 %v4609, %v4849
        %v4867 = vperm.slane %v4537, 0
        %v4869 = vmul.f32 %v4867, %v4850
        %v4870 = vmul.f32 %v4867, %v4851
        %v4871 = vmul.f32 %v4867, %v4852
        %v4872 = vmul.f32 %v4867, %v4853
        %v4873 = vmul.f32 %v4867, %v4854
        %v4874 = vmul.f32 %v4867, %v4855
        %v4875 = vmul.f32 %v4867, %v4856
        %v4876 = vmul.f32 %v4867, %v4857
        %v4877 = vmul.f32 %v4867, %v4858
        %v4878 = vmul.f32 %v4867, %v4859
        %v4879 = vmul.f32 %v4867, %v4860
        %v4880 = vmul.f32 %v4867, %v4861
        %v4881 = vmul.f32 %v4867, %v4862
        %v4882 = vmul.f32 %v4867, %v4863
        %v4883 = vmul.f32 %v4867, %v4864
        %v4884 = vmul.f32 %v4867, %v4865
        %v4886 = vperm.slane %v4538, 0
        %v4888 = vadd.f32 %v4869, %v4886
        %v4889 = vadd.f32 %v4870, %v4886
        %v4890 = vadd.f32 %v4871, %v4886
        %v4891 = vadd.f32 %v4872, %v4886
        %v4892 = vadd.f32 %v4873, %v4886
        %v4893 = vadd.f32 %v4874, %v4886
        %v4894 = vadd.f32 %v4875, %v4886
        %v4895 = vadd.f32 %v4876, %v4886
        %v4896 = vadd.f32 %v4877, %v4886
        %v4897 = vadd.f32 %v4878, %v4886
        %v4898 = vadd.f32 %v4879, %v4886
        %v4899 = vadd.f32 %v4880, %v4886
        %v4900 = vadd.f32 %v4881, %v4886
        %v4901 = vadd.f32 %v4882, %v4886
        %v4902 = vadd.f32 %v4883, %v4886
        %v4903 = vadd.f32 %v4884, %v4886
        %v4904 = vld [vmem:[#allocation12] sm:$0xff]
        %v4905 = vld [vmem:[#allocation12 + $0x8] sm:$0xff]
        %v4906 = vld [vmem:[#allocation12 + $0x10] sm:$0xff]
        %v4907 = vld [vmem:[#allocation12 + $0x18] sm:$0xff]
        %v4908 = vld [vmem:[#allocation12 + $0x20] sm:$0xff]
        %v4909 = vld [vmem:[#allocation12 + $0x28] sm:$0xff]
        %v4910 = vld [vmem:[#allocation12 + $0x30] sm:$0xff]
        %v4911 = vld [vmem:[#allocation12 + $0x38] sm:$0xff]
        %v4912 = vld [vmem:[#allocation12 + $0x40] sm:$0xff]
        %v4913 = vld [vmem:[#allocation12 + $0x48] sm:$0xff]
        %v4914 = vld [vmem:[#allocation12 + $0x50] sm:$0xff]
        %v4915 = vld [vmem:[#allocation12 + $0x58] sm:$0xff]
        %v4916 = vld [vmem:[#allocation12 + $0x60] sm:$0xff]
        %v4917 = vld [vmem:[#allocation12 + $0x68] sm:$0xff]
        %v4918 = vld [vmem:[#allocation12 + $0x70] sm:$0xff]
        %v4919 = vld [vmem:[#allocation12 + $0x78] sm:$0xff]
        %v4920 = vld [vmem:[#allocation12 + $0x80] sm:$0xff]
        %v4921 = vld [vmem:[#allocation12 + $0x88] sm:$0xff]
        %v4922 = vld [vmem:[#allocation12 + $0x90] sm:$0xff]
        %v4923 = vld [vmem:[#allocation12 + $0x98] sm:$0xff]
        %v4924 = vld [vmem:[#allocation12 + $0xa0] sm:$0xff]
        %v4925 = vld [vmem:[#allocation12 + $0xa8] sm:$0xff]
        %v4926 = vld [vmem:[#allocation12 + $0xb0] sm:$0xff]
        %v4927 = vld [vmem:[#allocation12 + $0xb8] sm:$0xff]
        %v4928 = vld [vmem:[#allocation12 + $0xc0] sm:$0xff]
        %v4929 = vld [vmem:[#allocation12 + $0xc8] sm:$0xff]
        %v4930 = vld [vmem:[#allocation12 + $0xd0] sm:$0xff]
        %v4931 = vld [vmem:[#allocation12 + $0xd8] sm:$0xff]
        %v4932 = vld [vmem:[#allocation12 + $0xe0] sm:$0xff]
        %v4933 = vld [vmem:[#allocation12 + $0xe8] sm:$0xff]
        %v4934 = vld [vmem:[#allocation12 + $0xf0] sm:$0xff]
        %v4935 = vld [vmem:[#allocation12 + $0xf8] sm:$0xff]
        %v4936 = vld [vmem:[%s9] sm:$0x3]
        %v4938 = vperm.slane %v4936, 0
        %v4939 = vperm.slane %v4936, 1
        %4942 = vmatpush.msra.mxu0 %v4934
        %4943 = vmatpush.msra.mxu0 %v4932
        %4944 = vmatpush.msra.mxu0 %v4930
        %4945 = vmatpush.msra.mxu0 %v4928
        %4946 = vmatpush.msra.mxu0 %v4926
        %4947 = vmatpush.msra.mxu0 %v4924
        %4948 = vmatpush.msra.mxu0 %v4922
        %4949 = vmatpush.msra.mxu0 %v4920
        %4950 = vmatpush.msra.mxu0 %v4918
        %4951 = vmatpush.msra.mxu0 %v4916
        %4952 = vmatpush.msra.mxu0 %v4914
        %4953 = vmatpush.msra.mxu0 %v4912
        %4954 = vmatpush.msra.mxu0 %v4910
        %4955 = vmatpush.msra.mxu0 %v4908
        %4956 = vmatpush.msra.mxu0 %v4906
        %4957 = vmatpush.msra.mxu0 %v4904
        %4958 = vmatmul.f32.gmra.mxu0 %v4888
        %v4959 = vpop.f32.mrf.mxu0
        %v4960 = vadd.f32 %v4938, %v4959
        %4961 = vmatmul.f32.gmra.mxu0 %v4889
        %v4962 = vpop.f32.mrf.mxu0
        %v4963 = vadd.f32 %v4938, %v4962
        %4964 = vmatmul.f32.gmra.mxu0 %v4890
        %v4965 = vpop.f32.mrf.mxu0
        %v4966 = vadd.f32 %v4938, %v4965
        %4967 = vmatmul.f32.gmra.mxu0 %v4891
        %v4968 = vpop.f32.mrf.mxu0
        %v4969 = vadd.f32 %v4938, %v4968
        %4970 = vmatmul.f32.gmra.mxu0 %v4892
        %v4971 = vpop.f32.mrf.mxu0
        %v4972 = vadd.f32 %v4938, %v4971
        %4973 = vmatmul.f32.gmra.mxu0 %v4893
        %v4974 = vpop.f32.mrf.mxu0
        %v4975 = vadd.f32 %v4938, %v4974
        %4976 = vmatmul.f32.gmra.mxu0 %v4894
        %v4977 = vpop.f32.mrf.mxu0
        %v4978 = vadd.f32 %v4938, %v4977
        %4979 = vmatmul.f32.gmra.mxu0 %v4895
        %v4980 = vpop.f32.mrf.mxu0
        %v4981 = vadd.f32 %v4938, %v4980
        %4982 = vmatmul.f32.gmra.mxu0 %v4896
        %v4983 = vpop.f32.mrf.mxu0
        %v4984 = vadd.f32 %v4938, %v4983
        %4985 = vmatmul.f32.gmra.mxu0 %v4897
        %v4986 = vpop.f32.mrf.mxu0
        %v4987 = vadd.f32 %v4938, %v4986
        %4988 = vmatmul.f32.gmra.mxu0 %v4898
        %v4989 = vpop.f32.mrf.mxu0
        %v4990 = vadd.f32 %v4938, %v4989
        %4991 = vmatmul.f32.gmra.mxu0 %v4899
        %v4992 = vpop.f32.mrf.mxu0
        %v4993 = vadd.f32 %v4938, %v4992
        %4994 = vmatmul.f32.gmra.mxu0 %v4900
        %v4995 = vpop.f32.mrf.mxu0
        %v4996 = vadd.f32 %v4938, %v4995
        %4997 = vmatmul.f32.gmra.mxu0 %v4901
        %v4998 = vpop.f32.mrf.mxu0
        %v4999 = vadd.f32 %v4938, %v4998
        %5000 = vmatmul.f32.gmra.mxu0 %v4902
        %v5001 = vpop.f32.mrf.mxu0
        %v5002 = vadd.f32 %v4938, %v5001
        %5003 = vmatmul.f32.gmra.mxu0 %v4903
        %v5004 = vpop.f32.mrf.mxu0
        %v5005 = vadd.f32 %v4938, %v5004
        %5006 = vdwg.mxu0
        %5007 = vmatpush.msra.mxu0 %v4935
        %5008 = vmatpush.msra.mxu0 %v4933
        %5009 = vmatpush.msra.mxu0 %v4931
        %5010 = vmatpush.msra.mxu0 %v4929
        %5011 = vmatpush.msra.mxu0 %v4927
        %5012 = vmatpush.msra.mxu0 %v4925
        %5013 = vmatpush.msra.mxu0 %v4923
        %5014 = vmatpush.msra.mxu0 %v4921
        %5015 = vmatpush.msra.mxu0 %v4919
        %5016 = vmatpush.msra.mxu0 %v4917
        %5017 = vmatpush.msra.mxu0 %v4915
        %5018 = vmatpush.msra.mxu0 %v4913
        %5019 = vmatpush.msra.mxu0 %v4911
        %5020 = vmatpush.msra.mxu0 %v4909
        %5021 = vmatpush.msra.mxu0 %v4907
        %5022 = vmatpush.msra.mxu0 %v4905
        %5023 = vmatmul.f32.gmra.mxu0 %v4888
        %v5024 = vpop.f32.mrf.mxu0
        %v5025 = vadd.f32 %v4939, %v5024
        %5026 = vmatmul.f32.gmra.mxu0 %v4889
        %v5027 = vpop.f32.mrf.mxu0
        %v5028 = vadd.f32 %v4939, %v5027
        %5029 = vmatmul.f32.gmra.mxu0 %v4890
        %v5030 = vpop.f32.mrf.mxu0
        %v5031 = vadd.f32 %v4939, %v5030
        %5032 = vmatmul.f32.gmra.mxu0 %v4891
        %v5033 = vpop.f32.mrf.mxu0
        %v5034 = vadd.f32 %v4939, %v5033
        %5035 = vmatmul.f32.gmra.mxu0 %v4892
        %v5036 = vpop.f32.mrf.mxu0
        %v5037 = vadd.f32 %v4939, %v5036
        %5038 = vmatmul.f32.gmra.mxu0 %v4893
        %v5039 = vpop.f32.mrf.mxu0
        %v5040 = vadd.f32 %v4939, %v5039
        %5041 = vmatmul.f32.gmra.mxu0 %v4894
        %v5042 = vpop.f32.mrf.mxu0
        %v5043 = vadd.f32 %v4939, %v5042
        %5044 = vmatmul.f32.gmra.mxu0 %v4895
        %v5045 = vpop.f32.mrf.mxu0
        %v5046 = vadd.f32 %v4939, %v5045
        %5047 = vmatmul.f32.gmra.mxu0 %v4896
        %v5048 = vpop.f32.mrf.mxu0
        %v5049 = vadd.f32 %v4939, %v5048
        %5050 = vmatmul.f32.gmra.mxu0 %v4897
        %v5051 = vpop.f32.mrf.mxu0
        %v5052 = vadd.f32 %v4939, %v5051
        %5053 = vmatmul.f32.gmra.mxu0 %v4898
        %v5054 = vpop.f32.mrf.mxu0
        %v5055 = vadd.f32 %v4939, %v5054
        %5056 = vmatmul.f32.gmra.mxu0 %v4899
        %v5057 = vpop.f32.mrf.mxu0
        %v5058 = vadd.f32 %v4939, %v5057
        %5059 = vmatmul.f32.gmra.mxu0 %v4900
        %v5060 = vpop.f32.mrf.mxu0
        %v5061 = vadd.f32 %v4939, %v5060
        %5062 = vmatmul.f32.gmra.mxu0 %v4901
        %v5063 = vpop.f32.mrf.mxu0
        %v5064 = vadd.f32 %v4939, %v5063
        %5065 = vmatmul.f32.gmra.mxu0 %v4902
        %v5066 = vpop.f32.mrf.mxu0
        %v5067 = vadd.f32 %v4939, %v5066
        %5068 = vmatmul.f32.gmra.mxu0 %v4903
        %v5069 = vpop.f32.mrf.mxu0
        %v5070 = vadd.f32 %v4939, %v5069
        %5071 = vdwg.mxu0
        %v5072 = vmax.f32 %v4960, 0.0
        %v5073 = vmax.f32 %v5025, 0.0
        %v5074 = vmax.f32 %v4963, 0.0
        %v5075 = vmax.f32 %v5028, 0.0
        %v5076 = vmax.f32 %v4966, 0.0
        %v5077 = vmax.f32 %v5031, 0.0
        %v5078 = vmax.f32 %v4969, 0.0
        %v5079 = vmax.f32 %v5034, 0.0
        %v5080 = vmax.f32 %v4972, 0.0
        %v5081 = vmax.f32 %v5037, 0.0
        %v5082 = vmax.f32 %v4975, 0.0
        %v5083 = vmax.f32 %v5040, 0.0
        %v5084 = vmax.f32 %v4978, 0.0
        %v5085 = vmax.f32 %v5043, 0.0
        %v5086 = vmax.f32 %v4981, 0.0
        %v5087 = vmax.f32 %v5046, 0.0
        %v5088 = vmax.f32 %v4984, 0.0
        %v5089 = vmax.f32 %v5049, 0.0
        %v5090 = vmax.f32 %v4987, 0.0
        %v5091 = vmax.f32 %v5052, 0.0
        %v5092 = vmax.f32 %v4990, 0.0
        %v5093 = vmax.f32 %v5055, 0.0
        %v5094 = vmax.f32 %v4993, 0.0
        %v5095 = vmax.f32 %v5058, 0.0
        %v5096 = vmax.f32 %v4996, 0.0
        %v5097 = vmax.f32 %v5061, 0.0
        %v5098 = vmax.f32 %v4999, 0.0
        %v5099 = vmax.f32 %v5064, 0.0
        %v5100 = vmax.f32 %v5002, 0.0
        %v5101 = vmax.f32 %v5067, 0.0
        %v5102 = vmax.f32 %v5005, 0.0
        %v5103 = vmax.f32 %v5070, 0.0
        %v5104 = vld [vmem:[#allocation13] sm:$0xff]
        %v5105 = vld [vmem:[#allocation13 + $0x8] sm:$0xff]
        %v5106 = vld [vmem:[#allocation13 + $0x10] sm:$0xff]
        %v5107 = vld [vmem:[#allocation13 + $0x18] sm:$0xff]
        %v5108 = vld [vmem:[#allocation13 + $0x20] sm:$0xff]
        %v5109 = vld [vmem:[#allocation13 + $0x28] sm:$0xff]
        %v5110 = vld [vmem:[#allocation13 + $0x30] sm:$0xff]
        %v5111 = vld [vmem:[#allocation13 + $0x38] sm:$0xff]
        %v5112 = vld [vmem:[#allocation13 + $0x40] sm:$0xff]
        %v5113 = vld [vmem:[#allocation13 + $0x48] sm:$0xff]
        %v5114 = vld [vmem:[#allocation13 + $0x50] sm:$0xff]
        %v5115 = vld [vmem:[#allocation13 + $0x58] sm:$0xff]
        %v5116 = vld [vmem:[#allocation13 + $0x60] sm:$0xff]
        %v5117 = vld [vmem:[#allocation13 + $0x68] sm:$0xff]
        %v5118 = vld [vmem:[#allocation13 + $0x70] sm:$0xff]
        %v5119 = vld [vmem:[#allocation13 + $0x78] sm:$0xff]
        %v5120 = vld [vmem:[#allocation13 + $0x80] sm:$0xff]
        %v5121 = vld [vmem:[#allocation13 + $0x88] sm:$0xff]
        %v5122 = vld [vmem:[#allocation13 + $0x90] sm:$0xff]
        %v5123 = vld [vmem:[#allocation13 + $0x98] sm:$0xff]
        %v5124 = vld [vmem:[#allocation13 + $0xa0] sm:$0xff]
        %v5125 = vld [vmem:[#allocation13 + $0xa8] sm:$0xff]
        %v5126 = vld [vmem:[#allocation13 + $0xb0] sm:$0xff]
        %v5127 = vld [vmem:[#allocation13 + $0xb8] sm:$0xff]
        %v5128 = vld [vmem:[#allocation13 + $0xc0] sm:$0xff]
        %v5129 = vld [vmem:[#allocation13 + $0xc8] sm:$0xff]
        %v5130 = vld [vmem:[#allocation13 + $0xd0] sm:$0xff]
        %v5131 = vld [vmem:[#allocation13 + $0xd8] sm:$0xff]
        %v5132 = vld [vmem:[#allocation13 + $0xe0] sm:$0xff]
        %v5133 = vld [vmem:[#allocation13 + $0xe8] sm:$0xff]
        %v5134 = vld [vmem:[#allocation13 + $0xf0] sm:$0xff]
        %v5135 = vld [vmem:[#allocation13 + $0xf8] sm:$0xff]
        %v5136 = vld [vmem:[%s11] sm:$0x1]
        %v5138 = vperm.slane %v5136, 0
        %5140 = vmatpush.msra.mxu0 %v5119
        %5141 = vmatpush.msra.mxu0 %v5118
        %5142 = vmatpush.msra.mxu0 %v5117
        %5143 = vmatpush.msra.mxu0 %v5116
        %5144 = vmatpush.msra.mxu0 %v5115
        %5145 = vmatpush.msra.mxu0 %v5114
        %5146 = vmatpush.msra.mxu0 %v5113
        %5147 = vmatpush.msra.mxu0 %v5112
        %5148 = vmatpush.msra.mxu0 %v5111
        %5149 = vmatpush.msra.mxu0 %v5110
        %5150 = vmatpush.msra.mxu0 %v5109
        %5151 = vmatpush.msra.mxu0 %v5108
        %5152 = vmatpush.msra.mxu0 %v5107
        %5153 = vmatpush.msra.mxu0 %v5106
        %5154 = vmatpush.msra.mxu0 %v5105
        %5155 = vmatpush.msra.mxu0 %v5104
        %5156 = vmatmul.f32.gmra.mxu0 %v5072
        %v5157 = vpop.f32.mrf.mxu0
        %v5158 = vadd.f32 %v5138, %v5157
        %5159 = vmatmul.f32.gmra.mxu0 %v5074
        %v5160 = vpop.f32.mrf.mxu0
        %v5161 = vadd.f32 %v5138, %v5160
        %5162 = vmatmul.f32.gmra.mxu0 %v5076
        %v5163 = vpop.f32.mrf.mxu0
        %v5164 = vadd.f32 %v5138, %v5163
        %5165 = vmatmul.f32.gmra.mxu0 %v5078
        %v5166 = vpop.f32.mrf.mxu0
        %v5167 = vadd.f32 %v5138, %v5166
        %5168 = vmatmul.f32.gmra.mxu0 %v5080
        %v5169 = vpop.f32.mrf.mxu0
        %v5170 = vadd.f32 %v5138, %v5169
        %5171 = vmatmul.f32.gmra.mxu0 %v5082
        %v5172 = vpop.f32.mrf.mxu0
        %v5173 = vadd.f32 %v5138, %v5172
        %5174 = vmatmul.f32.gmra.mxu0 %v5084
        %v5175 = vpop.f32.mrf.mxu0
        %v5176 = vadd.f32 %v5138, %v5175
        %5177 = vmatmul.f32.gmra.mxu0 %v5086
        %v5178 = vpop.f32.mrf.mxu0
        %v5179 = vadd.f32 %v5138, %v5178
        %5180 = vmatmul.f32.gmra.mxu0 %v5088
        %v5181 = vpop.f32.mrf.mxu0
        %v5182 = vadd.f32 %v5138, %v5181
        %5183 = vmatmul.f32.gmra.mxu0 %v5090
        %v5184 = vpop.f32.mrf.mxu0
        %v5185 = vadd.f32 %v5138, %v5184
        %5186 = vmatmul.f32.gmra.mxu0 %v5092
        %v5187 = vpop.f32.mrf.mxu0
        %v5188 = vadd.f32 %v5138, %v5187
        %5189 = vmatmul.f32.gmra.mxu0 %v5094
        %v5190 = vpop.f32.mrf.mxu0
        %v5191 = vadd.f32 %v5138, %v5190
        %5192 = vmatmul.f32.gmra.mxu0 %v5096
        %v5193 = vpop.f32.mrf.mxu0
        %v5194 = vadd.f32 %v5138, %v5193
        %5195 = vmatmul.f32.gmra.mxu0 %v5098
        %v5196 = vpop.f32.mrf.mxu0
        %v5197 = vadd.f32 %v5138, %v5196
        %5198 = vmatmul.f32.gmra.mxu0 %v5100
        %v5199 = vpop.f32.mrf.mxu0
        %v5200 = vadd.f32 %v5138, %v5199
        %5201 = vmatmul.f32.gmra.mxu0 %v5102
        %v5202 = vpop.f32.mrf.mxu0
        %v5203 = vadd.f32 %v5138, %v5202
        %5204 = vdwg.mxu0
        %5205 = vmatpush.msra.mxu0 %v5135
        %5206 = vmatpush.msra.mxu0 %v5134
        %5207 = vmatpush.msra.mxu0 %v5133
        %5208 = vmatpush.msra.mxu0 %v5132
        %5209 = vmatpush.msra.mxu0 %v5131
        %5210 = vmatpush.msra.mxu0 %v5130
        %5211 = vmatpush.msra.mxu0 %v5129
        %5212 = vmatpush.msra.mxu0 %v5128
        %5213 = vmatpush.msra.mxu0 %v5127
        %5214 = vmatpush.msra.mxu0 %v5126
        %5215 = vmatpush.msra.mxu0 %v5125
        %5216 = vmatpush.msra.mxu0 %v5124
        %5217 = vmatpush.msra.mxu0 %v5123
        %5218 = vmatpush.msra.mxu0 %v5122
        %5219 = vmatpush.msra.mxu0 %v5121
        %5220 = vmatpush.msra.mxu0 %v5120
        %5221 = vmatmul.f32.gmra.mxu0 %v5073
        %v5222 = vpop.f32.mrf.mxu0
        %v5223 = vadd.f32 %v5158, %v5222
        %5224 = vmatmul.f32.gmra.mxu0 %v5075
        %v5225 = vpop.f32.mrf.mxu0
        %v5226 = vadd.f32 %v5161, %v5225
        %5227 = vmatmul.f32.gmra.mxu0 %v5077
        %v5228 = vpop.f32.mrf.mxu0
        %v5229 = vadd.f32 %v5164, %v5228
        %5230 = vmatmul.f32.gmra.mxu0 %v5079
        %v5231 = vpop.f32.mrf.mxu0
        %v5232 = vadd.f32 %v5167, %v5231
        %5233 = vmatmul.f32.gmra.mxu0 %v5081
        %v5234 = vpop.f32.mrf.mxu0
        %v5235 = vadd.f32 %v5170, %v5234
        %5236 = vmatmul.f32.gmra.mxu0 %v5083
        %v5237 = vpop.f32.mrf.mxu0
        %v5238 = vadd.f32 %v5173, %v5237
        %5239 = vmatmul.f32.gmra.mxu0 %v5085
        %v5240 = vpop.f32.mrf.mxu0
        %v5241 = vadd.f32 %v5176, %v5240
        %5242 = vmatmul.f32.gmra.mxu0 %v5087
        %v5243 = vpop.f32.mrf.mxu0
        %v5244 = vadd.f32 %v5179, %v5243
        %5245 = vmatmul.f32.gmra.mxu0 %v5089
        %v5246 = vpop.f32.mrf.mxu0
        %v5247 = vadd.f32 %v5182, %v5246
        %5248 = vmatmul.f32.gmra.mxu0 %v5091
        %v5249 = vpop.f32.mrf.mxu0
        %v5250 = vadd.f32 %v5185, %v5249
        %5251 = vmatmul.f32.gmra.mxu0 %v5093
        %v5252 = vpop.f32.mrf.mxu0
        %v5253 = vadd.f32 %v5188, %v5252
        %5254 = vmatmul.f32.gmra.mxu0 %v5095
        %v5255 = vpop.f32.mrf.mxu0
        %v5256 = vadd.f32 %v5191, %v5255
        %5257 = vmatmul.f32.gmra.mxu0 %v5097
        %v5258 = vpop.f32.mrf.mxu0
        %v5259 = vadd.f32 %v5194, %v5258
        %5260 = vmatmul.f32.gmra.mxu0 %v5099
        %v5261 = vpop.f32.mrf.mxu0
        %v5262 = vadd.f32 %v5197, %v5261
        %5263 = vmatmul.f32.gmra.mxu0 %v5101
        %v5264 = vpop.f32.mrf.mxu0
        %v5265 = vadd.f32 %v5200, %v5264
        %5266 = vmatmul.f32.gmra.mxu0 %v5103
        %v5267 = vpop.f32.mrf.mxu0
        %v5268 = vadd.f32 %v5203, %v5267
        %5269 = vdwg.mxu0
        %v5270 = vadd.f32 %v5223, %v4888
        %v5271 = vadd.f32 %v5226, %v4889
        %v5272 = vadd.f32 %v5229, %v4890
        %v5273 = vadd.f32 %v5232, %v4891
        %v5274 = vadd.f32 %v5235, %v4892
        %v5275 = vadd.f32 %v5238, %v4893
        %v5276 = vadd.f32 %v5241, %v4894
        %v5277 = vadd.f32 %v5244, %v4895
        %v5278 = vadd.f32 %v5247, %v4896
        %v5279 = vadd.f32 %v5250, %v4897
        %v5280 = vadd.f32 %v5253, %v4898
        %v5281 = vadd.f32 %v5256, %v4899
        %v5282 = vadd.f32 %v5259, %v4900
        %v5283 = vadd.f32 %v5262, %v4901
        %v5284 = vadd.f32 %v5265, %v4902
        %v5285 = vadd.f32 %v5268, %v4903
        %v5286 = vld [vmem:[%s12] sm:$0x1]
        %v5287 = vld [vmem:[%s13] sm:$0x1]
        %5288 = vadd.xlane.f32.xlu0 %v5270
        %v5289 = vpop.xlane.xlu0 %5288
        %5290 = vadd.xlane.f32.xlu0 %v5271
        %v5291 = vpop.xlane.xlu0 %5290
        %5292 = vadd.xlane.f32.xlu0 %v5272
        %v5293 = vpop.xlane.xlu0 %5292
        %5294 = vadd.xlane.f32.xlu0 %v5273
        %v5295 = vpop.xlane.xlu0 %5294
        %5296 = vadd.xlane.f32.xlu0 %v5274
        %v5297 = vpop.xlane.xlu0 %5296
        %5298 = vadd.xlane.f32.xlu0 %v5275
        %v5299 = vpop.xlane.xlu0 %5298
        %5300 = vadd.xlane.f32.xlu0 %v5276
        %v5301 = vpop.xlane.xlu0 %5300
        %5302 = vadd.xlane.f32.xlu0 %v5277
        %v5303 = vpop.xlane.xlu0 %5302
        %5304 = vadd.xlane.f32.xlu0 %v5278
        %v5305 = vpop.xlane.xlu0 %5304
        %5306 = vadd.xlane.f32.xlu0 %v5279
        %v5307 = vpop.xlane.xlu0 %5306
        %5308 = vadd.xlane.f32.xlu0 %v5280
        %v5309 = vpop.xlane.xlu0 %5308
        %5310 = vadd.xlane.f32.xlu0 %v5281
        %v5311 = vpop.xlane.xlu0 %5310
        %5312 = vadd.xlane.f32.xlu0 %v5282
        %v5313 = vpop.xlane.xlu0 %5312
        %5314 = vadd.xlane.f32.xlu0 %v5283
        %v5315 = vpop.xlane.xlu0 %5314
        %5316 = vadd.xlane.f32.xlu0 %v5284
        %v5317 = vpop.xlane.xlu0 %5316
        %5318 = vadd.xlane.f32.xlu0 %v5285
        %v5319 = vpop.xlane.xlu0 %5318
        %v5320 = vmul.f32 %v5289, %v4577
        %v5321 = vmul.f32 %v5291, %v4577
        %v5322 = vmul.f32 %v5293, %v4577
        %v5323 = vmul.f32 %v5295, %v4577
        %v5324 = vmul.f32 %v5297, %v4577
        %v5325 = vmul.f32 %v5299, %v4577
        %v5326 = vmul.f32 %v5301, %v4577
        %v5327 = vmul.f32 %v5303, %v4577
        %v5328 = vmul.f32 %v5305, %v4577
        %v5329 = vmul.f32 %v5307, %v4577
        %v5330 = vmul.f32 %v5309, %v4577
        %v5331 = vmul.f32 %v5311, %v4577
        %v5332 = vmul.f32 %v5313, %v4577
        %v5333 = vmul.f32 %v5315, %v4577
        %v5334 = vmul.f32 %v5317, %v4577
        %v5335 = vmul.f32 %v5319, %v4577
        %v5336 = vsub.f32 %v5270, %v5320
        %v5337 = vsub.f32 %v5271, %v5321
        %v5338 = vsub.f32 %v5272, %v5322
        %v5339 = vsub.f32 %v5273, %v5323
        %v5340 = vsub.f32 %v5274, %v5324
        %v5341 = vsub.f32 %v5275, %v5325
        %v5342 = vsub.f32 %v5276, %v5326
        %v5343 = vsub.f32 %v5277, %v5327
        %v5344 = vsub.f32 %v5278, %v5328
        %v5345 = vsub.f32 %v5279, %v5329
        %v5346 = vsub.f32 %v5280, %v5330
        %v5347 = vsub.f32 %v5281, %v5331
        %v5348 = vsub.f32 %v5282, %v5332
        %v5349 = vsub.f32 %v5283, %v5333
        %v5350 = vsub.f32 %v5284, %v5334
        %v5351 = vsub.f32 %v5285, %v5335
        %v5352 = vmul.f32 %v5336, %v5336
        %v5353 = vmul.f32 %v5337, %v5337
        %v5354 = vmul.f32 %v5338, %v5338
        %v5355 = vmul.f32 %v5339, %v5339
        %v5356 = vmul.f32 %v5340, %v5340
        %v5357 = vmul.f32 %v5341, %v5341
        %v5358 = vmul.f32 %v5342, %v5342
        %v5359 = vmul.f32 %v5343, %v5343
        %v5360 = vmul.f32 %v5344, %v5344
        %v5361 = vmul.f32 %v5345, %v5345
        %v5362 = vmul.f32 %v5346, %v5346
        %v5363 = vmul.f32 %v5347, %v5347
        %v5364 = vmul.f32 %v5348, %v5348
        %v5365 = vmul.f32 %v5349, %v5349
        %v5366 = vmul.f32 %v5350, %v5350
        %v5367 = vmul.f32 %v5351, %v5351
        %5368 = vadd.xlane.f32.xlu0 %v5352
        %v5369 = vpop.xlane.xlu0 %5368
        %5370 = vadd.xlane.f32.xlu0 %v5353
        %v5371 = vpop.xlane.xlu0 %5370
        %5372 = vadd.xlane.f32.xlu0 %v5354
        %v5373 = vpop.xlane.xlu0 %5372
        %5374 = vadd.xlane.f32.xlu0 %v5355
        %v5375 = vpop.xlane.xlu0 %5374
        %5376 = vadd.xlane.f32.xlu0 %v5356
        %v5377 = vpop.xlane.xlu0 %5376
        %5378 = vadd.xlane.f32.xlu0 %v5357
        %v5379 = vpop.xlane.xlu0 %5378
        %5380 = vadd.xlane.f32.xlu0 %v5358
        %v5381 = vpop.xlane.xlu0 %5380
        %5382 = vadd.xlane.f32.xlu0 %v5359
        %v5383 = vpop.xlane.xlu0 %5382
        %5384 = vadd.xlane.f32.xlu0 %v5360
        %v5385 = vpop.xlane.xlu0 %5384
        %5386 = vadd.xlane.f32.xlu0 %v5361
        %v5387 = vpop.xlane.xlu0 %5386
        %5388 = vadd.xlane.f32.xlu0 %v5362
        %v5389 = vpop.xlane.xlu0 %5388
        %5390 = vadd.xlane.f32.xlu0 %v5363
        %v5391 = vpop.xlane.xlu0 %5390
        %5392 = vadd.xlane.f32.xlu0 %v5364
        %v5393 = vpop.xlane.xlu0 %5392
        %5394 = vadd.xlane.f32.xlu0 %v5365
        %v5395 = vpop.xlane.xlu0 %5394
        %5396 = vadd.xlane.f32.xlu0 %v5366
        %v5397 = vpop.xlane.xlu0 %5396
        %5398 = vadd.xlane.f32.xlu0 %v5367
        %v5399 = vpop.xlane.xlu0 %5398
        %v5400 = vmul.f32 %v5369, %v4577
        %v5401 = vmul.f32 %v5371, %v4577
        %v5402 = vmul.f32 %v5373, %v4577
        %v5403 = vmul.f32 %v5375, %v4577
        %v5404 = vmul.f32 %v5377, %v4577
        %v5405 = vmul.f32 %v5379, %v4577
        %v5406 = vmul.f32 %v5381, %v4577
        %v5407 = vmul.f32 %v5383, %v4577
        %v5408 = vmul.f32 %v5385, %v4577
        %v5409 = vmul.f32 %v5387, %v4577
        %v5410 = vmul.f32 %v5389, %v4577
        %v5411 = vmul.f32 %v5391, %v4577
        %v5412 = vmul.f32 %v5393, %v4577
        %v5413 = vmul.f32 %v5395, %v4577
        %v5414 = vmul.f32 %v5397, %v4577
        %v5415 = vmul.f32 %v5399, %v4577
        %v5416 = vadd.f32 %v5400, 1e-10
        %v5417 = vadd.f32 %v5401, 1e-10
        %v5418 = vadd.f32 %v5402, 1e-10
        %v5419 = vadd.f32 %v5403, 1e-10
        %v5420 = vadd.f32 %v5404, 1e-10
        %v5421 = vadd.f32 %v5405, 1e-10
        %v5422 = vadd.f32 %v5406, 1e-10
        %v5423 = vadd.f32 %v5407, 1e-10
        %v5424 = vadd.f32 %v5408, 1e-10
        %v5425 = vadd.f32 %v5409, 1e-10
        %v5426 = vadd.f32 %v5410, 1e-10
        %v5427 = vadd.f32 %v5411, 1e-10
        %v5428 = vadd.f32 %v5412, 1e-10
        %v5429 = vadd.f32 %v5413, 1e-10
        %v5430 = vadd.f32 %v5414, 1e-10
        %v5431 = vadd.f32 %v5415, 1e-10
        %v5432 = vrsqrt.pop %v5416
        %v5433 = vmul.f32 %v5432, %v5416
        %v5434 = vmul.f32 %v5433, %v5432
        %v5435 = vmul.f32 0.5, %v5434
        %v5436 = vsub.f32 1.5, %v5435
        %v5437 = vmul.f32 %v5432, %v5436
        %vm5438 = vweird.f32 %v5416
        %vm5439 = vweird.f32 %v5432
        %vm5440 = vmor %vm5438, %vm5439
        %v5441 = vsel %vm5440, %v5432, %v5437
        %v5442 = vrsqrt.pop %v5417
        %v5443 = vmul.f32 %v5442, %v5417
        %v5444 = vmul.f32 %v5443, %v5442
        %v5445 = vmul.f32 0.5, %v5444
        %v5446 = vsub.f32 1.5, %v5445
        %v5447 = vmul.f32 %v5442, %v5446
        %vm5448 = vweird.f32 %v5417
        %vm5449 = vweird.f32 %v5442
        %vm5450 = vmor %vm5448, %vm5449
        %v5451 = vsel %vm5450, %v5442, %v5447
        %v5452 = vrsqrt.pop %v5418
        %v5453 = vmul.f32 %v5452, %v5418
        %v5454 = vmul.f32 %v5453, %v5452
        %v5455 = vmul.f32 0.5, %v5454
        %v5456 = vsub.f32 1.5, %v5455
        %v5457 = vmul.f32 %v5452, %v5456
        %vm5458 = vweird.f32 %v5418
        %vm5459 = vweird.f32 %v5452
        %vm5460 = vmor %vm5458, %vm5459
        %v5461 = vsel %vm5460, %v5452, %v5457
        %v5462 = vrsqrt.pop %v5419
        %v5463 = vmul.f32 %v5462, %v5419
        %v5464 = vmul.f32 %v5463, %v5462
        %v5465 = vmul.f32 0.5, %v5464
        %v5466 = vsub.f32 1.5, %v5465
        %v5467 = vmul.f32 %v5462, %v5466
        %vm5468 = vweird.f32 %v5419
        %vm5469 = vweird.f32 %v5462
        %vm5470 = vmor %vm5468, %vm5469
        %v5471 = vsel %vm5470, %v5462, %v5467
        %v5472 = vrsqrt.pop %v5420
        %v5473 = vmul.f32 %v5472, %v5420
        %v5474 = vmul.f32 %v5473, %v5472
        %v5475 = vmul.f32 0.5, %v5474
        %v5476 = vsub.f32 1.5, %v5475
        %v5477 = vmul.f32 %v5472, %v5476
        %vm5478 = vweird.f32 %v5420
        %vm5479 = vweird.f32 %v5472
        %vm5480 = vmor %vm5478, %vm5479
        %v5481 = vsel %vm5480, %v5472, %v5477
        %v5482 = vrsqrt.pop %v5421
        %v5483 = vmul.f32 %v5482, %v5421
        %v5484 = vmul.f32 %v5483, %v5482
        %v5485 = vmul.f32 0.5, %v5484
        %v5486 = vsub.f32 1.5, %v5485
        %v5487 = vmul.f32 %v5482, %v5486
        %vm5488 = vweird.f32 %v5421
        %vm5489 = vweird.f32 %v5482
        %vm5490 = vmor %vm5488, %vm5489
        %v5491 = vsel %vm5490, %v5482, %v5487
        %v5492 = vrsqrt.pop %v5422
        %v5493 = vmul.f32 %v5492, %v5422
        %v5494 = vmul.f32 %v5493, %v5492
        %v5495 = vmul.f32 0.5, %v5494
        %v5496 = vsub.f32 1.5, %v5495
        %v5497 = vmul.f32 %v5492, %v5496
        %vm5498 = vweird.f32 %v5422
        %vm5499 = vweird.f32 %v5492
        %vm5500 = vmor %vm5498, %vm5499
        %v5501 = vsel %vm5500, %v5492, %v5497
        %v5502 = vrsqrt.pop %v5423
        %v5503 = vmul.f32 %v5502, %v5423
        %v5504 = vmul.f32 %v5503, %v5502
        %v5505 = vmul.f32 0.5, %v5504
        %v5506 = vsub.f32 1.5, %v5505
        %v5507 = vmul.f32 %v5502, %v5506
        %vm5508 = vweird.f32 %v5423
        %vm5509 = vweird.f32 %v5502
        %vm5510 = vmor %vm5508, %vm5509
        %v5511 = vsel %vm5510, %v5502, %v5507
        %v5512 = vrsqrt.pop %v5424
        %v5513 = vmul.f32 %v5512, %v5424
        %v5514 = vmul.f32 %v5513, %v5512
        %v5515 = vmul.f32 0.5, %v5514
        %v5516 = vsub.f32 1.5, %v5515
        %v5517 = vmul.f32 %v5512, %v5516
        %vm5518 = vweird.f32 %v5424
        %vm5519 = vweird.f32 %v5512
        %vm5520 = vmor %vm5518, %vm5519
        %v5521 = vsel %vm5520, %v5512, %v5517
        %v5522 = vrsqrt.pop %v5425
        %v5523 = vmul.f32 %v5522, %v5425
        %v5524 = vmul.f32 %v5523, %v5522
        %v5525 = vmul.f32 0.5, %v5524
        %v5526 = vsub.f32 1.5, %v5525
        %v5527 = vmul.f32 %v5522, %v5526
        %vm5528 = vweird.f32 %v5425
        %vm5529 = vweird.f32 %v5522
        %vm5530 = vmor %vm5528, %vm5529
        %v5531 = vsel %vm5530, %v5522, %v5527
        %v5532 = vrsqrt.pop %v5426
        %v5533 = vmul.f32 %v5532, %v5426
        %v5534 = vmul.f32 %v5533, %v5532
        %v5535 = vmul.f32 0.5, %v5534
        %v5536 = vsub.f32 1.5, %v5535
        %v5537 = vmul.f32 %v5532, %v5536
        %vm5538 = vweird.f32 %v5426
        %vm5539 = vweird.f32 %v5532
        %vm5540 = vmor %vm5538, %vm5539
        %v5541 = vsel %vm5540, %v5532, %v5537
        %v5542 = vrsqrt.pop %v5427
        %v5543 = vmul.f32 %v5542, %v5427
        %v5544 = vmul.f32 %v5543, %v5542
        %v5545 = vmul.f32 0.5, %v5544
        %v5546 = vsub.f32 1.5, %v5545
        %v5547 = vmul.f32 %v5542, %v5546
        %vm5548 = vweird.f32 %v5427
        %vm5549 = vweird.f32 %v5542
        %vm5550 = vmor %vm5548, %vm5549
        %v5551 = vsel %vm5550, %v5542, %v5547
        %v5552 = vrsqrt.pop %v5428
        %v5553 = vmul.f32 %v5552, %v5428
        %v5554 = vmul.f32 %v5553, %v5552
        %v5555 = vmul.f32 0.5, %v5554
        %v5556 = vsub.f32 1.5, %v5555
        %v5557 = vmul.f32 %v5552, %v5556
        %vm5558 = vweird.f32 %v5428
        %vm5559 = vweird.f32 %v5552
        %vm5560 = vmor %vm5558, %vm5559
        %v5561 = vsel %vm5560, %v5552, %v5557
        %v5562 = vrsqrt.pop %v5429
        %v5563 = vmul.f32 %v5562, %v5429
        %v5564 = vmul.f32 %v5563, %v5562
        %v5565 = vmul.f32 0.5, %v5564
        %v5566 = vsub.f32 1.5, %v5565
        %v5567 = vmul.f32 %v5562, %v5566
        %vm5568 = vweird.f32 %v5429
        %vm5569 = vweird.f32 %v5562
        %vm5570 = vmor %vm5568, %vm5569
        %v5571 = vsel %vm5570, %v5562, %v5567
        %v5572 = vrsqrt.pop %v5430
        %v5573 = vmul.f32 %v5572, %v5430
        %v5574 = vmul.f32 %v5573, %v5572
        %v5575 = vmul.f32 0.5, %v5574
        %v5576 = vsub.f32 1.5, %v5575
        %v5577 = vmul.f32 %v5572, %v5576
        %vm5578 = vweird.f32 %v5430
        %vm5579 = vweird.f32 %v5572
        %vm5580 = vmor %vm5578, %vm5579
        %v5581 = vsel %vm5580, %v5572, %v5577
        %v5582 = vrsqrt.pop %v5431
        %v5583 = vmul.f32 %v5582, %v5431
        %v5584 = vmul.f32 %v5583, %v5582
        %v5585 = vmul.f32 0.5, %v5584
        %v5586 = vsub.f32 1.5, %v5585
        %v5587 = vmul.f32 %v5582, %v5586
        %vm5588 = vweird.f32 %v5431
        %vm5589 = vweird.f32 %v5582
        %vm5590 = vmor %vm5588, %vm5589
        %v5591 = vsel %vm5590, %v5582, %v5587
        %v5592 = vmul.f32 %v5336, %v5441
        %v5593 = vmul.f32 %v5337, %v5451
        %v5594 = vmul.f32 %v5338, %v5461
        %v5595 = vmul.f32 %v5339, %v5471
        %v5596 = vmul.f32 %v5340, %v5481
        %v5597 = vmul.f32 %v5341, %v5491
        %v5598 = vmul.f32 %v5342, %v5501
        %v5599 = vmul.f32 %v5343, %v5511
        %v5600 = vmul.f32 %v5344, %v5521
        %v5601 = vmul.f32 %v5345, %v5531
        %v5602 = vmul.f32 %v5346, %v5541
        %v5603 = vmul.f32 %v5347, %v5551
        %v5604 = vmul.f32 %v5348, %v5561
        %v5605 = vmul.f32 %v5349, %v5571
        %v5606 = vmul.f32 %v5350, %v5581
        %v5607 = vmul.f32 %v5351, %v5591
        %v5609 = vperm.slane %v5286, 0
        %v5611 = vmul.f32 %v5609, %v5592
        %v5612 = vmul.f32 %v5609, %v5593
        %v5613 = vmul.f32 %v5609, %v5594
        %v5614 = vmul.f32 %v5609, %v5595
        %v5615 = vmul.f32 %v5609, %v5596
        %v5616 = vmul.f32 %v5609, %v5597
        %v5617 = vmul.f32 %v5609, %v5598
        %v5618 = vmul.f32 %v5609, %v5599
        %v5619 = vmul.f32 %v5609, %v5600
        %v5620 = vmul.f32 %v5609, %v5601
        %v5621 = vmul.f32 %v5609, %v5602
        %v5622 = vmul.f32 %v5609, %v5603
        %v5623 = vmul.f32 %v5609, %v5604
        %v5624 = vmul.f32 %v5609, %v5605
        %v5625 = vmul.f32 %v5609, %v5606
        %v5626 = vmul.f32 %v5609, %v5607
        %v5628 = vperm.slane %v5287, 0
        %v5630 = vadd.f32 %v5611, %v5628
        %v5631 = vadd.f32 %v5612, %v5628
        %v5632 = vadd.f32 %v5613, %v5628
        %v5633 = vadd.f32 %v5614, %v5628
        %v5634 = vadd.f32 %v5615, %v5628
        %v5635 = vadd.f32 %v5616, %v5628
        %v5636 = vadd.f32 %v5617, %v5628
        %v5637 = vadd.f32 %v5618, %v5628
        %v5638 = vadd.f32 %v5619, %v5628
        %v5639 = vadd.f32 %v5620, %v5628
        %v5640 = vadd.f32 %v5621, %v5628
        %v5641 = vadd.f32 %v5622, %v5628
        %v5642 = vadd.f32 %v5623, %v5628
        %v5643 = vadd.f32 %v5624, %v5628
        %v5644 = vadd.f32 %v5625, %v5628
        %v5645 = vadd.f32 %v5626, %v5628
        %5646 = vst [vmem:[%s551] sm:$0xff] %v5630
        %5647 = vst [vmem:[%s551 + $0x8] sm:$0xff] %v5631
        %5648 = vst [vmem:[%s551 + $0x10] sm:$0xff] %v5632
        %5649 = vst [vmem:[%s551 + $0x18] sm:$0xff] %v5633
        %5650 = vst [vmem:[%s551 + $0x20] sm:$0xff] %v5634
        %5651 = vst [vmem:[%s551 + $0x28] sm:$0xff] %v5635
        %5652 = vst [vmem:[%s551 + $0x30] sm:$0xff] %v5636
        %5653 = vst [vmem:[%s551 + $0x38] sm:$0xff] %v5637
        %5654 = vst [vmem:[%s551 + $0x40] sm:$0xff] %v5638
        %5655 = vst [vmem:[%s551 + $0x48] sm:$0xff] %v5639
        %5656 = vst [vmem:[%s551 + $0x50] sm:$0xff] %v5640
        %5657 = vst [vmem:[%s551 + $0x58] sm:$0xff] %v5641
        %5658 = vst [vmem:[%s551 + $0x60] sm:$0xff] %v5642
        %5659 = vst [vmem:[%s551 + $0x68] sm:$0xff] %v5643
        %5660 = vst [vmem:[%s551 + $0x70] sm:$0xff] %v5644
        %5661 = vst [vmem:[%s551 + $0x78] sm:$0xff] %v5645
        %s5662 = sand.u32 %s328, 1
        %s5663 = scalar_lea.sflag [#allocation6], %s5662
        %s5664 = sand.u32 %s328, 1
        %s5665 = smul.addr %s5664, 128
        %s5666 = scalar_lea.vmem [#allocation15], %s5665
        // Predicated region
        $region97: #{tpu_custom_call.1} parent=71 // pred_check
          %p5667 = pneg %p338
        $region98: #{tpu_custom_call.1} parent=71 // pred_check_branch
          %5669 = sbr.rel (%p5667) target = $region100
        $region99: #{tpu_custom_call.1} parent=71 // pred_region
          %s5670 = smul.u32 8, %s42
          %5672 = vsyncadd %s5663, 0
          %s5673 = smul.addr %s5670, 2
          %s5674 = smul.addr %s5673, 8
          %s5675 = scalar_lea.hbm %s14, %s5674
          %s5676 = sshll.u32 %s5666, 4
          %s5677 = int_to_ptr.vmem [resolvable:$true] %s5676
          %s5678 = sshll.u32 %s5675, 4
          %s5679 = int_to_ptr.hbm [resolvable:$true] %s5678
          %5684 = dma.vmem_to_hbm [thread:$0]  %s5677, 2048, %s5679, %s5663, 128, 128, 8
        $region100: #{tpu_custom_call.1} parent=71 // pred_fallthru
          _
      $region72: #{tpu_custom_call.1} parent=5 // pred_fallthru
        _
      %p5685 = scmp.le.s32.totalorder 2, %s37
      // Predicated region
      $region101: #{tpu_custom_call.1} parent=5 // pred_check
        %p5686 = pneg %p5685
      $region102: #{tpu_custom_call.1} parent=5 // pred_check_branch
        %5688 = sbr.rel (%p5686) target = $region104
      $region103: #{tpu_custom_call.1} parent=5 // pred_region
        %s5689 = ssub.s32 %s37, 2
        // Predicated region
        $region105: #{tpu_custom_call.1} parent=103 // pred_check
          %p5690 = pneg %p344
        $region106: #{tpu_custom_call.1} parent=103 // pred_check_branch
          %5692 = sbr.rel (%p5690) target = $region108
        $region107: #{tpu_custom_call.1} parent=103 // pred_region
          %s5693 = sand.u32 %s329, 1
          %s5694 = scalar_lea.sflag [#allocation6], %s5693
          %s5695 = sand.u32 %s329, 1
          %s5696 = smul.addr %s5695, 128
          %s5697 = scalar_lea.vmem [#allocation15], %s5696
          %5699 = dma.done %s5694, 2048
        $region108: #{tpu_custom_call.1} parent=103 // pred_fallthru
          _
      $region104: #{tpu_custom_call.1} parent=5 // pred_fallthru
        _
    $region6: #{tpu_custom_call.1} parent=1 // loop_footer
      %s41 = sadd.s32 1, %s37
    $region7: #{tpu_custom_call.1} parent=1 // loop_footer_branch
      %36 = sbr.rel target = $region3
    $region8: #{tpu_custom_call.1} parent=1 // loop_exit
      _
    %5700 = vsyncpa [#allocation5], 1
    %s5701 = scalar_lea.sflag [#allocation5], 1
    %5702 = vsyncpa %s5701, 1
    %5703 = vsyncpa [#allocation8], 1
    %5704 = vsyncpa [#allocation11], 1
    %5705 = vsyncpa [#allocation14], 1
    %5706 = vsyncpa [#allocation6], 1
    %s5707 = scalar_lea.sflag [#allocation6], 1
    %5708 = vsyncpa %s5707, 1

</llo_original>
